<compile_context>
chip_gen: v6e
topology: v6e:2x2x1
jax: 0.10.0
libtpu: 0.0.40
codegen_flags: <defaults>
</compile_context>

<pallas_src>
import numpy as np
import jax
import jax.numpy as jnp
from jax import lax
from jax.experimental import pallas as pl
from jax.experimental.pallas import tpu as pltpu


HIDDEN = 32       # per-modality feature width
G_DIM = 16        # gfeat width
N_CLASSES = 8

# packed output layout: [bases(3H) | feats(3H) | preds(3*cls) | gfeats(3*G) | fused_pred(cls)]
_OUT_USED = 3 * HIDDEN + 3 * HIDDEN + 3 * N_CLASSES + 3 * G_DIM + N_CLASSES   # 272
OUT_PAD = 384     # pad to 3*128 lanes -> lane-dense output slab


# ----------------------------------------------------------------------------
# The single fused Pallas kernel
# ----------------------------------------------------------------------------
def _semi3d_kernel(
    # data (channels-first, exactly as supplied)
    pt_ref, img_ref, imgv_ref, cen_ref, cor_ref, nrm_ref, nbr_ref,
    # cloud_net weights (stored transposed: w (H, Cin), b (H, 1))
    pt_w1t_ref, pt_b1t_ref, pt_w2t_ref, pt_b2t_ref,
    # meshnet layer-1 weights, transposed & split per input segment (self / neighbor)
    mw1_s_cen_ref, mw1_s_cor_ref, mw1_s_nrm_ref,
    mw1_n_cen_ref, mw1_n_cor_ref, mw1_n_nrm_ref,
    m_b1t_ref, m_w2t_ref, m_b2t_ref,
    # img_net weights (transposed)
    i_w1t_ref, i_b1t_ref, i_w2t_ref, i_b2t_ref,
    # fusion_net + fusion_head collapsed into two block-diagonal matmuls
    wa_ref, ba_ref, wb_ref, bb_ref,
    # packed output (B, OUT_PAD)
    o_ref,
):
    f32 = jnp.float32
    B = pt_ref.shape[0]
    Np = pt_ref.shape[2]
    F = cen_ref.shape[2]
    HW2 = img_ref.shape[2] + imgv_ref.shape[2]       # pixels per sample across both views
    H = pt_w1t_ref.shape[0]

    def fma_contract(w_t, x_cf):
        # (H, C) x (C, N) -> (H, N) as C broadcast multiply-adds on the VPU.
        # Avoids K=3..9 MXU matmuls and avoids transposing the channels-first data.
        acc = w_t[:, 0:1] * x_cf[0:1, :]
        for c in range(1, x_cf.shape[0]):
            acc = acc + w_t[:, c:c + 1] * x_cf[c:c + 1, :]
        return acc

    def mm(a, b):
        return jnp.dot(a, b, preferred_element_type=f32)

    pt_w1t, pt_b1t = pt_w1t_ref[...], pt_b1t_ref[...]
    pt_w2t, pt_b2t = pt_w2t_ref[...], pt_b2t_ref[...]
    mw1_s = (mw1_s_cen_ref[...], mw1_s_cor_ref[...], mw1_s_nrm_ref[...])
    mw1_n = (mw1_n_cen_ref[...], mw1_n_cor_ref[...], mw1_n_nrm_ref[...])
    m_b1t, m_w2t, m_b2t = m_b1t_ref[...], m_w2t_ref[...], m_b2t_ref[...]
    i_w1t, i_b1t = i_w1t_ref[...], i_b1t_ref[...]
    i_w2t, i_b2t = i_w2t_ref[...], i_b2t_ref[...]

    # -------------- cloud_net: shared MLP 3->H->H, max pool over points --------------
    # Batch is folded into the lane axis -> one wide FMA pass + one wide matmul.
    x_pt = jnp.concatenate([pt_ref[b] for b in range(B)], axis=1)            # (3, B*Np)
    h = jnp.maximum(fma_contract(pt_w1t, x_pt) + pt_b1t, 0.0)                # (H, B*Np)
    h = jnp.maximum(mm(pt_w2t, h) + pt_b2t, 0.0)                             # (H, B*Np)
    h_t = h.T                                                                # (B*Np, H)
    pt_base = jnp.concatenate(
        [jnp.max(h_t[b * Np:(b + 1) * Np], axis=0, keepdims=True) for b in range(B)],
        axis=0)                                                              # (B, H)

    # -------------- meshnet: self + neighbor-mean aggregation ------------------------
    cen = jnp.concatenate([cen_ref[b] for b in range(B)], axis=1)            # (3, B*F)
    cor = jnp.concatenate([cor_ref[b] for b in range(B)], axis=1)            # (9, B*F)
    nrm = jnp.concatenate([nrm_ref[b] for b in range(B)], axis=1)            # (3, B*F)
    segs = (cen, cor, nrm)
    s_self = sum(fma_contract(w, s) for w, s in zip(mw1_s, segs))            # (H, B*F)
    s_nbr = sum(fma_contract(w, s) for w, s in zip(mw1_n, segs))             # (H, B*F)
    # block-diagonal one-hot mean-aggregation matrix over the whole batch
    idx = jnp.concatenate([nbr_ref[b] + b * F for b in range(B)], axis=0)    # (B*F, 3)
    iota_g = lax.broadcasted_iota(jnp.int32, (B * F, B * F), 1)
    agg = ((idx[:, 0:1] == iota_g).astype(f32)
           + (idx[:, 1:2] == iota_g).astype(f32)
           + (idx[:, 2:3] == iota_g).astype(f32)) * (1.0 / 3.0)              # (B*F, B*F)
    # neighbor-mean gather as a matmul: nbr_term[:, f] = sum_g agg[f, g] * s_nbr[:, g]
    nbr_term = lax.dot_general(s_nbr, agg, (((1,), (1,)), ((), ())),
                               preferred_element_type=f32)                   # (H, B*F)
    h = jnp.maximum(s_self + nbr_term + m_b1t, 0.0)                          # (H, B*F)
    h = jnp.maximum(mm(m_w2t, h) + m_b2t, 0.0)
    h_t = h.T                                                                # (B*F, H)
    mesh_base = jnp.concatenate(
        [jnp.max(h_t[b * F:(b + 1) * F], axis=0, keepdims=True) for b in range(B)],
        axis=0)                                                              # (B, H)

    # -------------- img_net: both views + all samples in one pass --------------------
    x_img = jnp.concatenate(
        [jnp.concatenate([img_ref[b], imgv_ref[b]], axis=1) for b in range(B)],
        axis=1)                                                              # (3, B*2*HW)
    h = jnp.maximum(fma_contract(i_w1t, x_img) + i_b1t, 0.0)
    h = jnp.maximum(mm(i_w2t, h) + i_b2t, 0.0)
    h_t = h.T                                                                # (B*2HW, H)
    # mean over the union of pixels == 0.5 * (mean(view1) + mean(view2))
    img_base = jnp.concatenate(
        [jnp.mean(h_t[b * HW2:(b + 1) * HW2], axis=0, keepdims=True) for b in range(B)],
        axis=0)                                                              # (B, H)

    cat_base = jnp.concatenate([pt_base, mesh_base, img_base], axis=-1)      # (B, 3H)

    # ---- fusion_net + fusion_head collapsed into two block-diagonal matmuls ----
    h_a = mm(cat_base, wa_ref[...]) + ba_ref[...]                   # (B, 4H + 3*cls)
    z = jnp.maximum(h_a[:, 0:4 * H], 0.0)      # [pt_feat | mesh_feat | img_feat | fuse_h]
    preds = h_a[:, 4 * H:]                     # [pt_pred | mesh_pred | img_pred]
    h_b = mm(z, wb_ref[...]) + bb_ref[...]     # [pt_gf | mesh_gf | img_gf | fused_pred]

    pad = jnp.zeros((B, OUT_PAD - _OUT_USED), f32)
    o_ref[...] = jnp.concatenate([cat_base, z[:, 0:3 * H], preds, h_b, pad], axis=-1)


# ----------------------------------------------------------------------------
# Parameter construction (deterministic, synthetic) + derived kernel layouts
# ----------------------------------------------------------------------------
def _init_linear(key, fin, fout):
    kw, kb = jax.random.split(key)
    w = 0.1 * jax.random.normal(kw, (fin, fout), jnp.float32)
    b = 0.1 * jax.random.normal(kb, (1, fout), jnp.float32)
    return w, b


def init_params(key):
    keys = jax.random.split(key, 24)
    p = {}
    p["pt_w1"], p["pt_b1"] = _init_linear(keys[0], 3, HIDDEN)
    p["pt_w2"], p["pt_b2"] = _init_linear(keys[1], HIDDEN, HIDDEN)
    p["mesh_w1"], p["mesh_b1"] = _init_linear(keys[2], 30, HIDDEN)
    p["mesh_w2"], p["mesh_b2"] = _init_linear(keys[3], HIDDEN, HIDDEN)
    p["img_w1"], p["img_b1"] = _init_linear(keys[4], 3, HIDDEN)
    p["img_w2"], p["img_b2"] = _init_linear(keys[5], HIDDEN, HIDDEN)
    p["fuse_w1"], p["fuse_b1"] = _init_linear(keys[6], 3 * HIDDEN, HIDDEN)
    p["fuse_w2"], p["fuse_b2"] = _init_linear(keys[7], HIDDEN, N_CLASSES)
    ki = 8
    for mod in ("pt", "mesh", "img"):
        p[f"{mod}_pred_w"], p[f"{mod}_pred_b"] = _init_linear(keys[ki], HIDDEN, N_CLASSES); ki += 1
        p[f"{mod}_feat_w"], p[f"{mod}_feat_b"] = _init_linear(keys[ki], HIDDEN, HIDDEN); ki += 1
        p[f"{mod}_gfeat_w"], p[f"{mod}_gfeat_b"] = _init_linear(keys[ki], HIDDEN, G_DIM); ki += 1

    # ---- derived kernel-layout parameters (built once; zero per-call cost) ----
    H, C, G = HIDDEN, N_CLASSES, G_DIM
    for mod in ("pt", "img"):
        p[f"{mod}_w1t"] = p[f"{mod}_w1"].T          # (H, 3)
        p[f"{mod}_b1t"] = p[f"{mod}_b1"].T          # (H, 1)
        p[f"{mod}_w2t"] = p[f"{mod}_w2"].T          # (H, H)
        p[f"{mod}_b2t"] = p[f"{mod}_b2"].T          # (H, 1)
    mw1t = p["mesh_w1"].T                            # (H, 30): [self cen|cor|nrm, nbr cen|cor|nrm]
    p["mesh_w1t_s_cen"] = mw1t[:, 0:3]
    p["mesh_w1t_s_cor"] = mw1t[:, 3:12]
    p["mesh_w1t_s_nrm"] = mw1t[:, 12:15]
    p["mesh_w1t_n_cen"] = mw1t[:, 15:18]
    p["mesh_w1t_n_cor"] = mw1t[:, 18:27]
    p["mesh_w1t_n_nrm"] = mw1t[:, 27:30]
    p["mesh_b1t"] = p["mesh_b1"].T
    p["mesh_w2t"] = p["mesh_w2"].T
    p["mesh_b2t"] = p["mesh_b2"].T

    # W_A: cat_base (B,3H) -> [pt_feat|mesh_feat|img_feat|fuse_h | pt_pred|mesh_pred|img_pred]
    WA = jnp.zeros((3 * H, 4 * H + 3 * C), jnp.float32)
    WA = WA.at[0:H, 0:H].set(p["pt_feat_w"])
    WA = WA.at[H:2 * H, H:2 * H].set(p["mesh_feat_w"])
    WA = WA.at[2 * H:3 * H, 2 * H:3 * H].set(p["img_feat_w"])
    WA = WA.at[:, 3 * H:4 * H].set(p["fuse_w1"])
    WA = WA.at[0:H, 4 * H:4 * H + C].set(p["pt_pred_w"])
    WA = WA.at[H:2 * H, 4 * H + C:4 * H + 2 * C].set(p["mesh_pred_w"])
    WA = WA.at[2 * H:3 * H, 4 * H + 2 * C:4 * H + 3 * C].set(p["img_pred_w"])
    bA = jnp.concatenate([p["pt_feat_b"], p["mesh_feat_b"], p["img_feat_b"], p["fuse_b1"],
                          p["pt_pred_b"], p["mesh_pred_b"], p["img_pred_b"]], axis=1)
    # W_B: z = [feats|fuse_h] (B,4H) -> [pt_gfeat|mesh_gfeat|img_gfeat|fused_pred]
    WB = jnp.zeros((4 * H, 3 * G + C), jnp.float32)
    WB = WB.at[0:H, 0:G].set(p["pt_gfeat_w"])
    WB = WB.at[H:2 * H, G:2 * G].set(p["mesh_gfeat_w"])
    WB = WB.at[2 * H:3 * H, 2 * G:3 * G].set(p["img_gfeat_w"])
    WB = WB.at[3 * H:4 * H, 3 * G:3 * G + C].set(p["fuse_w2"])
    bB = jnp.concatenate([p["pt_gfeat_b"], p["mesh_gfeat_b"], p["img_gfeat_b"], p["fuse_b2"]], axis=1)
    p["WA"], p["bA"], p["WB"], p["bB"] = WA, bA, WB, bB
    return p


# ----------------------------------------------------------------------------
# Semi3D forward: one pallas_call, then static slicing of the packed slab
# ----------------------------------------------------------------------------
def semi3d_forward(params, pt, img, imgV, centers, corners, normals, neighbor_index):
    p = params
    B = pt.shape[0]
    H, C, G = HIDDEN, N_CLASSES, G_DIM
    Bi, Ci, Hh, Ww = img.shape
    img2 = img.reshape(Bi, Ci, Hh * Ww)        # free reshape (bytes unchanged)
    imgV2 = imgV.reshape(Bi, Ci, Hh * Ww)

    out = pl.pallas_call(
        _semi3d_kernel,
        out_shape=jax.ShapeDtypeStruct((B, OUT_PAD), jnp.float32),
        compiler_params=pltpu.CompilerParams(vmem_limit_bytes=32 * 1024 * 1024),
    )(pt, img2, imgV2, centers, corners, normals, neighbor_index.astype(jnp.int32),
      p["pt_w1t"], p["pt_b1t"], p["pt_w2t"], p["pt_b2t"],
      p["mesh_w1t_s_cen"], p["mesh_w1t_s_cor"], p["mesh_w1t_s_nrm"],
      p["mesh_w1t_n_cen"], p["mesh_w1t_n_cor"], p["mesh_w1t_n_nrm"],
      p["mesh_b1t"], p["mesh_w2t"], p["mesh_b2t"],
      p["img_w1t"], p["img_b1t"], p["img_w2t"], p["img_b2t"],
      p["WA"], p["bA"], p["WB"], p["bB"])

    # unpack the lane-dense slab (static slices)
    pt_base, mesh_base, img_base = out[:, 0:H], out[:, H:2 * H], out[:, 2 * H:3 * H]
    pt_feat, mesh_feat, img_feat = out[:, 3 * H:4 * H], out[:, 4 * H:5 * H], out[:, 5 * H:6 * H]
    o = 6 * H
    pt_pred, mesh_pred, img_pred = out[:, o:o + C], out[:, o + C:o + 2 * C], out[:, o + 2 * C:o + 3 * C]
    o = o + 3 * C
    pt_gfeat, mesh_gfeat, img_gfeat = out[:, o:o + G], out[:, o + G:o + 2 * G], out[:, o + 2 * G:o + 3 * G]
    fused_pred = out[:, o + 3 * G:o + 3 * G + C]

    # Same 13-tuple ordering as the PyTorch Semi3D.forward return.
    return (pt_pred, mesh_pred, img_pred, fused_pred,
            pt_feat, mesh_feat, img_feat,
            pt_base, mesh_base, img_base,
            pt_gfeat, mesh_gfeat, img_gfeat)


# ----------------------------------------------------------------------------
# Pure-JAX reference (original per-module weights, no Pallas) for validation
# ----------------------------------------------------------------------------
def _reference_forward(p, pt, img, imgV, centers, corners, normals, neighbor_index):
    hp = jax.lax.Precision.HIGHEST

    def mlp_pool(x, w1, b1, w2, b2, pool):
        h = jax.nn.relu(jnp.dot(x, w1, precision=hp) + b1)
        h = jax.nn.relu(jnp.dot(h, w2, precision=hp) + b2)
        return jnp.max(h, axis=1) if pool == "max" else jnp.mean(h, axis=1)

    def lin(x, w, b, relu=False):
        y = jnp.dot(x, w, precision=hp) + b
        return jax.nn.relu(y) if relu else y

    B = pt.shape[0]
    pt_base = mlp_pool(jnp.transpose(pt, (0, 2, 1)),
                       p["pt_w1"], p["pt_b1"], p["pt_w2"], p["pt_b2"], "max")
    mesh_in = jnp.transpose(jnp.concatenate([centers, corners, normals], axis=1), (0, 2, 1))
    b_idx = jnp.arange(B)[:, None, None]
    nbr = jnp.mean(mesh_in[b_idx, neighbor_index], axis=2)
    mesh_base = mlp_pool(jnp.concatenate([mesh_in, nbr], axis=-1),
                         p["mesh_w1"], p["mesh_b1"], p["mesh_w2"], p["mesh_b2"], "max")

    def enc(x):
        Bi, Ci, Hh, Ww = x.shape
        xl = jnp.transpose(x, (0, 2, 3, 1)).reshape(Bi, Hh * Ww, Ci)
        return mlp_pool(xl, p["img_w1"], p["img_b1"], p["img_w2"], p["img_b2"], "mean")

    img_base = 0.5 * (enc(img) + enc(imgV))

    fused_in = jnp.concatenate([pt_base, mesh_base, img_base], axis=-1)
    fused_h = lin(fused_in, p["fuse_w1"], p["fuse_b1"], relu=True)
    fused_pred = lin(fused_h, p["fuse_w2"], p["fuse_b2"])

    def head(mod, base):
        pred = lin(base, p[f"{mod}_pred_w"], p[f"{mod}_pred_b"])
        feat = lin(base, p[f"{mod}_feat_w"], p[f"{mod}_feat_b"], relu=True)
        gfeat = lin(feat, p[f"{mod}_gfeat_w"], p[f"{mod}_gfeat_b"])
        return pred, feat, gfeat

    pt_pred, pt_feat, pt_gfeat = head("pt", pt_base)
    mesh_pred, mesh_feat, mesh_gfeat = head("mesh", mesh_base)
    img_pred, img_feat, img_gfeat = head("img", img_base)

    return (pt_pred, mesh_pred, img_pred, fused_pred,
            pt_feat, mesh_feat, img_feat,
            pt_base, mesh_base, img_base,
            pt_gfeat, mesh_gfeat, img_gfeat)


# ----------------------------------------------------------------------------
# Driver
# ----------------------------------------------------------------------------
if __name__ == "__main__":
    key = jax.random.PRNGKey(0)
    k_in, k_par = jax.random.split(key)
    ks = jax.random.split(k_in, 7)

    B, N_PTS, N_FACES, IMG_H, IMG_W = 2, 64, 32, 16, 16

    pt = jax.random.normal(ks[0], (B, 3, N_PTS), jnp.float32)           # NCL
    img = jax.random.normal(ks[1], (B, 3, IMG_H, IMG_W), jnp.float32)   # NCHW
    imgV = jax.random.normal(ks[2], (B, 3, IMG_H, IMG_W), jnp.float32)  # NCHW
    centers = jax.random.normal(ks[3], (B, 3, N_FACES), jnp.float32)
    corners = jax.random.normal(ks[4], (B, 9, N_FACES), jnp.float32)
    normals = jax.random.normal(ks[5], (B, 3, N_FACES), jnp.float32)
    neighbor_index = jax.random.randint(ks[6], (B, N_FACES, 3), 0, N_FACES, dtype=jnp.int32)

    params = init_params(k_par)

    fwd = jax.jit(semi3d_forward)
    outs = jax.block_until_ready(
        fwd(params, pt, img, imgV, centers, corners, normals, neighbor_index))

    # shape checks
    assert outs[0].shape == (B, N_CLASSES)          # pt_pred
    assert outs[3].shape == (B, N_CLASSES)          # fused_pred
    assert outs[4].shape == (B, HIDDEN)             # pt_feat
    assert outs[7].shape == (B, HIDDEN)             # pt_base
    assert outs[10].shape == (B, G_DIM)             # pt_gfeat
    assert len(outs) == 13

    # numerical check against the pure-JAX reference of the same forward pass
    refs = _reference_forward(params, pt, img, imgV, centers, corners, normals, neighbor_index)
    for got, want in zip(outs, refs):
        np.testing.assert_allclose(np.asarray(got), np.asarray(want), rtol=2e-2, atol=2e-3)

    print("KERNEL_OK")
</pallas_src>

<mosaic_0001>
module attributes {stable_mosaic.version = 11 : i64} {
  func.func @_semi3d_kernel(%arg0: memref<2x3x64xf32, #tpu.memory_space<vmem>>, %arg1: memref<2x3x256xf32, #tpu.memory_space<vmem>>, %arg2: memref<2x3x256xf32, #tpu.memory_space<vmem>>, %arg3: memref<2x3x32xf32, #tpu.memory_space<vmem>>, %arg4: memref<2x9x32xf32, #tpu.memory_space<vmem>>, %arg5: memref<2x3x32xf32, #tpu.memory_space<vmem>>, %arg6: memref<2x32x3xi32, #tpu.memory_space<vmem>>, %arg7: memref<32x3xf32, #tpu.memory_space<vmem>>, %arg8: memref<32x1xf32, #tpu.memory_space<vmem>>, %arg9: memref<32x32xf32, #tpu.memory_space<vmem>>, %arg10: memref<32x1xf32, #tpu.memory_space<vmem>>, %arg11: memref<32x3xf32, #tpu.memory_space<vmem>>, %arg12: memref<32x9xf32, #tpu.memory_space<vmem>>, %arg13: memref<32x3xf32, #tpu.memory_space<vmem>>, %arg14: memref<32x3xf32, #tpu.memory_space<vmem>>, %arg15: memref<32x9xf32, #tpu.memory_space<vmem>>, %arg16: memref<32x3xf32, #tpu.memory_space<vmem>>, %arg17: memref<32x1xf32, #tpu.memory_space<vmem>>, %arg18: memref<32x32xf32, #tpu.memory_space<vmem>>, %arg19: memref<32x1xf32, #tpu.memory_space<vmem>>, %arg20: memref<32x3xf32, #tpu.memory_space<vmem>>, %arg21: memref<32x1xf32, #tpu.memory_space<vmem>>, %arg22: memref<32x32xf32, #tpu.memory_space<vmem>>, %arg23: memref<32x1xf32, #tpu.memory_space<vmem>>, %arg24: memref<96x152xf32, #tpu.memory_space<vmem>>, %arg25: memref<1x152xf32, #tpu.memory_space<vmem>>, %arg26: memref<128x56xf32, #tpu.memory_space<vmem>>, %arg27: memref<1x56xf32, #tpu.memory_space<vmem>>, %arg28: memref<2x384xf32, #tpu.memory_space<vmem>>) attributes {dimension_semantics = [], scalar_prefetch = 0 : i64, scratch_operands = 0 : i64, tpu.core_type = #tpu.core_type<tc>} {
    %c0 = arith.constant 0 : index
    %c0_0 = arith.constant 0 : index
    %0 = vector.load %arg7[%c0, %c0_0] : memref<32x3xf32, #tpu.memory_space<vmem>>, vector<32x3xf32>
    %c0_1 = arith.constant 0 : index
    %c0_2 = arith.constant 0 : index
    %1 = vector.load %arg8[%c0_1, %c0_2] : memref<32x1xf32, #tpu.memory_space<vmem>>, vector<32x1xf32>
    %c0_3 = arith.constant 0 : index
    %c0_4 = arith.constant 0 : index
    %2 = vector.load %arg9[%c0_3, %c0_4] : memref<32x32xf32, #tpu.memory_space<vmem>>, vector<32x32xf32>
    %c0_5 = arith.constant 0 : index
    %c0_6 = arith.constant 0 : index
    %3 = vector.load %arg10[%c0_5, %c0_6] : memref<32x1xf32, #tpu.memory_space<vmem>>, vector<32x1xf32>
    %c0_7 = arith.constant 0 : index
    %c0_8 = arith.constant 0 : index
    %4 = vector.load %arg11[%c0_7, %c0_8] : memref<32x3xf32, #tpu.memory_space<vmem>>, vector<32x3xf32>
    %c0_9 = arith.constant 0 : index
    %c0_10 = arith.constant 0 : index
    %5 = vector.load %arg12[%c0_9, %c0_10] : memref<32x9xf32, #tpu.memory_space<vmem>>, vector<32x9xf32>
    %c0_11 = arith.constant 0 : index
    %c0_12 = arith.constant 0 : index
    %6 = vector.load %arg13[%c0_11, %c0_12] : memref<32x3xf32, #tpu.memory_space<vmem>>, vector<32x3xf32>
    %c0_13 = arith.constant 0 : index
    %c0_14 = arith.constant 0 : index
    %7 = vector.load %arg14[%c0_13, %c0_14] : memref<32x3xf32, #tpu.memory_space<vmem>>, vector<32x3xf32>
    %c0_15 = arith.constant 0 : index
    %c0_16 = arith.constant 0 : index
    %8 = vector.load %arg15[%c0_15, %c0_16] : memref<32x9xf32, #tpu.memory_space<vmem>>, vector<32x9xf32>
    %c0_17 = arith.constant 0 : index
    %c0_18 = arith.constant 0 : index
    %9 = vector.load %arg16[%c0_17, %c0_18] : memref<32x3xf32, #tpu.memory_space<vmem>>, vector<32x3xf32>
    %c0_19 = arith.constant 0 : index
    %c0_20 = arith.constant 0 : index
    %10 = vector.load %arg17[%c0_19, %c0_20] : memref<32x1xf32, #tpu.memory_space<vmem>>, vector<32x1xf32>
    %c0_21 = arith.constant 0 : index
    %c0_22 = arith.constant 0 : index
    %11 = vector.load %arg18[%c0_21, %c0_22] : memref<32x32xf32, #tpu.memory_space<vmem>>, vector<32x32xf32>
    %c0_23 = arith.constant 0 : index
    %c0_24 = arith.constant 0 : index
    %12 = vector.load %arg19[%c0_23, %c0_24] : memref<32x1xf32, #tpu.memory_space<vmem>>, vector<32x1xf32>
    %c0_25 = arith.constant 0 : index
    %c0_26 = arith.constant 0 : index
    %13 = vector.load %arg20[%c0_25, %c0_26] : memref<32x3xf32, #tpu.memory_space<vmem>>, vector<32x3xf32>
    %c0_27 = arith.constant 0 : index
    %c0_28 = arith.constant 0 : index
    %14 = vector.load %arg21[%c0_27, %c0_28] : memref<32x1xf32, #tpu.memory_space<vmem>>, vector<32x1xf32>
    %c0_29 = arith.constant 0 : index
    %c0_30 = arith.constant 0 : index
    %15 = vector.load %arg22[%c0_29, %c0_30] : memref<32x32xf32, #tpu.memory_space<vmem>>, vector<32x32xf32>
    %c0_31 = arith.constant 0 : index
    %c0_32 = arith.constant 0 : index
    %16 = vector.load %arg23[%c0_31, %c0_32] : memref<32x1xf32, #tpu.memory_space<vmem>>, vector<32x1xf32>
    %c0_33 = arith.constant 0 : index
    %c0_34 = arith.constant 0 : index
    %c0_35 = arith.constant 0 : index
    %17 = vector.load %arg0[%c0_33, %c0_34, %c0_35] : memref<2x3x64xf32, #tpu.memory_space<vmem>>, vector<1x3x64xf32>
    %18 = vector.shape_cast %17 : vector<1x3x64xf32> to vector<3x64xf32>
    %c1 = arith.constant 1 : index
    %c0_36 = arith.constant 0 : index
    %c0_37 = arith.constant 0 : index
    %19 = vector.load %arg0[%c1, %c0_36, %c0_37] : memref<2x3x64xf32, #tpu.memory_space<vmem>>, vector<1x3x64xf32>
    %20 = vector.shape_cast %19 : vector<1x3x64xf32> to vector<3x64xf32>
    %21 = tpu.concatenate %18, %20 in 1 : vector<3x64xf32>, vector<3x64xf32> -> vector<3x128xf32>
    %22 = vector.extract_strided_slice %0 {offsets = [0, 0], sizes = [32, 1], strides = [1, 1]} : vector<32x3xf32> to vector<32x1xf32>
    %23 = vector.extract_strided_slice %21 {offsets = [0, 0], sizes = [1, 128], strides = [1, 1]} : vector<3x128xf32> to vector<1x128xf32>
    %24 = vector.broadcast %22 : vector<32x1xf32> to vector<32x128xf32>
    %25 = vector.broadcast %23 : vector<1x128xf32> to vector<32x128xf32>
    %26 = arith.mulf %24, %25 : vector<32x128xf32>
    %27 = vector.extract_strided_slice %0 {offsets = [0, 1], sizes = [32, 1], strides = [1, 1]} : vector<32x3xf32> to vector<32x1xf32>
    %28 = vector.extract_strided_slice %21 {offsets = [1, 0], sizes = [1, 128], strides = [1, 1]} : vector<3x128xf32> to vector<1x128xf32>
    %29 = vector.broadcast %27 : vector<32x1xf32> to vector<32x128xf32>
    %30 = vector.broadcast %28 : vector<1x128xf32> to vector<32x128xf32>
    %31 = arith.mulf %29, %30 : vector<32x128xf32>
    %32 = arith.addf %26, %31 : vector<32x128xf32>
    %33 = vector.extract_strided_slice %0 {offsets = [0, 2], sizes = [32, 1], strides = [1, 1]} : vector<32x3xf32> to vector<32x1xf32>
    %34 = vector.extract_strided_slice %21 {offsets = [2, 0], sizes = [1, 128], strides = [1, 1]} : vector<3x128xf32> to vector<1x128xf32>
    %35 = vector.broadcast %33 : vector<32x1xf32> to vector<32x128xf32>
    %36 = vector.broadcast %34 : vector<1x128xf32> to vector<32x128xf32>
    %37 = arith.mulf %35, %36 : vector<32x128xf32>
    %38 = arith.addf %32, %37 : vector<32x128xf32>
    %39 = vector.broadcast %1 : vector<32x1xf32> to vector<32x128xf32>
    %40 = arith.addf %38, %39 : vector<32x128xf32>
    %cst = arith.constant 0.000000e+00 : f32
    %41 = vector.broadcast %cst : f32 to vector<32x128xf32>
    %42 = arith.maximumf %40, %41 : vector<32x128xf32>
    %cst_38 = arith.constant dense<0.000000e+00> : vector<32x128xf32>
    %43 = tpu.matmul %2, %42, %cst_38 {dimension_numbers = #tpu.dot_dimension_numbers<[1], [0], [0], [1], [0, 0, 1, 1], [], []>} : vector<32x32xf32>, vector<32x128xf32>, vector<32x128xf32> -> vector<32x128xf32>
    %44 = vector.broadcast %3 : vector<32x1xf32> to vector<32x128xf32>
    %45 = arith.addf %43, %44 : vector<32x128xf32>
    %cst_39 = arith.constant 0.000000e+00 : f32
    %46 = vector.broadcast %cst_39 : f32 to vector<32x128xf32>
    %47 = arith.maximumf %45, %46 : vector<32x128xf32>
    %48 = tpu.transpose %47, [1, 0] : vector<32x128xf32> -> vector<128x32xf32>
    %49 = vector.extract_strided_slice %48 {offsets = [0, 0], sizes = [64, 32], strides = [1, 1]} : vector<128x32xf32> to vector<64x32xf32>
    %cst_40 = arith.constant dense<0xFF800000> : vector<32xf32>
    %50 = vector.multi_reduction <maximumf>, %49, %cst_40 [0] : vector<64x32xf32> to vector<32xf32>
    %51 = vector.shape_cast %50 : vector<32xf32> to vector<1x32xf32>
    %52 = vector.extract_strided_slice %48 {offsets = [64, 0], sizes = [64, 32], strides = [1, 1]} : vector<128x32xf32> to vector<64x32xf32>
    %cst_41 = arith.constant dense<0xFF800000> : vector<32xf32>
    %53 = vector.multi_reduction <maximumf>, %52, %cst_41 [0] : vector<64x32xf32> to vector<32xf32>
    %54 = vector.shape_cast %53 : vector<32xf32> to vector<1x32xf32>
    %55 = tpu.concatenate %51, %54 in 0 : vector<1x32xf32>, vector<1x32xf32> -> vector<2x32xf32>
    %c0_42 = arith.constant 0 : index
    %c0_43 = arith.constant 0 : index
    %c0_44 = arith.constant 0 : index
    %56 = vector.load %arg3[%c0_42, %c0_43, %c0_44] : memref<2x3x32xf32, #tpu.memory_space<vmem>>, vector<1x3x32xf32>
    %57 = vector.shape_cast %56 : vector<1x3x32xf32> to vector<3x32xf32>
    %c1_45 = arith.constant 1 : index
    %c0_46 = arith.constant 0 : index
    %c0_47 = arith.constant 0 : index
    %58 = vector.load %arg3[%c1_45, %c0_46, %c0_47] : memref<2x3x32xf32, #tpu.memory_space<vmem>>, vector<1x3x32xf32>
    %59 = vector.shape_cast %58 : vector<1x3x32xf32> to vector<3x32xf32>
    %60 = tpu.concatenate %57, %59 in 1 : vector<3x32xf32>, vector<3x32xf32> -> vector<3x64xf32>
    %c0_48 = arith.constant 0 : index
    %c0_49 = arith.constant 0 : index
    %c0_50 = arith.constant 0 : index
    %61 = vector.load %arg4[%c0_48, %c0_49, %c0_50] : memref<2x9x32xf32, #tpu.memory_space<vmem>>, vector<1x9x32xf32>
    %62 = vector.shape_cast %61 : vector<1x9x32xf32> to vector<9x32xf32>
    %c1_51 = arith.constant 1 : index
    %c0_52 = arith.constant 0 : index
    %c0_53 = arith.constant 0 : index
    %63 = vector.load %arg4[%c1_51, %c0_52, %c0_53] : memref<2x9x32xf32, #tpu.memory_space<vmem>>, vector<1x9x32xf32>
    %64 = vector.shape_cast %63 : vector<1x9x32xf32> to vector<9x32xf32>
    %65 = tpu.concatenate %62, %64 in 1 : vector<9x32xf32>, vector<9x32xf32> -> vector<9x64xf32>
    %c0_54 = arith.constant 0 : index
    %c0_55 = arith.constant 0 : index
    %c0_56 = arith.constant 0 : index
    %66 = vector.load %arg5[%c0_54, %c0_55, %c0_56] : memref<2x3x32xf32, #tpu.memory_space<vmem>>, vector<1x3x32xf32>
    %67 = vector.shape_cast %66 : vector<1x3x32xf32> to vector<3x32xf32>
    %c1_57 = arith.constant 1 : index
    %c0_58 = arith.constant 0 : index
    %c0_59 = arith.constant 0 : index
    %68 = vector.load %arg5[%c1_57, %c0_58, %c0_59] : memref<2x3x32xf32, #tpu.memory_space<vmem>>, vector<1x3x32xf32>
    %69 = vector.shape_cast %68 : vector<1x3x32xf32> to vector<3x32xf32>
    %70 = tpu.concatenate %67, %69 in 1 : vector<3x32xf32>, vector<3x32xf32> -> vector<3x64xf32>
    %71 = vector.extract_strided_slice %4 {offsets = [0, 0], sizes = [32, 1], strides = [1, 1]} : vector<32x3xf32> to vector<32x1xf32>
    %72 = vector.extract_strided_slice %60 {offsets = [0, 0], sizes = [1, 64], strides = [1, 1]} : vector<3x64xf32> to vector<1x64xf32>
    %73 = vector.broadcast %71 : vector<32x1xf32> to vector<32x64xf32>
    %74 = vector.broadcast %72 : vector<1x64xf32> to vector<32x64xf32>
    %75 = arith.mulf %73, %74 : vector<32x64xf32>
    %76 = vector.extract_strided_slice %4 {offsets = [0, 1], sizes = [32, 1], strides = [1, 1]} : vector<32x3xf32> to vector<32x1xf32>
    %77 = vector.extract_strided_slice %60 {offsets = [1, 0], sizes = [1, 64], strides = [1, 1]} : vector<3x64xf32> to vector<1x64xf32>
    %78 = vector.broadcast %76 : vector<32x1xf32> to vector<32x64xf32>
    %79 = vector.broadcast %77 : vector<1x64xf32> to vector<32x64xf32>
    %80 = arith.mulf %78, %79 : vector<32x64xf32>
    %81 = arith.addf %75, %80 : vector<32x64xf32>
    %82 = vector.extract_strided_slice %4 {offsets = [0, 2], sizes = [32, 1], strides = [1, 1]} : vector<32x3xf32> to vector<32x1xf32>
    %83 = vector.extract_strided_slice %60 {offsets = [2, 0], sizes = [1, 64], strides = [1, 1]} : vector<3x64xf32> to vector<1x64xf32>
    %84 = vector.broadcast %82 : vector<32x1xf32> to vector<32x64xf32>
    %85 = vector.broadcast %83 : vector<1x64xf32> to vector<32x64xf32>
    %86 = arith.mulf %84, %85 : vector<32x64xf32>
    %87 = arith.addf %81, %86 : vector<32x64xf32>
    %cst_60 = arith.constant 0.000000e+00 : f32
    %88 = vector.broadcast %cst_60 : f32 to vector<32x64xf32>
    %89 = arith.addf %88, %87 : vector<32x64xf32>
    %90 = vector.extract_strided_slice %5 {offsets = [0, 0], sizes = [32, 1], strides = [1, 1]} : vector<32x9xf32> to vector<32x1xf32>
    %91 = vector.extract_strided_slice %65 {offsets = [0, 0], sizes = [1, 64], strides = [1, 1]} : vector<9x64xf32> to vector<1x64xf32>
    %92 = vector.broadcast %90 : vector<32x1xf32> to vector<32x64xf32>
    %93 = vector.broadcast %91 : vector<1x64xf32> to vector<32x64xf32>
    %94 = arith.mulf %92, %93 : vector<32x64xf32>
    %95 = vector.extract_strided_slice %5 {offsets = [0, 1], sizes = [32, 1], strides = [1, 1]} : vector<32x9xf32> to vector<32x1xf32>
    %96 = vector.extract_strided_slice %65 {offsets = [1, 0], sizes = [1, 64], strides = [1, 1]} : vector<9x64xf32> to vector<1x64xf32>
    %97 = vector.broadcast %95 : vector<32x1xf32> to vector<32x64xf32>
    %98 = vector.broadcast %96 : vector<1x64xf32> to vector<32x64xf32>
    %99 = arith.mulf %97, %98 : vector<32x64xf32>
    %100 = arith.addf %94, %99 : vector<32x64xf32>
    %101 = vector.extract_strided_slice %5 {offsets = [0, 2], sizes = [32, 1], strides = [1, 1]} : vector<32x9xf32> to vector<32x1xf32>
    %102 = vector.extract_strided_slice %65 {offsets = [2, 0], sizes = [1, 64], strides = [1, 1]} : vector<9x64xf32> to vector<1x64xf32>
    %103 = vector.broadcast %101 : vector<32x1xf32> to vector<32x64xf32>
    %104 = vector.broadcast %102 : vector<1x64xf32> to vector<32x64xf32>
    %105 = arith.mulf %103, %104 : vector<32x64xf32>
    %106 = arith.addf %100, %105 : vector<32x64xf32>
    %107 = vector.extract_strided_slice %5 {offsets = [0, 3], sizes = [32, 1], strides = [1, 1]} : vector<32x9xf32> to vector<32x1xf32>
    %108 = vector.extract_strided_slice %65 {offsets = [3, 0], sizes = [1, 64], strides = [1, 1]} : vector<9x64xf32> to vector<1x64xf32>
    %109 = vector.broadcast %107 : vector<32x1xf32> to vector<32x64xf32>
    %110 = vector.broadcast %108 : vector<1x64xf32> to vector<32x64xf32>
    %111 = arith.mulf %109, %110 : vector<32x64xf32>
    %112 = arith.addf %106, %111 : vector<32x64xf32>
    %113 = vector.extract_strided_slice %5 {offsets = [0, 4], sizes = [32, 1], strides = [1, 1]} : vector<32x9xf32> to vector<32x1xf32>
    %114 = vector.extract_strided_slice %65 {offsets = [4, 0], sizes = [1, 64], strides = [1, 1]} : vector<9x64xf32> to vector<1x64xf32>
    %115 = vector.broadcast %113 : vector<32x1xf32> to vector<32x64xf32>
    %116 = vector.broadcast %114 : vector<1x64xf32> to vector<32x64xf32>
    %117 = arith.mulf %115, %116 : vector<32x64xf32>
    %118 = arith.addf %112, %117 : vector<32x64xf32>
    %119 = vector.extract_strided_slice %5 {offsets = [0, 5], sizes = [32, 1], strides = [1, 1]} : vector<32x9xf32> to vector<32x1xf32>
    %120 = vector.extract_strided_slice %65 {offsets = [5, 0], sizes = [1, 64], strides = [1, 1]} : vector<9x64xf32> to vector<1x64xf32>
    %121 = vector.broadcast %119 : vector<32x1xf32> to vector<32x64xf32>
    %122 = vector.broadcast %120 : vector<1x64xf32> to vector<32x64xf32>
    %123 = arith.mulf %121, %122 : vector<32x64xf32>
    %124 = arith.addf %118, %123 : vector<32x64xf32>
    %125 = vector.extract_strided_slice %5 {offsets = [0, 6], sizes = [32, 1], strides = [1, 1]} : vector<32x9xf32> to vector<32x1xf32>
    %126 = vector.extract_strided_slice %65 {offsets = [6, 0], sizes = [1, 64], strides = [1, 1]} : vector<9x64xf32> to vector<1x64xf32>
    %127 = vector.broadcast %125 : vector<32x1xf32> to vector<32x64xf32>
    %128 = vector.broadcast %126 : vector<1x64xf32> to vector<32x64xf32>
    %129 = arith.mulf %127, %128 : vector<32x64xf32>
    %130 = arith.addf %124, %129 : vector<32x64xf32>
    %131 = vector.extract_strided_slice %5 {offsets = [0, 7], sizes = [32, 1], strides = [1, 1]} : vector<32x9xf32> to vector<32x1xf32>
    %132 = vector.extract_strided_slice %65 {offsets = [7, 0], sizes = [1, 64], strides = [1, 1]} : vector<9x64xf32> to vector<1x64xf32>
    %133 = vector.broadcast %131 : vector<32x1xf32> to vector<32x64xf32>
    %134 = vector.broadcast %132 : vector<1x64xf32> to vector<32x64xf32>
    %135 = arith.mulf %133, %134 : vector<32x64xf32>
    %136 = arith.addf %130, %135 : vector<32x64xf32>
    %137 = vector.extract_strided_slice %5 {offsets = [0, 8], sizes = [32, 1], strides = [1, 1]} : vector<32x9xf32> to vector<32x1xf32>
    %138 = vector.extract_strided_slice %65 {offsets = [8, 0], sizes = [1, 64], strides = [1, 1]} : vector<9x64xf32> to vector<1x64xf32>
    %139 = vector.broadcast %137 : vector<32x1xf32> to vector<32x64xf32>
    %140 = vector.broadcast %138 : vector<1x64xf32> to vector<32x64xf32>
    %141 = arith.mulf %139, %140 : vector<32x64xf32>
    %142 = arith.addf %136, %141 : vector<32x64xf32>
    %143 = arith.addf %89, %142 : vector<32x64xf32>
    %144 = vector.extract_strided_slice %6 {offsets = [0, 0], sizes = [32, 1], strides = [1, 1]} : vector<32x3xf32> to vector<32x1xf32>
    %145 = vector.extract_strided_slice %70 {offsets = [0, 0], sizes = [1, 64], strides = [1, 1]} : vector<3x64xf32> to vector<1x64xf32>
    %146 = vector.broadcast %144 : vector<32x1xf32> to vector<32x64xf32>
    %147 = vector.broadcast %145 : vector<1x64xf32> to vector<32x64xf32>
    %148 = arith.mulf %146, %147 : vector<32x64xf32>
    %149 = vector.extract_strided_slice %6 {offsets = [0, 1], sizes = [32, 1], strides = [1, 1]} : vector<32x3xf32> to vector<32x1xf32>
    %150 = vector.extract_strided_slice %70 {offsets = [1, 0], sizes = [1, 64], strides = [1, 1]} : vector<3x64xf32> to vector<1x64xf32>
    %151 = vector.broadcast %149 : vector<32x1xf32> to vector<32x64xf32>
    %152 = vector.broadcast %150 : vector<1x64xf32> to vector<32x64xf32>
    %153 = arith.mulf %151, %152 : vector<32x64xf32>
    %154 = arith.addf %148, %153 : vector<32x64xf32>
    %155 = vector.extract_strided_slice %6 {offsets = [0, 2], sizes = [32, 1], strides = [1, 1]} : vector<32x3xf32> to vector<32x1xf32>
    %156 = vector.extract_strided_slice %70 {offsets = [2, 0], sizes = [1, 64], strides = [1, 1]} : vector<3x64xf32> to vector<1x64xf32>
    %157 = vector.broadcast %155 : vector<32x1xf32> to vector<32x64xf32>
    %158 = vector.broadcast %156 : vector<1x64xf32> to vector<32x64xf32>
    %159 = arith.mulf %157, %158 : vector<32x64xf32>
    %160 = arith.addf %154, %159 : vector<32x64xf32>
    %161 = arith.addf %143, %160 : vector<32x64xf32>
    %162 = vector.extract_strided_slice %7 {offsets = [0, 0], sizes = [32, 1], strides = [1, 1]} : vector<32x3xf32> to vector<32x1xf32>
    %163 = vector.extract_strided_slice %60 {offsets = [0, 0], sizes = [1, 64], strides = [1, 1]} : vector<3x64xf32> to vector<1x64xf32>
    %164 = vector.broadcast %162 : vector<32x1xf32> to vector<32x64xf32>
    %165 = vector.broadcast %163 : vector<1x64xf32> to vector<32x64xf32>
    %166 = arith.mulf %164, %165 : vector<32x64xf32>
    %167 = vector.extract_strided_slice %7 {offsets = [0, 1], sizes = [32, 1], strides = [1, 1]} : vector<32x3xf32> to vector<32x1xf32>
    %168 = vector.extract_strided_slice %60 {offsets = [1, 0], sizes = [1, 64], strides = [1, 1]} : vector<3x64xf32> to vector<1x64xf32>
    %169 = vector.broadcast %167 : vector<32x1xf32> to vector<32x64xf32>
    %170 = vector.broadcast %168 : vector<1x64xf32> to vector<32x64xf32>
    %171 = arith.mulf %169, %170 : vector<32x64xf32>
    %172 = arith.addf %166, %171 : vector<32x64xf32>
    %173 = vector.extract_strided_slice %7 {offsets = [0, 2], sizes = [32, 1], strides = [1, 1]} : vector<32x3xf32> to vector<32x1xf32>
    %174 = vector.extract_strided_slice %60 {offsets = [2, 0], sizes = [1, 64], strides = [1, 1]} : vector<3x64xf32> to vector<1x64xf32>
    %175 = vector.broadcast %173 : vector<32x1xf32> to vector<32x64xf32>
    %176 = vector.broadcast %174 : vector<1x64xf32> to vector<32x64xf32>
    %177 = arith.mulf %175, %176 : vector<32x64xf32>
    %178 = arith.addf %172, %177 : vector<32x64xf32>
    %cst_61 = arith.constant 0.000000e+00 : f32
    %179 = vector.broadcast %cst_61 : f32 to vector<32x64xf32>
    %180 = arith.addf %179, %178 : vector<32x64xf32>
    %181 = vector.extract_strided_slice %8 {offsets = [0, 0], sizes = [32, 1], strides = [1, 1]} : vector<32x9xf32> to vector<32x1xf32>
    %182 = vector.extract_strided_slice %65 {offsets = [0, 0], sizes = [1, 64], strides = [1, 1]} : vector<9x64xf32> to vector<1x64xf32>
    %183 = vector.broadcast %181 : vector<32x1xf32> to vector<32x64xf32>
    %184 = vector.broadcast %182 : vector<1x64xf32> to vector<32x64xf32>
    %185 = arith.mulf %183, %184 : vector<32x64xf32>
    %186 = vector.extract_strided_slice %8 {offsets = [0, 1], sizes = [32, 1], strides = [1, 1]} : vector<32x9xf32> to vector<32x1xf32>
    %187 = vector.extract_strided_slice %65 {offsets = [1, 0], sizes = [1, 64], strides = [1, 1]} : vector<9x64xf32> to vector<1x64xf32>
    %188 = vector.broadcast %186 : vector<32x1xf32> to vector<32x64xf32>
    %189 = vector.broadcast %187 : vector<1x64xf32> to vector<32x64xf32>
    %190 = arith.mulf %188, %189 : vector<32x64xf32>
    %191 = arith.addf %185, %190 : vector<32x64xf32>
    %192 = vector.extract_strided_slice %8 {offsets = [0, 2], sizes = [32, 1], strides = [1, 1]} : vector<32x9xf32> to vector<32x1xf32>
    %193 = vector.extract_strided_slice %65 {offsets = [2, 0], sizes = [1, 64], strides = [1, 1]} : vector<9x64xf32> to vector<1x64xf32>
    %194 = vector.broadcast %192 : vector<32x1xf32> to vector<32x64xf32>
    %195 = vector.broadcast %193 : vector<1x64xf32> to vector<32x64xf32>
    %196 = arith.mulf %194, %195 : vector<32x64xf32>
    %197 = arith.addf %191, %196 : vector<32x64xf32>
    %198 = vector.extract_strided_slice %8 {offsets = [0, 3], sizes = [32, 1], strides = [1, 1]} : vector<32x9xf32> to vector<32x1xf32>
    %199 = vector.extract_strided_slice %65 {offsets = [3, 0], sizes = [1, 64], strides = [1, 1]} : vector<9x64xf32> to vector<1x64xf32>
    %200 = vector.broadcast %198 : vector<32x1xf32> to vector<32x64xf32>
    %201 = vector.broadcast %199 : vector<1x64xf32> to vector<32x64xf32>
    %202 = arith.mulf %200, %201 : vector<32x64xf32>
    %203 = arith.addf %197, %202 : vector<32x64xf32>
    %204 = vector.extract_strided_slice %8 {offsets = [0, 4], sizes = [32, 1], strides = [1, 1]} : vector<32x9xf32> to vector<32x1xf32>
    %205 = vector.extract_strided_slice %65 {offsets = [4, 0], sizes = [1, 64], strides = [1, 1]} : vector<9x64xf32> to vector<1x64xf32>
    %206 = vector.broadcast %204 : vector<32x1xf32> to vector<32x64xf32>
    %207 = vector.broadcast %205 : vector<1x64xf32> to vector<32x64xf32>
    %208 = arith.mulf %206, %207 : vector<32x64xf32>
    %209 = arith.addf %203, %208 : vector<32x64xf32>
    %210 = vector.extract_strided_slice %8 {offsets = [0, 5], sizes = [32, 1], strides = [1, 1]} : vector<32x9xf32> to vector<32x1xf32>
    %211 = vector.extract_strided_slice %65 {offsets = [5, 0], sizes = [1, 64], strides = [1, 1]} : vector<9x64xf32> to vector<1x64xf32>
    %212 = vector.broadcast %210 : vector<32x1xf32> to vector<32x64xf32>
    %213 = vector.broadcast %211 : vector<1x64xf32> to vector<32x64xf32>
    %214 = arith.mulf %212, %213 : vector<32x64xf32>
    %215 = arith.addf %209, %214 : vector<32x64xf32>
    %216 = vector.extract_strided_slice %8 {offsets = [0, 6], sizes = [32, 1], strides = [1, 1]} : vector<32x9xf32> to vector<32x1xf32>
    %217 = vector.extract_strided_slice %65 {offsets = [6, 0], sizes = [1, 64], strides = [1, 1]} : vector<9x64xf32> to vector<1x64xf32>
    %218 = vector.broadcast %216 : vector<32x1xf32> to vector<32x64xf32>
    %219 = vector.broadcast %217 : vector<1x64xf32> to vector<32x64xf32>
    %220 = arith.mulf %218, %219 : vector<32x64xf32>
    %221 = arith.addf %215, %220 : vector<32x64xf32>
    %222 = vector.extract_strided_slice %8 {offsets = [0, 7], sizes = [32, 1], strides = [1, 1]} : vector<32x9xf32> to vector<32x1xf32>
    %223 = vector.extract_strided_slice %65 {offsets = [7, 0], sizes = [1, 64], strides = [1, 1]} : vector<9x64xf32> to vector<1x64xf32>
    %224 = vector.broadcast %222 : vector<32x1xf32> to vector<32x64xf32>
    %225 = vector.broadcast %223 : vector<1x64xf32> to vector<32x64xf32>
    %226 = arith.mulf %224, %225 : vector<32x64xf32>
    %227 = arith.addf %221, %226 : vector<32x64xf32>
    %228 = vector.extract_strided_slice %8 {offsets = [0, 8], sizes = [32, 1], strides = [1, 1]} : vector<32x9xf32> to vector<32x1xf32>
    %229 = vector.extract_strided_slice %65 {offsets = [8, 0], sizes = [1, 64], strides = [1, 1]} : vector<9x64xf32> to vector<1x64xf32>
    %230 = vector.broadcast %228 : vector<32x1xf32> to vector<32x64xf32>
    %231 = vector.broadcast %229 : vector<1x64xf32> to vector<32x64xf32>
    %232 = arith.mulf %230, %231 : vector<32x64xf32>
    %233 = arith.addf %227, %232 : vector<32x64xf32>
    %234 = arith.addf %180, %233 : vector<32x64xf32>
    %235 = vector.extract_strided_slice %9 {offsets = [0, 0], sizes = [32, 1], strides = [1, 1]} : vector<32x3xf32> to vector<32x1xf32>
    %236 = vector.extract_strided_slice %70 {offsets = [0, 0], sizes = [1, 64], strides = [1, 1]} : vector<3x64xf32> to vector<1x64xf32>
    %237 = vector.broadcast %235 : vector<32x1xf32> to vector<32x64xf32>
    %238 = vector.broadcast %236 : vector<1x64xf32> to vector<32x64xf32>
    %239 = arith.mulf %237, %238 : vector<32x64xf32>
    %240 = vector.extract_strided_slice %9 {offsets = [0, 1], sizes = [32, 1], strides = [1, 1]} : vector<32x3xf32> to vector<32x1xf32>
    %241 = vector.extract_strided_slice %70 {offsets = [1, 0], sizes = [1, 64], strides = [1, 1]} : vector<3x64xf32> to vector<1x64xf32>
    %242 = vector.broadcast %240 : vector<32x1xf32> to vector<32x64xf32>
    %243 = vector.broadcast %241 : vector<1x64xf32> to vector<32x64xf32>
    %244 = arith.mulf %242, %243 : vector<32x64xf32>
    %245 = arith.addf %239, %244 : vector<32x64xf32>
    %246 = vector.extract_strided_slice %9 {offsets = [0, 2], sizes = [32, 1], strides = [1, 1]} : vector<32x3xf32> to vector<32x1xf32>
    %247 = vector.extract_strided_slice %70 {offsets = [2, 0], sizes = [1, 64], strides = [1, 1]} : vector<3x64xf32> to vector<1x64xf32>
    %248 = vector.broadcast %246 : vector<32x1xf32> to vector<32x64xf32>
    %249 = vector.broadcast %247 : vector<1x64xf32> to vector<32x64xf32>
    %250 = arith.mulf %248, %249 : vector<32x64xf32>
    %251 = arith.addf %245, %250 : vector<32x64xf32>
    %252 = arith.addf %234, %251 : vector<32x64xf32>
    %c0_62 = arith.constant 0 : index
    %c0_63 = arith.constant 0 : index
    %c0_64 = arith.constant 0 : index
    %253 = vector.load %arg6[%c0_62, %c0_63, %c0_64] : memref<2x32x3xi32, #tpu.memory_space<vmem>>, vector<1x32x3xi32>
    %254 = vector.shape_cast %253 : vector<1x32x3xi32> to vector<32x3xi32>
    %c0_i32 = arith.constant 0 : i32
    %255 = vector.broadcast %c0_i32 : i32 to vector<32x3xi32>
    %256 = arith.addi %254, %255 : vector<32x3xi32>
    %c1_65 = arith.constant 1 : index
    %c0_66 = arith.constant 0 : index
    %c0_67 = arith.constant 0 : index
    %257 = vector.load %arg6[%c1_65, %c0_66, %c0_67] : memref<2x32x3xi32, #tpu.memory_space<vmem>>, vector<1x32x3xi32>
    %258 = vector.shape_cast %257 : vector<1x32x3xi32> to vector<32x3xi32>
    %c32_i32 = arith.constant 32 : i32
    %259 = vector.broadcast %c32_i32 : i32 to vector<32x3xi32>
    %260 = arith.addi %258, %259 : vector<32x3xi32>
    %261 = tpu.concatenate %256, %260 in 0 : vector<32x3xi32>, vector<32x3xi32> -> vector<64x3xi32>
    %262 = tpu.iota {dimensions = array<i32: 1>} : vector<64x64xi32>
    %263 = vector.extract_strided_slice %261 {offsets = [0, 0], sizes = [64, 1], strides = [1, 1]} : vector<64x3xi32> to vector<64x1xi32>
    %264 = vector.broadcast %263 : vector<64x1xi32> to vector<64x64xi32>
    %265 = arith.cmpi eq, %264, %262 : vector<64x64xi32>
    %266 = arith.extui %265 : vector<64x64xi1> to vector<64x64xi32>
    %267 = arith.sitofp %266 : vector<64x64xi32> to vector<64x64xf32>
    %268 = vector.extract_strided_slice %261 {offsets = [0, 1], sizes = [64, 1], strides = [1, 1]} : vector<64x3xi32> to vector<64x1xi32>
    %269 = vector.broadcast %268 : vector<64x1xi32> to vector<64x64xi32>
    %270 = arith.cmpi eq, %269, %262 : vector<64x64xi32>
    %271 = arith.extui %270 : vector<64x64xi1> to vector<64x64xi32>
    %272 = arith.sitofp %271 : vector<64x64xi32> to vector<64x64xf32>
    %273 = arith.addf %267, %272 : vector<64x64xf32>
    %274 = vector.extract_strided_slice %261 {offsets = [0, 2], sizes = [64, 1], strides = [1, 1]} : vector<64x3xi32> to vector<64x1xi32>
    %275 = vector.broadcast %274 : vector<64x1xi32> to vector<64x64xi32>
    %276 = arith.cmpi eq, %275, %262 : vector<64x64xi32>
    %277 = arith.extui %276 : vector<64x64xi1> to vector<64x64xi32>
    %278 = arith.sitofp %277 : vector<64x64xi32> to vector<64x64xf32>
    %279 = arith.addf %273, %278 : vector<64x64xf32>
    %cst_68 = arith.constant 0.333333343 : f32
    %280 = vector.broadcast %cst_68 : f32 to vector<64x64xf32>
    %281 = arith.mulf %279, %280 : vector<64x64xf32>
    %cst_69 = arith.constant dense<0.000000e+00> : vector<32x64xf32>
    %282 = tpu.matmul %252, %281, %cst_69 {dimension_numbers = #tpu.dot_dimension_numbers<[1], [1], [0], [0], [0, 0, 1, 0], [], []>} : vector<32x64xf32>, vector<64x64xf32>, vector<32x64xf32> -> vector<32x64xf32>
    %283 = arith.addf %161, %282 : vector<32x64xf32>
    %284 = vector.broadcast %10 : vector<32x1xf32> to vector<32x64xf32>
    %285 = arith.addf %283, %284 : vector<32x64xf32>
    %cst_70 = arith.constant 0.000000e+00 : f32
    %286 = vector.broadcast %cst_70 : f32 to vector<32x64xf32>
    %287 = arith.maximumf %285, %286 : vector<32x64xf32>
    %cst_71 = arith.constant dense<0.000000e+00> : vector<32x64xf32>
    %288 = tpu.matmul %11, %287, %cst_71 {dimension_numbers = #tpu.dot_dimension_numbers<[1], [0], [0], [1], [0, 0, 1, 1], [], []>} : vector<32x32xf32>, vector<32x64xf32>, vector<32x64xf32> -> vector<32x64xf32>
    %289 = vector.broadcast %12 : vector<32x1xf32> to vector<32x64xf32>
    %290 = arith.addf %288, %289 : vector<32x64xf32>
    %cst_72 = arith.constant 0.000000e+00 : f32
    %291 = vector.broadcast %cst_72 : f32 to vector<32x64xf32>
    %292 = arith.maximumf %290, %291 : vector<32x64xf32>
    %293 = tpu.transpose %292, [1, 0] : vector<32x64xf32> -> vector<64x32xf32>
    %294 = vector.extract_strided_slice %293 {offsets = [0, 0], sizes = [32, 32], strides = [1, 1]} : vector<64x32xf32> to vector<32x32xf32>
    %cst_73 = arith.constant dense<0xFF800000> : vector<32xf32>
    %295 = vector.multi_reduction <maximumf>, %294, %cst_73 [0] : vector<32x32xf32> to vector<32xf32>
    %296 = vector.shape_cast %295 : vector<32xf32> to vector<1x32xf32>
    %297 = vector.extract_strided_slice %293 {offsets = [32, 0], sizes = [32, 32], strides = [1, 1]} : vector<64x32xf32> to vector<32x32xf32>
    %cst_74 = arith.constant dense<0xFF800000> : vector<32xf32>
    %298 = vector.multi_reduction <maximumf>, %297, %cst_74 [0] : vector<32x32xf32> to vector<32xf32>
    %299 = vector.shape_cast %298 : vector<32xf32> to vector<1x32xf32>
    %300 = tpu.concatenate %296, %299 in 0 : vector<1x32xf32>, vector<1x32xf32> -> vector<2x32xf32>
    %c0_75 = arith.constant 0 : index
    %c0_76 = arith.constant 0 : index
    %c0_77 = arith.constant 0 : index
    %301 = vector.load %arg1[%c0_75, %c0_76, %c0_77] : memref<2x3x256xf32, #tpu.memory_space<vmem>>, vector<1x3x256xf32>
    %302 = vector.shape_cast %301 : vector<1x3x256xf32> to vector<3x256xf32>
    %c0_78 = arith.constant 0 : index
    %c0_79 = arith.constant 0 : index
    %c0_80 = arith.constant 0 : index
    %303 = vector.load %arg2[%c0_78, %c0_79, %c0_80] : memref<2x3x256xf32, #tpu.memory_space<vmem>>, vector<1x3x256xf32>
    %304 = vector.shape_cast %303 : vector<1x3x256xf32> to vector<3x256xf32>
    %305 = tpu.concatenate %302, %304 in 1 : vector<3x256xf32>, vector<3x256xf32> -> vector<3x512xf32>
    %c1_81 = arith.constant 1 : index
    %c0_82 = arith.constant 0 : index
    %c0_83 = arith.constant 0 : index
    %306 = vector.load %arg1[%c1_81, %c0_82, %c0_83] : memref<2x3x256xf32, #tpu.memory_space<vmem>>, vector<1x3x256xf32>
    %307 = vector.shape_cast %306 : vector<1x3x256xf32> to vector<3x256xf32>
    %c1_84 = arith.constant 1 : index
    %c0_85 = arith.constant 0 : index
    %c0_86 = arith.constant 0 : index
    %308 = vector.load %arg2[%c1_84, %c0_85, %c0_86] : memref<2x3x256xf32, #tpu.memory_space<vmem>>, vector<1x3x256xf32>
    %309 = vector.shape_cast %308 : vector<1x3x256xf32> to vector<3x256xf32>
    %310 = tpu.concatenate %307, %309 in 1 : vector<3x256xf32>, vector<3x256xf32> -> vector<3x512xf32>
    %311 = tpu.concatenate %305, %310 in 1 : vector<3x512xf32>, vector<3x512xf32> -> vector<3x1024xf32>
    %312 = vector.extract_strided_slice %13 {offsets = [0, 0], sizes = [32, 1], strides = [1, 1]} : vector<32x3xf32> to vector<32x1xf32>
    %313 = vector.extract_strided_slice %311 {offsets = [0, 0], sizes = [1, 1024], strides = [1, 1]} : vector<3x1024xf32> to vector<1x1024xf32>
    %314 = vector.broadcast %312 : vector<32x1xf32> to vector<32x1024xf32>
    %315 = vector.broadcast %313 : vector<1x1024xf32> to vector<32x1024xf32>
    %316 = arith.mulf %314, %315 : vector<32x1024xf32>
    %317 = vector.extract_strided_slice %13 {offsets = [0, 1], sizes = [32, 1], strides = [1, 1]} : vector<32x3xf32> to vector<32x1xf32>
    %318 = vector.extract_strided_slice %311 {offsets = [1, 0], sizes = [1, 1024], strides = [1, 1]} : vector<3x1024xf32> to vector<1x1024xf32>
    %319 = vector.broadcast %317 : vector<32x1xf32> to vector<32x1024xf32>
    %320 = vector.broadcast %318 : vector<1x1024xf32> to vector<32x1024xf32>
    %321 = arith.mulf %319, %320 : vector<32x1024xf32>
    %322 = arith.addf %316, %321 : vector<32x1024xf32>
    %323 = vector.extract_strided_slice %13 {offsets = [0, 2], sizes = [32, 1], strides = [1, 1]} : vector<32x3xf32> to vector<32x1xf32>
    %324 = vector.extract_strided_slice %311 {offsets = [2, 0], sizes = [1, 1024], strides = [1, 1]} : vector<3x1024xf32> to vector<1x1024xf32>
    %325 = vector.broadcast %323 : vector<32x1xf32> to vector<32x1024xf32>
    %326 = vector.broadcast %324 : vector<1x1024xf32> to vector<32x1024xf32>
    %327 = arith.mulf %325, %326 : vector<32x1024xf32>
    %328 = arith.addf %322, %327 : vector<32x1024xf32>
    %329 = vector.broadcast %14 : vector<32x1xf32> to vector<32x1024xf32>
    %330 = arith.addf %328, %329 : vector<32x1024xf32>
    %cst_87 = arith.constant 0.000000e+00 : f32
    %331 = vector.broadcast %cst_87 : f32 to vector<32x1024xf32>
    %332 = arith.maximumf %330, %331 : vector<32x1024xf32>
    %cst_88 = arith.constant dense<0.000000e+00> : vector<32x1024xf32>
    %333 = tpu.matmul %15, %332, %cst_88 {dimension_numbers = #tpu.dot_dimension_numbers<[1], [0], [0], [1], [0, 0, 1, 1], [], []>} : vector<32x32xf32>, vector<32x1024xf32>, vector<32x1024xf32> -> vector<32x1024xf32>
    %334 = vector.broadcast %16 : vector<32x1xf32> to vector<32x1024xf32>
    %335 = arith.addf %333, %334 : vector<32x1024xf32>
    %cst_89 = arith.constant 0.000000e+00 : f32
    %336 = vector.broadcast %cst_89 : f32 to vector<32x1024xf32>
    %337 = arith.maximumf %335, %336 : vector<32x1024xf32>
    %338 = tpu.transpose %337, [1, 0] : vector<32x1024xf32> -> vector<1024x32xf32>
    %339 = vector.extract_strided_slice %338 {offsets = [0, 0], sizes = [512, 32], strides = [1, 1]} : vector<1024x32xf32> to vector<512x32xf32>
    %cst_90 = arith.constant dense<0.000000e+00> : vector<32xf32>
    %340 = vector.multi_reduction <add>, %339, %cst_90 [0] : vector<512x32xf32> to vector<32xf32>
    %341 = vector.shape_cast %340 : vector<32xf32> to vector<1x32xf32>
    %cst_91 = arith.constant 5.120000e+02 : f32
    %342 = vector.broadcast %cst_91 : f32 to vector<1x32xf32>
    %343 = arith.divf %341, %342 : vector<1x32xf32>
    %344 = vector.extract_strided_slice %338 {offsets = [512, 0], sizes = [512, 32], strides = [1, 1]} : vector<1024x32xf32> to vector<512x32xf32>
    %cst_92 = arith.constant dense<0.000000e+00> : vector<32xf32>
    %345 = vector.multi_reduction <add>, %344, %cst_92 [0] : vector<512x32xf32> to vector<32xf32>
    %346 = vector.shape_cast %345 : vector<32xf32> to vector<1x32xf32>
    %cst_93 = arith.constant 5.120000e+02 : f32
    %347 = vector.broadcast %cst_93 : f32 to vector<1x32xf32>
    %348 = arith.divf %346, %347 : vector<1x32xf32>
    %349 = tpu.concatenate %343, %348 in 0 : vector<1x32xf32>, vector<1x32xf32> -> vector<2x32xf32>
    %350 = tpu.concatenate %55, %300, %349 in 1 : vector<2x32xf32>, vector<2x32xf32>, vector<2x32xf32> -> vector<2x96xf32>
    %c0_94 = arith.constant 0 : index
    %c0_95 = arith.constant 0 : index
    %351 = vector.load %arg24[%c0_94, %c0_95] : memref<96x152xf32, #tpu.memory_space<vmem>>, vector<96x152xf32>
    %cst_96 = arith.constant dense<0.000000e+00> : vector<2x152xf32>
    %352 = tpu.matmul %350, %351, %cst_96 {dimension_numbers = #tpu.dot_dimension_numbers<[1], [0], [0], [1], [0, 0, 1, 1], [], []>} : vector<2x96xf32>, vector<96x152xf32>, vector<2x152xf32> -> vector<2x152xf32>
    %c0_97 = arith.constant 0 : index
    %c0_98 = arith.constant 0 : index
    %353 = vector.load %arg25[%c0_97, %c0_98] : memref<1x152xf32, #tpu.memory_space<vmem>>, vector<1x152xf32>
    %354 = vector.broadcast %353 : vector<1x152xf32> to vector<2x152xf32>
    %355 = arith.addf %352, %354 : vector<2x152xf32>
    %356 = vector.extract_strided_slice %355 {offsets = [0, 0], sizes = [2, 128], strides = [1, 1]} : vector<2x152xf32> to vector<2x128xf32>
    %cst_99 = arith.constant 0.000000e+00 : f32
    %357 = vector.broadcast %cst_99 : f32 to vector<2x128xf32>
    %358 = arith.maximumf %356, %357 : vector<2x128xf32>
    %359 = vector.extract_strided_slice %355 {offsets = [0, 128], sizes = [2, 24], strides = [1, 1]} : vector<2x152xf32> to vector<2x24xf32>
    %c0_100 = arith.constant 0 : index
    %c0_101 = arith.constant 0 : index
    %360 = vector.load %arg26[%c0_100, %c0_101] : memref<128x56xf32, #tpu.memory_space<vmem>>, vector<128x56xf32>
    %cst_102 = arith.constant dense<0.000000e+00> : vector<2x56xf32>
    %361 = tpu.matmul %358, %360, %cst_102 {dimension_numbers = #tpu.dot_dimension_numbers<[1], [0], [0], [1], [0, 0, 1, 1], [], []>} : vector<2x128xf32>, vector<128x56xf32>, vector<2x56xf32> -> vector<2x56xf32>
    %c0_103 = arith.constant 0 : index
    %c0_104 = arith.constant 0 : index
    %362 = vector.load %arg27[%c0_103, %c0_104] : memref<1x56xf32, #tpu.memory_space<vmem>>, vector<1x56xf32>
    %363 = vector.broadcast %362 : vector<1x56xf32> to vector<2x56xf32>
    %364 = arith.addf %361, %363 : vector<2x56xf32>
    %cst_105 = arith.constant 0.000000e+00 : f32
    %365 = vector.broadcast %cst_105 : f32 to vector<2x112xf32>
    %366 = vector.extract_strided_slice %358 {offsets = [0, 0], sizes = [2, 96], strides = [1, 1]} : vector<2x128xf32> to vector<2x96xf32>
    %367 = tpu.concatenate %350, %366, %359, %364, %365 in 1 : vector<2x96xf32>, vector<2x96xf32>, vector<2x24xf32>, vector<2x56xf32>, vector<2x112xf32> -> vector<2x384xf32>
    %c0_106 = arith.constant 0 : index
    %c0_107 = arith.constant 0 : index
    %368 = vector.load %arg28[%c0_106, %c0_107] : memref<2x384xf32, #tpu.memory_space<vmem>>, vector<2x384xf32>
    tpu.vector_store %arg28[%c0_106, %c0_107], %367 {strides = array<i32>} : memref<2x384xf32, #tpu.memory_space<vmem>>, vector<2x384xf32>,
    return
  }
}

</mosaic_0001>

<llo_original>
// kernel: semi3d_forward.1
$region0: #{semi3d_forward.1}
  #allocation0 [shape = 'u32[]', space=smem, size = 0x4, offset = 0x4, fixed_abs, tag = 'smem constant byte address 0x4 - core index']
  #allocation1 [shape = 'u32[144,128]{1,0:T(1,128)}', space=vmem, size = 0x12000, scoped, tag = 'internal scratch']
  %s0 = inlined_call_operand.vmem [shape: f32[2,3,64], index: 0, kind: input, shape index: {}]
  %s1 = inlined_call_operand.vmem [shape: f32[2,3,256], index: 1, kind: input, shape index: {}]
  %s2 = inlined_call_operand.vmem [shape: f32[2,3,256], index: 2, kind: input, shape index: {}]
  %s3 = inlined_call_operand.vmem [shape: f32[2,3,32], index: 3, kind: input, shape index: {}]
  %s4 = inlined_call_operand.vmem [shape: f32[2,9,32], index: 4, kind: input, shape index: {}]
  %s5 = inlined_call_operand.vmem [shape: f32[2,3,32], index: 5, kind: input, shape index: {}]
  %s6 = inlined_call_operand.vmem [shape: s32[2,32,3], index: 6, kind: input, shape index: {}]
  %s7 = inlined_call_operand.vmem [shape: f32[32,3], index: 7, kind: input, shape index: {}]
  %s8 = inlined_call_operand.vmem [shape: f32[32,1], index: 8, kind: input, shape index: {}]
  %s9 = inlined_call_operand.vmem [shape: f32[32,32], index: 9, kind: input, shape index: {}]
  %s10 = inlined_call_operand.vmem [shape: f32[32,1], index: 10, kind: input, shape index: {}]
  %s11 = inlined_call_operand.vmem [shape: f32[32,3], index: 11, kind: input, shape index: {}]
  %s12 = inlined_call_operand.vmem [shape: f32[32,9], index: 12, kind: input, shape index: {}]
  %s13 = inlined_call_operand.vmem [shape: f32[32,3], index: 13, kind: input, shape index: {}]
  %s14 = inlined_call_operand.vmem [shape: f32[32,3], index: 14, kind: input, shape index: {}]
  %s15 = inlined_call_operand.vmem [shape: f32[32,9], index: 15, kind: input, shape index: {}]
  %s16 = inlined_call_operand.vmem [shape: f32[32,3], index: 16, kind: input, shape index: {}]
  %s17 = inlined_call_operand.vmem [shape: f32[32,1], index: 17, kind: input, shape index: {}]
  %s18 = inlined_call_operand.vmem [shape: f32[32,32], index: 18, kind: input, shape index: {}]
  %s19 = inlined_call_operand.vmem [shape: f32[32,1], index: 19, kind: input, shape index: {}]
  %s20 = inlined_call_operand.vmem [shape: f32[32,3], index: 20, kind: input, shape index: {}]
  %s21 = inlined_call_operand.vmem [shape: f32[32,1], index: 21, kind: input, shape index: {}]
  %s22 = inlined_call_operand.vmem [shape: f32[32,32], index: 22, kind: input, shape index: {}]
  %s23 = inlined_call_operand.vmem [shape: f32[32,1], index: 23, kind: input, shape index: {}]
  %s24 = inlined_call_operand.vmem [shape: f32[96,152], index: 24, kind: input, shape index: {}]
  %s25 = inlined_call_operand.vmem [shape: f32[1,152], index: 25, kind: input, shape index: {}]
  %s26 = inlined_call_operand.vmem [shape: f32[128,56], index: 26, kind: input, shape index: {}]
  %s27 = inlined_call_operand.vmem [shape: f32[1,56], index: 27, kind: input, shape index: {}]
  %s28 = inlined_call_operand.vmem [shape: f32[2,384], index: 28, kind: output, shape index: {}]
  %s29 = sld [smem:[#allocation0]]
  $region122: #{semi3d_forward.1} parent=0
    _
  %s31 = ssub.s32 1, %s29
  %s32 = scalar_select 0, %s31, %s29
  // Predicated region
  $region2: #{semi3d_forward.1} parent=0 // pred_check
    _
  $region3: #{semi3d_forward.1} parent=0 // pred_check_branch
    %34 = sbr.rel (0) target = $region5
  $region4: #{semi3d_forward.1} parent=0 // pred_region
    _
  $region5: #{semi3d_forward.1} parent=0 // pred_fallthru
    _
  // Predicated region
  $region6: #{semi3d_forward.1} parent=0 // pred_check
    _
  $region7: #{semi3d_forward.1} parent=0 // pred_check_branch
    %36 = sbr.rel (0) target = $region9
  $region8: #{semi3d_forward.1} parent=0 // pred_region
    _
  $region9: #{semi3d_forward.1} parent=0 // pred_fallthru
    _
  // Predicated region
  $region10: #{semi3d_forward.1} parent=0 // pred_check
    _
  $region11: #{semi3d_forward.1} parent=0 // pred_check_branch
    %38 = sbr.rel (0) target = $region13
  $region12: #{semi3d_forward.1} parent=0 // pred_region
    _
  $region13: #{semi3d_forward.1} parent=0 // pred_fallthru
    _
  // Predicated region
  $region14: #{semi3d_forward.1} parent=0 // pred_check
    _
  $region15: #{semi3d_forward.1} parent=0 // pred_check_branch
    %40 = sbr.rel (0) target = $region17
  $region16: #{semi3d_forward.1} parent=0 // pred_region
    _
  $region17: #{semi3d_forward.1} parent=0 // pred_fallthru
    _
  // Predicated region
  $region18: #{semi3d_forward.1} parent=0 // pred_check
    _
  $region19: #{semi3d_forward.1} parent=0 // pred_check_branch
    %42 = sbr.rel (0) target = $region21
  $region20: #{semi3d_forward.1} parent=0 // pred_region
    _
  $region21: #{semi3d_forward.1} parent=0 // pred_fallthru
    _
  // Predicated region
  $region22: #{semi3d_forward.1} parent=0 // pred_check
    _
  $region23: #{semi3d_forward.1} parent=0 // pred_check_branch
    %44 = sbr.rel (0) target = $region25
  $region24: #{semi3d_forward.1} parent=0 // pred_region
    _
  $region25: #{semi3d_forward.1} parent=0 // pred_fallthru
    _
  // Predicated region
  $region26: #{semi3d_forward.1} parent=0 // pred_check
    _
  $region27: #{semi3d_forward.1} parent=0 // pred_check_branch
    %46 = sbr.rel (0) target = $region29
  $region28: #{semi3d_forward.1} parent=0 // pred_region
    _
  $region29: #{semi3d_forward.1} parent=0 // pred_fallthru
    _
  // Predicated region
  $region30: #{semi3d_forward.1} parent=0 // pred_check
    _
  $region31: #{semi3d_forward.1} parent=0 // pred_check_branch
    %48 = sbr.rel (0) target = $region33
  $region32: #{semi3d_forward.1} parent=0 // pred_region
    _
  $region33: #{semi3d_forward.1} parent=0 // pred_fallthru
    _
  // Predicated region
  $region34: #{semi3d_forward.1} parent=0 // pred_check
    _
  $region35: #{semi3d_forward.1} parent=0 // pred_check_branch
    %50 = sbr.rel (0) target = $region37
  $region36: #{semi3d_forward.1} parent=0 // pred_region
    _
  $region37: #{semi3d_forward.1} parent=0 // pred_fallthru
    _
  // Predicated region
  $region38: #{semi3d_forward.1} parent=0 // pred_check
    _
  $region39: #{semi3d_forward.1} parent=0 // pred_check_branch
    %52 = sbr.rel (0) target = $region41
  $region40: #{semi3d_forward.1} parent=0 // pred_region
    _
  $region41: #{semi3d_forward.1} parent=0 // pred_fallthru
    _
  // Predicated region
  $region42: #{semi3d_forward.1} parent=0 // pred_check
    _
  $region43: #{semi3d_forward.1} parent=0 // pred_check_branch
    %54 = sbr.rel (0) target = $region45
  $region44: #{semi3d_forward.1} parent=0 // pred_region
    _
  $region45: #{semi3d_forward.1} parent=0 // pred_fallthru
    _
  // Predicated region
  $region46: #{semi3d_forward.1} parent=0 // pred_check
    _
  $region47: #{semi3d_forward.1} parent=0 // pred_check_branch
    %56 = sbr.rel (0) target = $region49
  $region48: #{semi3d_forward.1} parent=0 // pred_region
    _
  $region49: #{semi3d_forward.1} parent=0 // pred_fallthru
    _
  // Predicated region
  $region50: #{semi3d_forward.1} parent=0 // pred_check
    _
  $region51: #{semi3d_forward.1} parent=0 // pred_check_branch
    %58 = sbr.rel (0) target = $region53
  $region52: #{semi3d_forward.1} parent=0 // pred_region
    _
  $region53: #{semi3d_forward.1} parent=0 // pred_fallthru
    _
  // Predicated region
  $region54: #{semi3d_forward.1} parent=0 // pred_check
    _
  $region55: #{semi3d_forward.1} parent=0 // pred_check_branch
    %60 = sbr.rel (0) target = $region57
  $region56: #{semi3d_forward.1} parent=0 // pred_region
    _
  $region57: #{semi3d_forward.1} parent=0 // pred_fallthru
    _
  // Predicated region
  $region58: #{semi3d_forward.1} parent=0 // pred_check
    _
  $region59: #{semi3d_forward.1} parent=0 // pred_check_branch
    %62 = sbr.rel (0) target = $region61
  $region60: #{semi3d_forward.1} parent=0 // pred_region
    _
  $region61: #{semi3d_forward.1} parent=0 // pred_fallthru
    _
  // Predicated region
  $region62: #{semi3d_forward.1} parent=0 // pred_check
    _
  $region63: #{semi3d_forward.1} parent=0 // pred_check_branch
    %64 = sbr.rel (0) target = $region65
  $region64: #{semi3d_forward.1} parent=0 // pred_region
    _
  $region65: #{semi3d_forward.1} parent=0 // pred_fallthru
    _
  // Predicated region
  $region66: #{semi3d_forward.1} parent=0 // pred_check
    _
  $region67: #{semi3d_forward.1} parent=0 // pred_check_branch
    %66 = sbr.rel (0) target = $region69
  $region68: #{semi3d_forward.1} parent=0 // pred_region
    _
  $region69: #{semi3d_forward.1} parent=0 // pred_fallthru
    _
  // Predicated region
  $region70: #{semi3d_forward.1} parent=0 // pred_check
    _
  $region71: #{semi3d_forward.1} parent=0 // pred_check_branch
    %68 = sbr.rel (0) target = $region73
  $region72: #{semi3d_forward.1} parent=0 // pred_region
    _
  $region73: #{semi3d_forward.1} parent=0 // pred_fallthru
    _
  // Predicated region
  $region74: #{semi3d_forward.1} parent=0 // pred_check
    _
  $region75: #{semi3d_forward.1} parent=0 // pred_check_branch
    %70 = sbr.rel (0) target = $region77
  $region76: #{semi3d_forward.1} parent=0 // pred_region
    _
  $region77: #{semi3d_forward.1} parent=0 // pred_fallthru
    _
  // Predicated region
  $region78: #{semi3d_forward.1} parent=0 // pred_check
    _
  $region79: #{semi3d_forward.1} parent=0 // pred_check_branch
    %72 = sbr.rel (0) target = $region81
  $region80: #{semi3d_forward.1} parent=0 // pred_region
    _
  $region81: #{semi3d_forward.1} parent=0 // pred_fallthru
    _
  // Predicated region
  $region82: #{semi3d_forward.1} parent=0 // pred_check
    _
  $region83: #{semi3d_forward.1} parent=0 // pred_check_branch
    %74 = sbr.rel (0) target = $region85
  $region84: #{semi3d_forward.1} parent=0 // pred_region
    _
  $region85: #{semi3d_forward.1} parent=0 // pred_fallthru
    _
  // Predicated region
  $region86: #{semi3d_forward.1} parent=0 // pred_check
    _
  $region87: #{semi3d_forward.1} parent=0 // pred_check_branch
    %76 = sbr.rel (0) target = $region89
  $region88: #{semi3d_forward.1} parent=0 // pred_region
    _
  $region89: #{semi3d_forward.1} parent=0 // pred_fallthru
    _
  // Predicated region
  $region90: #{semi3d_forward.1} parent=0 // pred_check
    _
  $region91: #{semi3d_forward.1} parent=0 // pred_check_branch
    %78 = sbr.rel (0) target = $region93
  $region92: #{semi3d_forward.1} parent=0 // pred_region
    _
  $region93: #{semi3d_forward.1} parent=0 // pred_fallthru
    _
  // Predicated region
  $region94: #{semi3d_forward.1} parent=0 // pred_check
    _
  $region95: #{semi3d_forward.1} parent=0 // pred_check_branch
    %80 = sbr.rel (0) target = $region97
  $region96: #{semi3d_forward.1} parent=0 // pred_region
    _
  $region97: #{semi3d_forward.1} parent=0 // pred_fallthru
    _
  // Predicated region
  $region98: #{semi3d_forward.1} parent=0 // pred_check
    _
  $region99: #{semi3d_forward.1} parent=0 // pred_check_branch
    %82 = sbr.rel (0) target = $region101
  $region100: #{semi3d_forward.1} parent=0 // pred_region
    _
  $region101: #{semi3d_forward.1} parent=0 // pred_fallthru
    _
  // Predicated region
  $region102: #{semi3d_forward.1} parent=0 // pred_check
    _
  $region103: #{semi3d_forward.1} parent=0 // pred_check_branch
    %84 = sbr.rel (0) target = $region105
  $region104: #{semi3d_forward.1} parent=0 // pred_region
    _
  $region105: #{semi3d_forward.1} parent=0 // pred_fallthru
    _
  // Predicated region
  $region106: #{semi3d_forward.1} parent=0 // pred_check
    _
  $region107: #{semi3d_forward.1} parent=0 // pred_check_branch
    %86 = sbr.rel (0) target = $region109
  $region108: #{semi3d_forward.1} parent=0 // pred_region
    _
  $region109: #{semi3d_forward.1} parent=0 // pred_fallthru
    _
  // Predicated region
  $region110: #{semi3d_forward.1} parent=0 // pred_check
    _
  $region111: #{semi3d_forward.1} parent=0 // pred_check_branch
    %88 = sbr.rel (0) target = $region113
  $region112: #{semi3d_forward.1} parent=0 // pred_region
    _
  $region113: #{semi3d_forward.1} parent=0 // pred_fallthru
    _
  %v89 = vld [vmem:[%s7] sm:$0xff]
  %v90 = vld [vmem:[%s7 + $0x8] sm:$0xff]
  %v91 = vld [vmem:[%s7 + $0x10] sm:$0xff]
  %v92 = vld [vmem:[%s7 + $0x18] sm:$0xff]
  %v93 = vld [vmem:[%s8] sm:$0xff]
  %v94 = vld [vmem:[%s8 + $0x8] sm:$0xff]
  %v95 = vld [vmem:[%s8 + $0x10] sm:$0xff]
  %v96 = vld [vmem:[%s8 + $0x18] sm:$0xff]
  %v97 = vld [vmem:[%s9] sm:$0xff]
  %v98 = vld [vmem:[%s9 + $0x8] sm:$0xff]
  %v99 = vld [vmem:[%s9 + $0x10] sm:$0xff]
  %v100 = vld [vmem:[%s9 + $0x18] sm:$0xff]
  %v101 = vld [vmem:[%s10] sm:$0xff]
  %v102 = vld [vmem:[%s10 + $0x8] sm:$0xff]
  %v103 = vld [vmem:[%s10 + $0x10] sm:$0xff]
  %v104 = vld [vmem:[%s10 + $0x18] sm:$0xff]
  %v105 = vld [vmem:[%s11] sm:$0xff]
  %v106 = vld [vmem:[%s11 + $0x8] sm:$0xff]
  %v107 = vld [vmem:[%s11 + $0x10] sm:$0xff]
  %v108 = vld [vmem:[%s11 + $0x18] sm:$0xff]
  %v109 = vld [vmem:[%s12] sm:$0xff]
  %v110 = vld [vmem:[%s12 + $0x8] sm:$0xff]
  %v111 = vld [vmem:[%s12 + $0x10] sm:$0xff]
  %v112 = vld [vmem:[%s12 + $0x18] sm:$0xff]
  %v113 = vld [vmem:[%s13] sm:$0xff]
  %v114 = vld [vmem:[%s13 + $0x8] sm:$0xff]
  %v115 = vld [vmem:[%s13 + $0x10] sm:$0xff]
  %v116 = vld [vmem:[%s13 + $0x18] sm:$0xff]
  %v117 = vld [vmem:[%s14] sm:$0xff]
  %v118 = vld [vmem:[%s14 + $0x8] sm:$0xff]
  %v119 = vld [vmem:[%s14 + $0x10] sm:$0xff]
  %v120 = vld [vmem:[%s14 + $0x18] sm:$0xff]
  %v121 = vld [vmem:[%s15] sm:$0xff]
  %v122 = vld [vmem:[%s15 + $0x8] sm:$0xff]
  %v123 = vld [vmem:[%s15 + $0x10] sm:$0xff]
  %v124 = vld [vmem:[%s15 + $0x18] sm:$0xff]
  %v125 = vld [vmem:[%s16] sm:$0xff]
  %v126 = vld [vmem:[%s16 + $0x8] sm:$0xff]
  %v127 = vld [vmem:[%s16 + $0x10] sm:$0xff]
  %v128 = vld [vmem:[%s16 + $0x18] sm:$0xff]
  %v129 = vld [vmem:[%s17] sm:$0xff]
  %v130 = vld [vmem:[%s17 + $0x8] sm:$0xff]
  %v131 = vld [vmem:[%s17 + $0x10] sm:$0xff]
  %v132 = vld [vmem:[%s17 + $0x18] sm:$0xff]
  %v133 = vld [vmem:[%s18] sm:$0xff]
  %v134 = vld [vmem:[%s18 + $0x8] sm:$0xff]
  %v135 = vld [vmem:[%s18 + $0x10] sm:$0xff]
  %v136 = vld [vmem:[%s18 + $0x18] sm:$0xff]
  %v137 = vld [vmem:[%s19] sm:$0xff]
  %v138 = vld [vmem:[%s19 + $0x8] sm:$0xff]
  %v139 = vld [vmem:[%s19 + $0x10] sm:$0xff]
  %v140 = vld [vmem:[%s19 + $0x18] sm:$0xff]
  %v141 = vld [vmem:[%s20] sm:$0xff]
  %v142 = vld [vmem:[%s20 + $0x8] sm:$0xff]
  %v143 = vld [vmem:[%s20 + $0x10] sm:$0xff]
  %v144 = vld [vmem:[%s20 + $0x18] sm:$0xff]
  %v145 = vld [vmem:[%s21] sm:$0xff]
  %v146 = vld [vmem:[%s21 + $0x8] sm:$0xff]
  %v147 = vld [vmem:[%s21 + $0x10] sm:$0xff]
  %v148 = vld [vmem:[%s21 + $0x18] sm:$0xff]
  %v149 = vld [vmem:[%s22] sm:$0xff]
  %v150 = vld [vmem:[%s22 + $0x8] sm:$0xff]
  %v151 = vld [vmem:[%s22 + $0x10] sm:$0xff]
  %v152 = vld [vmem:[%s22 + $0x18] sm:$0xff]
  %v153 = vld [vmem:[%s23] sm:$0xff]
  %v154 = vld [vmem:[%s23 + $0x8] sm:$0xff]
  %v155 = vld [vmem:[%s23 + $0x10] sm:$0xff]
  %v156 = vld [vmem:[%s23 + $0x18] sm:$0xff]
  %v157 = vld [vmem:[%s0] sm:$0x7]
  %s158 = scalar_lea.vmem %s0, 4
  %v159 = vld [vmem:[%s158] sm:$0x7]
  %161 = vrot.lane.b32.xlu0 %v159, 64
  %v162 = vpop.permute.xlu0 %161
  %vm164 = vcmask 523264
  %v165 = vsel %vm164, %v157, %v162
  %167 = vset.pattern.permute.xlu0 0
  %168 = vperm.xlu0 %167, %v89
  %v169 = vpop.permute.xlu0 %168
  %172 = vset.pattern.permute.xlu0 0
  %173 = vperm.xlu0 %172, %v90
  %v174 = vpop.permute.xlu0 %173
  %177 = vset.pattern.permute.xlu0 0
  %178 = vperm.xlu0 %177, %v91
  %v179 = vpop.permute.xlu0 %178
  %182 = vset.pattern.permute.xlu0 0
  %183 = vperm.xlu0 %182, %v92
  %v184 = vpop.permute.xlu0 %183
  %v186 = vlaneseq
  %v187 = vshrl.u32 %v186, 7
  %v188 = vsub.s32 0, %v187
  %v189 = vrot.slane %v165, %v188
  %v190 = vmul.f32 %v169, %v189
  %v191 = vmul.f32 %v174, %v189
  %v192 = vmul.f32 %v179, %v189
  %v193 = vmul.f32 %v184, %v189
  %194 = vset.pattern.permute.xlu0 1
  %195 = vperm.xlu0 %194, %v89
  %v196 = vpop.permute.xlu0 %195
  %198 = vset.pattern.permute.xlu0 1
  %199 = vperm.xlu0 %198, %v90
  %v200 = vpop.permute.xlu0 %199
  %202 = vset.pattern.permute.xlu0 1
  %203 = vperm.xlu0 %202, %v91
  %v204 = vpop.permute.xlu0 %203
  %206 = vset.pattern.permute.xlu0 1
  %207 = vperm.xlu0 %206, %v92
  %v208 = vpop.permute.xlu0 %207
  %v210 = vlaneseq
  %v211 = vshrl.u32 %v210, 7
  %v212 = vsub.s32 1, %v211
  %v213 = vrot.slane %v165, %v212
  %v214 = vmul.f32 %v196, %v213
  %v215 = vmul.f32 %v200, %v213
  %v216 = vmul.f32 %v204, %v213
  %v217 = vmul.f32 %v208, %v213
  %v218 = vadd.f32 %v190, %v214
  %v219 = vadd.f32 %v191, %v215
  %v220 = vadd.f32 %v192, %v216
  %v221 = vadd.f32 %v193, %v217
  %222 = vset.pattern.permute.xlu0 2
  %223 = vperm.xlu0 %222, %v89
  %v224 = vpop.permute.xlu0 %223
  %226 = vset.pattern.permute.xlu0 2
  %227 = vperm.xlu0 %226, %v90
  %v228 = vpop.permute.xlu0 %227
  %230 = vset.pattern.permute.xlu0 2
  %231 = vperm.xlu0 %230, %v91
  %v232 = vpop.permute.xlu0 %231
  %234 = vset.pattern.permute.xlu0 2
  %235 = vperm.xlu0 %234, %v92
  %v236 = vpop.permute.xlu0 %235
  %v238 = vlaneseq
  %v239 = vshrl.u32 %v238, 7
  %v240 = vsub.s32 2, %v239
  %v241 = vrot.slane %v165, %v240
  %v242 = vmul.f32 %v224, %v241
  %v243 = vmul.f32 %v228, %v241
  %v244 = vmul.f32 %v232, %v241
  %v245 = vmul.f32 %v236, %v241
  %v246 = vadd.f32 %v218, %v242
  %v247 = vadd.f32 %v219, %v243
  %v248 = vadd.f32 %v220, %v244
  %v249 = vadd.f32 %v221, %v245
  %251 = vset.pattern.permute.xlu0 0
  %252 = vperm.xlu0 %251, %v93
  %v253 = vpop.permute.xlu0 %252
  %256 = vset.pattern.permute.xlu0 0
  %257 = vperm.xlu0 %256, %v94
  %v258 = vpop.permute.xlu0 %257
  %261 = vset.pattern.permute.xlu0 0
  %262 = vperm.xlu0 %261, %v95
  %v263 = vpop.permute.xlu0 %262
  %266 = vset.pattern.permute.xlu0 0
  %267 = vperm.xlu0 %266, %v96
  %v268 = vpop.permute.xlu0 %267
  %v270 = vadd.f32 %v246, %v253
  %v271 = vadd.f32 %v247, %v258
  %v272 = vadd.f32 %v248, %v263
  %v273 = vadd.f32 %v249, %v268
  %v274 = vmax.f32 %v270, 0.0
  %v275 = vmax.f32 %v271, 0.0
  %v276 = vmax.f32 %v272, 0.0
  %v277 = vmax.f32 %v273, 0.0
  %279 = vset.pattern.permute.xlu0 0
  %280 = vperm.xlu0 %279, %v101
  %v281 = vpop.permute.xlu0 %280
  %284 = vset.pattern.permute.xlu0 0
  %285 = vperm.xlu0 %284, %v102
  %v286 = vpop.permute.xlu0 %285
  %289 = vset.pattern.permute.xlu0 0
  %290 = vperm.xlu0 %289, %v103
  %v291 = vpop.permute.xlu0 %290
  %294 = vset.pattern.permute.xlu0 0
  %295 = vperm.xlu0 %294, %v104
  %v296 = vpop.permute.xlu0 %295
  %vm298 = vcmask 261120
  %v300 = vsel %vm298, %v97, 0
  %v303 = vsel %vm298, %v98, 0
  %v306 = vsel %vm298, %v99, 0
  %v309 = vsel %vm298, %v100, 0
  %311 = vmatprep.subr.mxu0 0.0
  %312 = vmatpush1.msra.mxu0 0.0
  %313 = vmatprep.subr.mxu0 0.0
  %314 = vmatpush1.msra.mxu0 0.0
  %315 = vmatprep.subr.mxu0 0.0
  %316 = vmatpush1.msra.mxu0 0.0
  %317 = vmatprep.subr.mxu0 0.0
  %318 = vmatpush1.msra.mxu0 0.0
  %319 = vmatprep.subr.mxu0 0.0
  %320 = vmatpush1.msra.mxu0 0.0
  %321 = vmatprep.subr.mxu0 0.0
  %322 = vmatpush1.msra.mxu0 0.0
  %323 = vmatprep.subr.mxu0 0.0
  %324 = vmatpush1.msra.mxu0 0.0
  %325 = vmatprep.subr.mxu0 0.0
  %326 = vmatpush1.msra.mxu0 0.0
  %327 = vmatprep.subr.mxu0 0.0
  %328 = vmatpush1.msra.mxu0 0.0
  %329 = vmatprep.subr.mxu0 0.0
  %330 = vmatpush1.msra.mxu0 0.0
  %331 = vmatprep.subr.mxu0 0.0
  %332 = vmatpush1.msra.mxu0 0.0
  %333 = vmatprep.subr.mxu0 0.0
  %334 = vmatpush1.msra.mxu0 0.0
  %335 = vmatprep.subr.mxu0 0.0
  %336 = vmatpush1.msra.mxu0 %v277
  %337 = vmatprep.subr.mxu0 0.0
  %338 = vmatpush1.msra.mxu0 %v276
  %339 = vmatprep.subr.mxu0 0.0
  %340 = vmatpush1.msra.mxu0 %v275
  %341 = vmatprep.subr.mxu0 0.0
  %342 = vmatpush1.msra.mxu0 %v274
  %343 = vmatprep.subr.mxu0 0.0
  %344 = vmatpush2.msra.mxu0 0.0
  %345 = vmatprep.subr.mxu0 0.0
  %346 = vmatpush2.msra.mxu0 0.0
  %347 = vmatprep.subr.mxu0 0.0
  %348 = vmatpush2.msra.mxu0 0.0
  %349 = vmatprep.subr.mxu0 0.0
  %350 = vmatpush2.msra.mxu0 0.0
  %351 = vmatprep.subr.mxu0 0.0
  %352 = vmatpush2.msra.mxu0 0.0
  %353 = vmatprep.subr.mxu0 0.0
  %354 = vmatpush2.msra.mxu0 0.0
  %355 = vmatprep.subr.mxu0 0.0
  %356 = vmatpush2.msra.mxu0 0.0
  %357 = vmatprep.subr.mxu0 0.0
  %358 = vmatpush2.msra.mxu0 0.0
  %359 = vmatprep.subr.mxu0 0.0
  %360 = vmatpush2.msra.mxu0 0.0
  %361 = vmatprep.subr.mxu0 0.0
  %362 = vmatpush2.msra.mxu0 0.0
  %363 = vmatprep.subr.mxu0 0.0
  %364 = vmatpush2.msra.mxu0 0.0
  %365 = vmatprep.subr.mxu0 0.0
  %366 = vmatpush2.msra.mxu0 0.0
  %367 = vmatprep.subr.mxu0 0.0
  %368 = vmatpush2.msra.mxu0 0.0
  %369 = vmatprep.subr.mxu0 0.0
  %370 = vmatpush2.msra.mxu0 0.0
  %371 = vmatprep.subr.mxu0 0.0
  %372 = vmatpush2.msra.mxu0 0.0
  %373 = vmatprep.subr.mxu0 0.0
  %374 = vmatpush2.msra.mxu0 0.0
  %375 = vmatprep.mubr.f32.mxu0 0.0
  %376 = vmatmul.mubr.f32.gmra.mxu0 %v300
  %v377 = vpop.f32.mrf.mxu0
  %v378 = vadd.f32 %v281, %v377
  %v379 = vpop.f32.mrf.mxu0
  %380 = vmatprep.mubr.f32.mxu0 0.0
  %381 = vmatmul.mubr.f32.gmra.mxu0 %v303
  %v382 = vpop.f32.mrf.mxu0
  %v383 = vadd.f32 %v286, %v382
  %v384 = vpop.f32.mrf.mxu0
  %385 = vmatprep.mubr.f32.mxu0 0.0
  %386 = vmatmul.mubr.f32.gmra.mxu0 %v306
  %v387 = vpop.f32.mrf.mxu0
  %v388 = vadd.f32 %v291, %v387
  %v389 = vpop.f32.mrf.mxu0
  %390 = vmatprep.mubr.f32.mxu0 0.0
  %391 = vmatmul.mubr.f32.gmra.mxu0 %v309
  %v392 = vpop.f32.mrf.mxu0
  %v393 = vadd.f32 %v296, %v392
  %v394 = vpop.f32.mrf.mxu0
  %395 = vdwg.mxu0
  %v396 = vmax.f32 %v378, 0.0
  %v397 = vmax.f32 %v383, 0.0
  %v398 = vmax.f32 %v388, 0.0
  %v399 = vmax.f32 %v393, 0.0
  %400 = vxpose.xlu0.b32.start [1/16] %v396, 128
  %401 = vxpose.xlu0.b32.cont [2/16] %v397, 128
  %402 = vxpose.xlu0.b32.cont [3/16] %v398, 128
  %403 = vxpose.xlu0.b32.cont [4/16] %v399, 128
  %404 = vxpose.xlu0.b32.cont [5/16] 0.0, 128
  %405 = vxpose.xlu0.b32.cont [6/16] 0.0, 128
  %406 = vxpose.xlu0.b32.cont [7/16] 0.0, 128
  %407 = vxpose.xlu0.b32.cont [8/16] 0.0, 128
  %408 = vxpose.xlu0.b32.cont [9/16] 0.0, 128
  %409 = vxpose.xlu0.b32.cont [10/16] 0.0, 128
  %410 = vxpose.xlu0.b32.cont [11/16] 0.0, 128
  %411 = vxpose.xlu0.b32.cont [12/16] 0.0, 128
  %412 = vxpose.xlu0.b32.cont [13/16] 0.0, 128
  %413 = vxpose.xlu0.b32.cont [14/16] 0.0, 128
  %414 = vxpose.xlu0.b32.cont [15/16] 0.0, 128
  %415 = vxpose.xlu0.b32.end [16/16] 0.0, 128
  %v416 = vpop.trf.xlu0
  %v417 = vpop.trf.xlu0
  %v418 = vpop.trf.xlu0
  %v419 = vpop.trf.xlu0
  %v420 = vpop.trf.xlu0
  %v421 = vpop.trf.xlu0
  %v422 = vpop.trf.xlu0
  %v423 = vpop.trf.xlu0
  %v424 = vpop.trf.xlu0
  %v425 = vpop.trf.xlu0
  %v426 = vpop.trf.xlu0
  %v427 = vpop.trf.xlu0
  %v428 = vpop.trf.xlu0
  %v429 = vpop.trf.xlu0
  %v430 = vpop.trf.xlu0
  %v431 = vpop.trf.xlu0
  %v432 = vsel %vm298, %v416, -inf
  %v433 = vsel %vm298, %v417, -inf
  %v434 = vsel %vm298, %v418, -inf
  %v435 = vsel %vm298, %v419, -inf
  %v436 = vsel %vm298, %v420, -inf
  %v437 = vmax.f32 %v432, %v436
  %v438 = vsel %vm298, %v421, -inf
  %v439 = vmax.f32 %v433, %v438
  %v440 = vsel %vm298, %v422, -inf
  %v441 = vmax.f32 %v434, %v440
  %v442 = vsel %vm298, %v423, -inf
  %v443 = vmax.f32 %v435, %v442
  %v444 = vmax.f32 %v437, %v439
  %v445 = vmax.f32 %v441, %v443
  %v446 = vmax.f32 %v444, %v445
  %v447 = vrot.slane %v446, 4
  %v448 = vmax.f32 %v446, %v447
  %v449 = vrot.slane %v448, 2
  %v450 = vmax.f32 %v448, %v449
  %v451 = vrot.slane %v450, 1
  %v452 = vmax.f32 %v450, %v451
  %v453 = vsel %vm298, %v424, -inf
  %v454 = vsel %vm298, %v425, -inf
  %v455 = vsel %vm298, %v426, -inf
  %v456 = vsel %vm298, %v427, -inf
  %v457 = vsel %vm298, %v428, -inf
  %v458 = vmax.f32 %v453, %v457
  %v459 = vsel %vm298, %v429, -inf
  %v460 = vmax.f32 %v454, %v459
  %v461 = vsel %vm298, %v430, -inf
  %v462 = vmax.f32 %v455, %v461
  %v463 = vsel %vm298, %v431, -inf
  %v464 = vmax.f32 %v456, %v463
  %v465 = vmax.f32 %v458, %v460
  %v466 = vmax.f32 %v462, %v464
  %v467 = vmax.f32 %v465, %v466
  %v468 = vrot.slane %v467, 4
  %v469 = vmax.f32 %v467, %v468
  %v470 = vrot.slane %v469, 2
  %v471 = vmax.f32 %v469, %v470
  %v472 = vrot.slane %v471, 1
  %v473 = vmax.f32 %v471, %v472
  %vm474 = vcmask 1040384
  %v475 = vsel %vm474, %v452, %v473
  %v476 = vld [vmem:[%s3] sm:$0x7]
  %s477 = scalar_lea.vmem %s3, 4
  %v478 = vld [vmem:[%s477] sm:$0x7]
  %480 = vrot.lane.b32.xlu0 %v478, 32
  %v481 = vpop.permute.xlu0 %480
  %v483 = vsel %vm298, %v476, %v481
  %v484 = vld [vmem:[%s4] sm:$0xff]
  %v485 = vld [vmem:[%s4 + $0x8] sm:$0x1]
  %s486 = scalar_lea.vmem %s4, 16
  %v487 = vld [vmem:[%s486] sm:$0xff]
  %v488 = vld [vmem:[%s486 + $0x8] sm:$0x1]
  %491 = vrot.lane.b32.xlu0 %v487, 32
  %v492 = vpop.permute.xlu0 %491
  %493 = vrot.lane.b32.xlu0 %v488, 32
  %v494 = vpop.permute.xlu0 %493
  %v497 = vsel %vm298, %v484, %v492
  %v498 = vsel %vm298, %v485, %v494
  %v499 = vld [vmem:[%s5] sm:$0x7]
  %s500 = scalar_lea.vmem %s5, 4
  %v501 = vld [vmem:[%s500] sm:$0x7]
  %503 = vrot.lane.b32.xlu0 %v501, 32
  %v504 = vpop.permute.xlu0 %503
  %v506 = vsel %vm298, %v499, %v504
  %508 = vset.pattern.permute.xlu0 0
  %509 = vperm.xlu0 %508, %v105
  %v510 = vpop.permute.xlu0 %509
  %513 = vset.pattern.permute.xlu0 0
  %514 = vperm.xlu0 %513, %v106
  %v515 = vpop.permute.xlu0 %514
  %518 = vset.pattern.permute.xlu0 0
  %519 = vperm.xlu0 %518, %v107
  %v520 = vpop.permute.xlu0 %519
  %523 = vset.pattern.permute.xlu0 0
  %524 = vperm.xlu0 %523, %v108
  %v525 = vpop.permute.xlu0 %524
  %v527 = vlaneseq
  %v528 = vshrl.u32 %v527, 7
  %v529 = vsub.s32 0, %v528
  %v530 = vrot.slane %v483, %v529
  %v531 = vmul.f32 %v510, %v530
  %v532 = vmul.f32 %v515, %v530
  %v533 = vmul.f32 %v520, %v530
  %v534 = vmul.f32 %v525, %v530
  %535 = vset.pattern.permute.xlu0 1
  %536 = vperm.xlu0 %535, %v105
  %v537 = vpop.permute.xlu0 %536
  %539 = vset.pattern.permute.xlu0 1
  %540 = vperm.xlu0 %539, %v106
  %v541 = vpop.permute.xlu0 %540
  %543 = vset.pattern.permute.xlu0 1
  %544 = vperm.xlu0 %543, %v107
  %v545 = vpop.permute.xlu0 %544
  %547 = vset.pattern.permute.xlu0 1
  %548 = vperm.xlu0 %547, %v108
  %v549 = vpop.permute.xlu0 %548
  %v551 = vlaneseq
  %v552 = vshrl.u32 %v551, 7
  %v553 = vsub.s32 1, %v552
  %v554 = vrot.slane %v483, %v553
  %v555 = vmul.f32 %v537, %v554
  %v556 = vmul.f32 %v541, %v554
  %v557 = vmul.f32 %v545, %v554
  %v558 = vmul.f32 %v549, %v554
  %v559 = vadd.f32 %v531, %v555
  %v560 = vadd.f32 %v532, %v556
  %v561 = vadd.f32 %v533, %v557
  %v562 = vadd.f32 %v534, %v558
  %563 = vset.pattern.permute.xlu0 2
  %564 = vperm.xlu0 %563, %v105
  %v565 = vpop.permute.xlu0 %564
  %567 = vset.pattern.permute.xlu0 2
  %568 = vperm.xlu0 %567, %v106
  %v569 = vpop.permute.xlu0 %568
  %571 = vset.pattern.permute.xlu0 2
  %572 = vperm.xlu0 %571, %v107
  %v573 = vpop.permute.xlu0 %572
  %575 = vset.pattern.permute.xlu0 2
  %576 = vperm.xlu0 %575, %v108
  %v577 = vpop.permute.xlu0 %576
  %v579 = vlaneseq
  %v580 = vshrl.u32 %v579, 7
  %v581 = vsub.s32 2, %v580
  %v582 = vrot.slane %v483, %v581
  %v583 = vmul.f32 %v565, %v582
  %v584 = vmul.f32 %v569, %v582
  %v585 = vmul.f32 %v573, %v582
  %v586 = vmul.f32 %v577, %v582
  %v587 = vadd.f32 %v559, %v583
  %v588 = vadd.f32 %v560, %v584
  %v589 = vadd.f32 %v561, %v585
  %v590 = vadd.f32 %v562, %v586
  %v591 = vadd.f32 %v587, 0.0
  %v592 = vadd.f32 %v588, 0.0
  %v593 = vadd.f32 %v589, 0.0
  %v594 = vadd.f32 %v590, 0.0
  %596 = vset.pattern.permute.xlu0 0
  %597 = vperm.xlu0 %596, %v109
  %v598 = vpop.permute.xlu0 %597
  %601 = vset.pattern.permute.xlu0 0
  %602 = vperm.xlu0 %601, %v110
  %v603 = vpop.permute.xlu0 %602
  %606 = vset.pattern.permute.xlu0 0
  %607 = vperm.xlu0 %606, %v111
  %v608 = vpop.permute.xlu0 %607
  %611 = vset.pattern.permute.xlu0 0
  %612 = vperm.xlu0 %611, %v112
  %v613 = vpop.permute.xlu0 %612
  %v615 = vlaneseq
  %v616 = vshrl.u32 %v615, 7
  %v617 = vsub.s32 0, %v616
  %v618 = vrot.slane %v497, %v617
  %v619 = vmul.f32 %v598, %v618
  %v620 = vmul.f32 %v603, %v618
  %v621 = vmul.f32 %v608, %v618
  %v622 = vmul.f32 %v613, %v618
  %623 = vset.pattern.permute.xlu0 1
  %624 = vperm.xlu0 %623, %v109
  %v625 = vpop.permute.xlu0 %624
  %627 = vset.pattern.permute.xlu0 1
  %628 = vperm.xlu0 %627, %v110
  %v629 = vpop.permute.xlu0 %628
  %631 = vset.pattern.permute.xlu0 1
  %632 = vperm.xlu0 %631, %v111
  %v633 = vpop.permute.xlu0 %632
  %635 = vset.pattern.permute.xlu0 1
  %636 = vperm.xlu0 %635, %v112
  %v637 = vpop.permute.xlu0 %636
  %v639 = vlaneseq
  %v640 = vshrl.u32 %v639, 7
  %v641 = vsub.s32 1, %v640
  %v642 = vrot.slane %v497, %v641
  %v643 = vmul.f32 %v625, %v642
  %v644 = vmul.f32 %v629, %v642
  %v645 = vmul.f32 %v633, %v642
  %v646 = vmul.f32 %v637, %v642
  %v647 = vadd.f32 %v619, %v643
  %v648 = vadd.f32 %v620, %v644
  %v649 = vadd.f32 %v621, %v645
  %v650 = vadd.f32 %v622, %v646
  %651 = vset.pattern.permute.xlu0 2
  %652 = vperm.xlu0 %651, %v109
  %v653 = vpop.permute.xlu0 %652
  %655 = vset.pattern.permute.xlu0 2
  %656 = vperm.xlu0 %655, %v110
  %v657 = vpop.permute.xlu0 %656
  %659 = vset.pattern.permute.xlu0 2
  %660 = vperm.xlu0 %659, %v111
  %v661 = vpop.permute.xlu0 %660
  %663 = vset.pattern.permute.xlu0 2
  %664 = vperm.xlu0 %663, %v112
  %v665 = vpop.permute.xlu0 %664
  %v667 = vlaneseq
  %v668 = vshrl.u32 %v667, 7
  %v669 = vsub.s32 2, %v668
  %v670 = vrot.slane %v497, %v669
  %v671 = vmul.f32 %v653, %v670
  %v672 = vmul.f32 %v657, %v670
  %v673 = vmul.f32 %v661, %v670
  %v674 = vmul.f32 %v665, %v670
  %v675 = vadd.f32 %v647, %v671
  %v676 = vadd.f32 %v648, %v672
  %v677 = vadd.f32 %v649, %v673
  %v678 = vadd.f32 %v650, %v674
  %679 = vset.pattern.permute.xlu0 3
  %680 = vperm.xlu0 %679, %v109
  %v681 = vpop.permute.xlu0 %680
  %683 = vset.pattern.permute.xlu0 3
  %684 = vperm.xlu0 %683, %v110
  %v685 = vpop.permute.xlu0 %684
  %687 = vset.pattern.permute.xlu0 3
  %688 = vperm.xlu0 %687, %v111
  %v689 = vpop.permute.xlu0 %688
  %691 = vset.pattern.permute.xlu0 3
  %692 = vperm.xlu0 %691, %v112
  %v693 = vpop.permute.xlu0 %692
  %v695 = vlaneseq
  %v696 = vshrl.u32 %v695, 7
  %v697 = vsub.s32 3, %v696
  %v698 = vrot.slane %v497, %v697
  %v699 = vmul.f32 %v681, %v698
  %v700 = vmul.f32 %v685, %v698
  %v701 = vmul.f32 %v689, %v698
  %v702 = vmul.f32 %v693, %v698
  %v703 = vadd.f32 %v675, %v699
  %v704 = vadd.f32 %v676, %v700
  %v705 = vadd.f32 %v677, %v701
  %v706 = vadd.f32 %v678, %v702
  %707 = vset.pattern.permute.xlu0 4
  %708 = vperm.xlu0 %707, %v109
  %v709 = vpop.permute.xlu0 %708
  %711 = vset.pattern.permute.xlu0 4
  %712 = vperm.xlu0 %711, %v110
  %v713 = vpop.permute.xlu0 %712
  %715 = vset.pattern.permute.xlu0 4
  %716 = vperm.xlu0 %715, %v111
  %v717 = vpop.permute.xlu0 %716
  %719 = vset.pattern.permute.xlu0 4
  %720 = vperm.xlu0 %719, %v112
  %v721 = vpop.permute.xlu0 %720
  %v723 = vlaneseq
  %v724 = vshrl.u32 %v723, 7
  %v725 = vsub.s32 4, %v724
  %v726 = vrot.slane %v497, %v725
  %v727 = vmul.f32 %v709, %v726
  %v728 = vmul.f32 %v713, %v726
  %v729 = vmul.f32 %v717, %v726
  %v730 = vmul.f32 %v721, %v726
  %v731 = vadd.f32 %v703, %v727
  %v732 = vadd.f32 %v704, %v728
  %v733 = vadd.f32 %v705, %v729
  %v734 = vadd.f32 %v706, %v730
  %735 = vset.pattern.permute.xlu0 5
  %736 = vperm.xlu0 %735, %v109
  %v737 = vpop.permute.xlu0 %736
  %739 = vset.pattern.permute.xlu0 5
  %740 = vperm.xlu0 %739, %v110
  %v741 = vpop.permute.xlu0 %740
  %743 = vset.pattern.permute.xlu0 5
  %744 = vperm.xlu0 %743, %v111
  %v745 = vpop.permute.xlu0 %744
  %747 = vset.pattern.permute.xlu0 5
  %748 = vperm.xlu0 %747, %v112
  %v749 = vpop.permute.xlu0 %748
  %v751 = vlaneseq
  %v752 = vshrl.u32 %v751, 7
  %v753 = vsub.s32 5, %v752
  %v754 = vrot.slane %v497, %v753
  %v755 = vmul.f32 %v737, %v754
  %v756 = vmul.f32 %v741, %v754
  %v757 = vmul.f32 %v745, %v754
  %v758 = vmul.f32 %v749, %v754
  %v759 = vadd.f32 %v731, %v755
  %v760 = vadd.f32 %v732, %v756
  %v761 = vadd.f32 %v733, %v757
  %v762 = vadd.f32 %v734, %v758
  %763 = vset.pattern.permute.xlu0 6
  %764 = vperm.xlu0 %763, %v109
  %v765 = vpop.permute.xlu0 %764
  %767 = vset.pattern.permute.xlu0 6
  %768 = vperm.xlu0 %767, %v110
  %v769 = vpop.permute.xlu0 %768
  %771 = vset.pattern.permute.xlu0 6
  %772 = vperm.xlu0 %771, %v111
  %v773 = vpop.permute.xlu0 %772
  %775 = vset.pattern.permute.xlu0 6
  %776 = vperm.xlu0 %775, %v112
  %v777 = vpop.permute.xlu0 %776
  %v779 = vlaneseq
  %v780 = vshrl.u32 %v779, 7
  %v781 = vsub.s32 6, %v780
  %v782 = vrot.slane %v497, %v781
  %v783 = vmul.f32 %v765, %v782
  %v784 = vmul.f32 %v769, %v782
  %v785 = vmul.f32 %v773, %v782
  %v786 = vmul.f32 %v777, %v782
  %v787 = vadd.f32 %v759, %v783
  %v788 = vadd.f32 %v760, %v784
  %v789 = vadd.f32 %v761, %v785
  %v790 = vadd.f32 %v762, %v786
  %791 = vset.pattern.permute.xlu0 7
  %792 = vperm.xlu0 %791, %v109
  %v793 = vpop.permute.xlu0 %792
  %795 = vset.pattern.permute.xlu0 7
  %796 = vperm.xlu0 %795, %v110
  %v797 = vpop.permute.xlu0 %796
  %799 = vset.pattern.permute.xlu0 7
  %800 = vperm.xlu0 %799, %v111
  %v801 = vpop.permute.xlu0 %800
  %803 = vset.pattern.permute.xlu0 7
  %804 = vperm.xlu0 %803, %v112
  %v805 = vpop.permute.xlu0 %804
  %v807 = vlaneseq
  %v808 = vshrl.u32 %v807, 7
  %v809 = vsub.s32 7, %v808
  %v810 = vrot.slane %v497, %v809
  %v811 = vmul.f32 %v793, %v810
  %v812 = vmul.f32 %v797, %v810
  %v813 = vmul.f32 %v801, %v810
  %v814 = vmul.f32 %v805, %v810
  %v815 = vadd.f32 %v787, %v811
  %v816 = vadd.f32 %v788, %v812
  %v817 = vadd.f32 %v789, %v813
  %v818 = vadd.f32 %v790, %v814
  %819 = vset.pattern.permute.xlu0 8
  %820 = vperm.xlu0 %819, %v109
  %v821 = vpop.permute.xlu0 %820
  %823 = vset.pattern.permute.xlu0 8
  %824 = vperm.xlu0 %823, %v110
  %v825 = vpop.permute.xlu0 %824
  %827 = vset.pattern.permute.xlu0 8
  %828 = vperm.xlu0 %827, %v111
  %v829 = vpop.permute.xlu0 %828
  %831 = vset.pattern.permute.xlu0 8
  %832 = vperm.xlu0 %831, %v112
  %v833 = vpop.permute.xlu0 %832
  %v835 = vlaneseq
  %v836 = vshrl.u32 %v835, 7
  %v837 = vsub.s32 0, %v836
  %v838 = vrot.slane %v498, %v837
  %v839 = vmul.f32 %v821, %v838
  %v840 = vmul.f32 %v825, %v838
  %v841 = vmul.f32 %v829, %v838
  %v842 = vmul.f32 %v833, %v838
  %v843 = vadd.f32 %v815, %v839
  %v844 = vadd.f32 %v816, %v840
  %v845 = vadd.f32 %v817, %v841
  %v846 = vadd.f32 %v818, %v842
  %v847 = vadd.f32 %v591, %v843
  %v848 = vadd.f32 %v592, %v844
  %v849 = vadd.f32 %v593, %v845
  %v850 = vadd.f32 %v594, %v846
  %852 = vset.pattern.permute.xlu0 0
  %853 = vperm.xlu0 %852, %v113
  %v854 = vpop.permute.xlu0 %853
  %857 = vset.pattern.permute.xlu0 0
  %858 = vperm.xlu0 %857, %v114
  %v859 = vpop.permute.xlu0 %858
  %862 = vset.pattern.permute.xlu0 0
  %863 = vperm.xlu0 %862, %v115
  %v864 = vpop.permute.xlu0 %863
  %867 = vset.pattern.permute.xlu0 0
  %868 = vperm.xlu0 %867, %v116
  %v869 = vpop.permute.xlu0 %868
  %v871 = vlaneseq
  %v872 = vshrl.u32 %v871, 7
  %v873 = vsub.s32 0, %v872
  %v874 = vrot.slane %v506, %v873
  %v875 = vmul.f32 %v854, %v874
  %v876 = vmul.f32 %v859, %v874
  %v877 = vmul.f32 %v864, %v874
  %v878 = vmul.f32 %v869, %v874
  %879 = vset.pattern.permute.xlu0 1
  %880 = vperm.xlu0 %879, %v113
  %v881 = vpop.permute.xlu0 %880
  %883 = vset.pattern.permute.xlu0 1
  %884 = vperm.xlu0 %883, %v114
  %v885 = vpop.permute.xlu0 %884
  %887 = vset.pattern.permute.xlu0 1
  %888 = vperm.xlu0 %887, %v115
  %v889 = vpop.permute.xlu0 %888
  %891 = vset.pattern.permute.xlu0 1
  %892 = vperm.xlu0 %891, %v116
  %v893 = vpop.permute.xlu0 %892
  %v895 = vlaneseq
  %v896 = vshrl.u32 %v895, 7
  %v897 = vsub.s32 1, %v896
  %v898 = vrot.slane %v506, %v897
  %v899 = vmul.f32 %v881, %v898
  %v900 = vmul.f32 %v885, %v898
  %v901 = vmul.f32 %v889, %v898
  %v902 = vmul.f32 %v893, %v898
  %v903 = vadd.f32 %v875, %v899
  %v904 = vadd.f32 %v876, %v900
  %v905 = vadd.f32 %v877, %v901
  %v906 = vadd.f32 %v878, %v902
  %907 = vset.pattern.permute.xlu0 2
  %908 = vperm.xlu0 %907, %v113
  %v909 = vpop.permute.xlu0 %908
  %911 = vset.pattern.permute.xlu0 2
  %912 = vperm.xlu0 %911, %v114
  %v913 = vpop.permute.xlu0 %912
  %915 = vset.pattern.permute.xlu0 2
  %916 = vperm.xlu0 %915, %v115
  %v917 = vpop.permute.xlu0 %916
  %919 = vset.pattern.permute.xlu0 2
  %920 = vperm.xlu0 %919, %v116
  %v921 = vpop.permute.xlu0 %920
  %v923 = vlaneseq
  %v924 = vshrl.u32 %v923, 7
  %v925 = vsub.s32 2, %v924
  %v926 = vrot.slane %v506, %v925
  %v927 = vmul.f32 %v909, %v926
  %v928 = vmul.f32 %v913, %v926
  %v929 = vmul.f32 %v917, %v926
  %v930 = vmul.f32 %v921, %v926
  %v931 = vadd.f32 %v903, %v927
  %v932 = vadd.f32 %v904, %v928
  %v933 = vadd.f32 %v905, %v929
  %v934 = vadd.f32 %v906, %v930
  %v935 = vadd.f32 %v847, %v931
  %v936 = vadd.f32 %v848, %v932
  %v937 = vadd.f32 %v849, %v933
  %v938 = vadd.f32 %v850, %v934
  %940 = vset.pattern.permute.xlu0 0
  %941 = vperm.xlu0 %940, %v117
  %v942 = vpop.permute.xlu0 %941
  %945 = vset.pattern.permute.xlu0 0
  %946 = vperm.xlu0 %945, %v118
  %v947 = vpop.permute.xlu0 %946
  %950 = vset.pattern.permute.xlu0 0
  %951 = vperm.xlu0 %950, %v119
  %v952 = vpop.permute.xlu0 %951
  %955 = vset.pattern.permute.xlu0 0
  %956 = vperm.xlu0 %955, %v120
  %v957 = vpop.permute.xlu0 %956
  %v959 = vmul.f32 %v942, %v530
  %v960 = vmul.f32 %v947, %v530
  %v961 = vmul.f32 %v952, %v530
  %v962 = vmul.f32 %v957, %v530
  %963 = vset.pattern.permute.xlu0 1
  %964 = vperm.xlu0 %963, %v117
  %v965 = vpop.permute.xlu0 %964
  %967 = vset.pattern.permute.xlu0 1
  %968 = vperm.xlu0 %967, %v118
  %v969 = vpop.permute.xlu0 %968
  %971 = vset.pattern.permute.xlu0 1
  %972 = vperm.xlu0 %971, %v119
  %v973 = vpop.permute.xlu0 %972
  %975 = vset.pattern.permute.xlu0 1
  %976 = vperm.xlu0 %975, %v120
  %v977 = vpop.permute.xlu0 %976
  %v979 = vmul.f32 %v965, %v554
  %v980 = vmul.f32 %v969, %v554
  %v981 = vmul.f32 %v973, %v554
  %v982 = vmul.f32 %v977, %v554
  %v983 = vadd.f32 %v959, %v979
  %v984 = vadd.f32 %v960, %v980
  %v985 = vadd.f32 %v961, %v981
  %v986 = vadd.f32 %v962, %v982
  %987 = vset.pattern.permute.xlu0 2
  %988 = vperm.xlu0 %987, %v117
  %v989 = vpop.permute.xlu0 %988
  %991 = vset.pattern.permute.xlu0 2
  %992 = vperm.xlu0 %991, %v118
  %v993 = vpop.permute.xlu0 %992
  %995 = vset.pattern.permute.xlu0 2
  %996 = vperm.xlu0 %995, %v119
  %v997 = vpop.permute.xlu0 %996
  %999 = vset.pattern.permute.xlu0 2
  %1000 = vperm.xlu0 %999, %v120
  %v1001 = vpop.permute.xlu0 %1000
  %v1003 = vmul.f32 %v989, %v582
  %v1004 = vmul.f32 %v993, %v582
  %v1005 = vmul.f32 %v997, %v582
  %v1006 = vmul.f32 %v1001, %v582
  %v1007 = vadd.f32 %v983, %v1003
  %v1008 = vadd.f32 %v984, %v1004
  %v1009 = vadd.f32 %v985, %v1005
  %v1010 = vadd.f32 %v986, %v1006
  %v1011 = vadd.f32 %v1007, 0.0
  %v1012 = vadd.f32 %v1008, 0.0
  %v1013 = vadd.f32 %v1009, 0.0
  %v1014 = vadd.f32 %v1010, 0.0
  %1016 = vset.pattern.permute.xlu0 0
  %1017 = vperm.xlu0 %1016, %v121
  %v1018 = vpop.permute.xlu0 %1017
  %1021 = vset.pattern.permute.xlu0 0
  %1022 = vperm.xlu0 %1021, %v122
  %v1023 = vpop.permute.xlu0 %1022
  %1026 = vset.pattern.permute.xlu0 0
  %1027 = vperm.xlu0 %1026, %v123
  %v1028 = vpop.permute.xlu0 %1027
  %1031 = vset.pattern.permute.xlu0 0
  %1032 = vperm.xlu0 %1031, %v124
  %v1033 = vpop.permute.xlu0 %1032
  %v1035 = vmul.f32 %v1018, %v618
  %v1036 = vmul.f32 %v1023, %v618
  %v1037 = vmul.f32 %v1028, %v618
  %v1038 = vmul.f32 %v1033, %v618
  %1039 = vset.pattern.permute.xlu0 1
  %1040 = vperm.xlu0 %1039, %v121
  %v1041 = vpop.permute.xlu0 %1040
  %1043 = vset.pattern.permute.xlu0 1
  %1044 = vperm.xlu0 %1043, %v122
  %v1045 = vpop.permute.xlu0 %1044
  %1047 = vset.pattern.permute.xlu0 1
  %1048 = vperm.xlu0 %1047, %v123
  %v1049 = vpop.permute.xlu0 %1048
  %1051 = vset.pattern.permute.xlu0 1
  %1052 = vperm.xlu0 %1051, %v124
  %v1053 = vpop.permute.xlu0 %1052
  %v1055 = vmul.f32 %v1041, %v642
  %v1056 = vmul.f32 %v1045, %v642
  %v1057 = vmul.f32 %v1049, %v642
  %v1058 = vmul.f32 %v1053, %v642
  %v1059 = vadd.f32 %v1035, %v1055
  %v1060 = vadd.f32 %v1036, %v1056
  %v1061 = vadd.f32 %v1037, %v1057
  %v1062 = vadd.f32 %v1038, %v1058
  %1063 = vset.pattern.permute.xlu0 2
  %1064 = vperm.xlu0 %1063, %v121
  %v1065 = vpop.permute.xlu0 %1064
  %1067 = vset.pattern.permute.xlu0 2
  %1068 = vperm.xlu0 %1067, %v122
  %v1069 = vpop.permute.xlu0 %1068
  %1071 = vset.pattern.permute.xlu0 2
  %1072 = vperm.xlu0 %1071, %v123
  %v1073 = vpop.permute.xlu0 %1072
  %1075 = vset.pattern.permute.xlu0 2
  %1076 = vperm.xlu0 %1075, %v124
  %v1077 = vpop.permute.xlu0 %1076
  %v1079 = vmul.f32 %v1065, %v670
  %v1080 = vmul.f32 %v1069, %v670
  %v1081 = vmul.f32 %v1073, %v670
  %v1082 = vmul.f32 %v1077, %v670
  %v1083 = vadd.f32 %v1059, %v1079
  %v1084 = vadd.f32 %v1060, %v1080
  %v1085 = vadd.f32 %v1061, %v1081
  %v1086 = vadd.f32 %v1062, %v1082
  %1087 = vset.pattern.permute.xlu0 3
  %1088 = vperm.xlu0 %1087, %v121
  %v1089 = vpop.permute.xlu0 %1088
  %1091 = vset.pattern.permute.xlu0 3
  %1092 = vperm.xlu0 %1091, %v122
  %v1093 = vpop.permute.xlu0 %1092
  %1095 = vset.pattern.permute.xlu0 3
  %1096 = vperm.xlu0 %1095, %v123
  %v1097 = vpop.permute.xlu0 %1096
  %1099 = vset.pattern.permute.xlu0 3
  %1100 = vperm.xlu0 %1099, %v124
  %v1101 = vpop.permute.xlu0 %1100
  %v1103 = vmul.f32 %v1089, %v698
  %v1104 = vmul.f32 %v1093, %v698
  %v1105 = vmul.f32 %v1097, %v698
  %v1106 = vmul.f32 %v1101, %v698
  %v1107 = vadd.f32 %v1083, %v1103
  %v1108 = vadd.f32 %v1084, %v1104
  %v1109 = vadd.f32 %v1085, %v1105
  %v1110 = vadd.f32 %v1086, %v1106
  %1111 = vset.pattern.permute.xlu0 4
  %1112 = vperm.xlu0 %1111, %v121
  %v1113 = vpop.permute.xlu0 %1112
  %1115 = vset.pattern.permute.xlu0 4
  %1116 = vperm.xlu0 %1115, %v122
  %v1117 = vpop.permute.xlu0 %1116
  %1119 = vset.pattern.permute.xlu0 4
  %1120 = vperm.xlu0 %1119, %v123
  %v1121 = vpop.permute.xlu0 %1120
  %1123 = vset.pattern.permute.xlu0 4
  %1124 = vperm.xlu0 %1123, %v124
  %v1125 = vpop.permute.xlu0 %1124
  %v1127 = vmul.f32 %v1113, %v726
  %v1128 = vmul.f32 %v1117, %v726
  %v1129 = vmul.f32 %v1121, %v726
  %v1130 = vmul.f32 %v1125, %v726
  %v1131 = vadd.f32 %v1107, %v1127
  %v1132 = vadd.f32 %v1108, %v1128
  %v1133 = vadd.f32 %v1109, %v1129
  %v1134 = vadd.f32 %v1110, %v1130
  %1135 = vset.pattern.permute.xlu0 5
  %1136 = vperm.xlu0 %1135, %v121
  %v1137 = vpop.permute.xlu0 %1136
  %1139 = vset.pattern.permute.xlu0 5
  %1140 = vperm.xlu0 %1139, %v122
  %v1141 = vpop.permute.xlu0 %1140
  %1143 = vset.pattern.permute.xlu0 5
  %1144 = vperm.xlu0 %1143, %v123
  %v1145 = vpop.permute.xlu0 %1144
  %1147 = vset.pattern.permute.xlu0 5
  %1148 = vperm.xlu0 %1147, %v124
  %v1149 = vpop.permute.xlu0 %1148
  %v1151 = vmul.f32 %v1137, %v754
  %v1152 = vmul.f32 %v1141, %v754
  %v1153 = vmul.f32 %v1145, %v754
  %v1154 = vmul.f32 %v1149, %v754
  %v1155 = vadd.f32 %v1131, %v1151
  %v1156 = vadd.f32 %v1132, %v1152
  %v1157 = vadd.f32 %v1133, %v1153
  %v1158 = vadd.f32 %v1134, %v1154
  %1159 = vset.pattern.permute.xlu0 6
  %1160 = vperm.xlu0 %1159, %v121
  %v1161 = vpop.permute.xlu0 %1160
  %1163 = vset.pattern.permute.xlu0 6
  %1164 = vperm.xlu0 %1163, %v122
  %v1165 = vpop.permute.xlu0 %1164
  %1167 = vset.pattern.permute.xlu0 6
  %1168 = vperm.xlu0 %1167, %v123
  %v1169 = vpop.permute.xlu0 %1168
  %1171 = vset.pattern.permute.xlu0 6
  %1172 = vperm.xlu0 %1171, %v124
  %v1173 = vpop.permute.xlu0 %1172
  %v1175 = vmul.f32 %v1161, %v782
  %v1176 = vmul.f32 %v1165, %v782
  %v1177 = vmul.f32 %v1169, %v782
  %v1178 = vmul.f32 %v1173, %v782
  %v1179 = vadd.f32 %v1155, %v1175
  %v1180 = vadd.f32 %v1156, %v1176
  %v1181 = vadd.f32 %v1157, %v1177
  %v1182 = vadd.f32 %v1158, %v1178
  %1183 = vset.pattern.permute.xlu0 7
  %1184 = vperm.xlu0 %1183, %v121
  %v1185 = vpop.permute.xlu0 %1184
  %1187 = vset.pattern.permute.xlu0 7
  %1188 = vperm.xlu0 %1187, %v122
  %v1189 = vpop.permute.xlu0 %1188
  %1191 = vset.pattern.permute.xlu0 7
  %1192 = vperm.xlu0 %1191, %v123
  %v1193 = vpop.permute.xlu0 %1192
  %1195 = vset.pattern.permute.xlu0 7
  %1196 = vperm.xlu0 %1195, %v124
  %v1197 = vpop.permute.xlu0 %1196
  %v1199 = vmul.f32 %v1185, %v810
  %v1200 = vmul.f32 %v1189, %v810
  %v1201 = vmul.f32 %v1193, %v810
  %v1202 = vmul.f32 %v1197, %v810
  %v1203 = vadd.f32 %v1179, %v1199
  %v1204 = vadd.f32 %v1180, %v1200
  %v1205 = vadd.f32 %v1181, %v1201
  %v1206 = vadd.f32 %v1182, %v1202
  %1207 = vset.pattern.permute.xlu0 8
  %1208 = vperm.xlu0 %1207, %v121
  %v1209 = vpop.permute.xlu0 %1208
  %1211 = vset.pattern.permute.xlu0 8
  %1212 = vperm.xlu0 %1211, %v122
  %v1213 = vpop.permute.xlu0 %1212
  %1215 = vset.pattern.permute.xlu0 8
  %1216 = vperm.xlu0 %1215, %v123
  %v1217 = vpop.permute.xlu0 %1216
  %1219 = vset.pattern.permute.xlu0 8
  %1220 = vperm.xlu0 %1219, %v124
  %v1221 = vpop.permute.xlu0 %1220
  %v1223 = vmul.f32 %v1209, %v838
  %v1224 = vmul.f32 %v1213, %v838
  %v1225 = vmul.f32 %v1217, %v838
  %v1226 = vmul.f32 %v1221, %v838
  %v1227 = vadd.f32 %v1203, %v1223
  %v1228 = vadd.f32 %v1204, %v1224
  %v1229 = vadd.f32 %v1205, %v1225
  %v1230 = vadd.f32 %v1206, %v1226
  %v1231 = vadd.f32 %v1011, %v1227
  %v1232 = vadd.f32 %v1012, %v1228
  %v1233 = vadd.f32 %v1013, %v1229
  %v1234 = vadd.f32 %v1014, %v1230
  %1236 = vset.pattern.permute.xlu0 0
  %1237 = vperm.xlu0 %1236, %v125
  %v1238 = vpop.permute.xlu0 %1237
  %1241 = vset.pattern.permute.xlu0 0
  %1242 = vperm.xlu0 %1241, %v126
  %v1243 = vpop.permute.xlu0 %1242
  %1246 = vset.pattern.permute.xlu0 0
  %1247 = vperm.xlu0 %1246, %v127
  %v1248 = vpop.permute.xlu0 %1247
  %1251 = vset.pattern.permute.xlu0 0
  %1252 = vperm.xlu0 %1251, %v128
  %v1253 = vpop.permute.xlu0 %1252
  %v1255 = vmul.f32 %v1238, %v874
  %v1256 = vmul.f32 %v1243, %v874
  %v1257 = vmul.f32 %v1248, %v874
  %v1258 = vmul.f32 %v1253, %v874
  %1259 = vset.pattern.permute.xlu0 1
  %1260 = vperm.xlu0 %1259, %v125
  %v1261 = vpop.permute.xlu0 %1260
  %1263 = vset.pattern.permute.xlu0 1
  %1264 = vperm.xlu0 %1263, %v126
  %v1265 = vpop.permute.xlu0 %1264
  %1267 = vset.pattern.permute.xlu0 1
  %1268 = vperm.xlu0 %1267, %v127
  %v1269 = vpop.permute.xlu0 %1268
  %1271 = vset.pattern.permute.xlu0 1
  %1272 = vperm.xlu0 %1271, %v128
  %v1273 = vpop.permute.xlu0 %1272
  %v1275 = vmul.f32 %v1261, %v898
  %v1276 = vmul.f32 %v1265, %v898
  %v1277 = vmul.f32 %v1269, %v898
  %v1278 = vmul.f32 %v1273, %v898
  %v1279 = vadd.f32 %v1255, %v1275
  %v1280 = vadd.f32 %v1256, %v1276
  %v1281 = vadd.f32 %v1257, %v1277
  %v1282 = vadd.f32 %v1258, %v1278
  %1283 = vset.pattern.permute.xlu0 2
  %1284 = vperm.xlu0 %1283, %v125
  %v1285 = vpop.permute.xlu0 %1284
  %1287 = vset.pattern.permute.xlu0 2
  %1288 = vperm.xlu0 %1287, %v126
  %v1289 = vpop.permute.xlu0 %1288
  %1291 = vset.pattern.permute.xlu0 2
  %1292 = vperm.xlu0 %1291, %v127
  %v1293 = vpop.permute.xlu0 %1292
  %1295 = vset.pattern.permute.xlu0 2
  %1296 = vperm.xlu0 %1295, %v128
  %v1297 = vpop.permute.xlu0 %1296
  %v1299 = vmul.f32 %v1285, %v926
  %v1300 = vmul.f32 %v1289, %v926
  %v1301 = vmul.f32 %v1293, %v926
  %v1302 = vmul.f32 %v1297, %v926
  %v1303 = vadd.f32 %v1279, %v1299
  %v1304 = vadd.f32 %v1280, %v1300
  %v1305 = vadd.f32 %v1281, %v1301
  %v1306 = vadd.f32 %v1282, %v1302
  %v1307 = vadd.f32 %v1231, %v1303
  %v1308 = vadd.f32 %v1232, %v1304
  %v1309 = vadd.f32 %v1233, %v1305
  %v1310 = vadd.f32 %v1234, %v1306
  %v1311 = vld [vmem:[%s6] sm:$0xff]
  %v1312 = vld [vmem:[%s6 + $0x8] sm:$0xff]
  %v1313 = vld [vmem:[%s6 + $0x10] sm:$0xff]
  %v1314 = vld [vmem:[%s6 + $0x18] sm:$0xff]
  %s1315 = scalar_lea.vmem %s6, 32
  %v1316 = vld [vmem:[%s1315] sm:$0xff]
  %v1317 = vld [vmem:[%s1315 + $0x8] sm:$0xff]
  %v1318 = vld [vmem:[%s1315 + $0x10] sm:$0xff]
  %v1319 = vld [vmem:[%s1315 + $0x18] sm:$0xff]
  %v1320 = vadd.s32 %v1316, 32
  %v1321 = vadd.s32 %v1317, 32
  %v1322 = vadd.s32 %v1318, 32
  %v1323 = vadd.s32 %v1319, 32
  %v1324 = vlaneseq
  %v1325 = vand.u32 %v1324, 127
  %1326 = vset.pattern.permute.xlu0 0
  %1327 = vperm.xlu0 %1326, %v1311
  %v1328 = vpop.permute.xlu0 %1327
  %1329 = vset.pattern.permute.xlu0 0
  %1330 = vperm.xlu0 %1329, %v1312
  %v1331 = vpop.permute.xlu0 %1330
  %1332 = vset.pattern.permute.xlu0 0
  %1333 = vperm.xlu0 %1332, %v1313
  %v1334 = vpop.permute.xlu0 %1333
  %1335 = vset.pattern.permute.xlu0 0
  %1336 = vperm.xlu0 %1335, %v1314
  %v1337 = vpop.permute.xlu0 %1336
  %1338 = vset.pattern.permute.xlu0 0
  %1339 = vperm.xlu0 %1338, %v1320
  %v1340 = vpop.permute.xlu0 %1339
  %1341 = vset.pattern.permute.xlu0 0
  %1342 = vperm.xlu0 %1341, %v1321
  %v1343 = vpop.permute.xlu0 %1342
  %1344 = vset.pattern.permute.xlu0 0
  %1345 = vperm.xlu0 %1344, %v1322
  %v1346 = vpop.permute.xlu0 %1345
  %1347 = vset.pattern.permute.xlu0 0
  %1348 = vperm.xlu0 %1347, %v1323
  %v1349 = vpop.permute.xlu0 %1348
  %vm1350 = vcmp.eq.s32.totalorder %v1328, %v1325
  %vm1351 = vcmp.eq.s32.totalorder %v1331, %v1325
  %vm1352 = vcmp.eq.s32.totalorder %v1334, %v1325
  %vm1353 = vcmp.eq.s32.totalorder %v1337, %v1325
  %vm1354 = vcmp.eq.s32.totalorder %v1340, %v1325
  %vm1355 = vcmp.eq.s32.totalorder %v1343, %v1325
  %vm1356 = vcmp.eq.s32.totalorder %v1346, %v1325
  %vm1357 = vcmp.eq.s32.totalorder %v1349, %v1325
  %v1358 = vsel %vm1350, 1, 0
  %v1359 = vsel %vm1351, 1, 0
  %v1360 = vsel %vm1352, 1, 0
  %v1361 = vsel %vm1353, 1, 0
  %v1362 = vsel %vm1354, 1, 0
  %v1363 = vsel %vm1355, 1, 0
  %v1364 = vsel %vm1356, 1, 0
  %v1365 = vsel %vm1357, 1, 0
  %v1366 = vcvt.s32.f32 %v1358
  %v1367 = vcvt.s32.f32 %v1359
  %v1368 = vcvt.s32.f32 %v1360
  %v1369 = vcvt.s32.f32 %v1361
  %v1370 = vcvt.s32.f32 %v1362
  %v1371 = vcvt.s32.f32 %v1363
  %v1372 = vcvt.s32.f32 %v1364
  %v1373 = vcvt.s32.f32 %v1365
  %1374 = vset.pattern.permute.xlu0 1
  %1375 = vperm.xlu0 %1374, %v1311
  %v1376 = vpop.permute.xlu0 %1375
  %1377 = vset.pattern.permute.xlu0 1
  %1378 = vperm.xlu0 %1377, %v1312
  %v1379 = vpop.permute.xlu0 %1378
  %1380 = vset.pattern.permute.xlu0 1
  %1381 = vperm.xlu0 %1380, %v1313
  %v1382 = vpop.permute.xlu0 %1381
  %1383 = vset.pattern.permute.xlu0 1
  %1384 = vperm.xlu0 %1383, %v1314
  %v1385 = vpop.permute.xlu0 %1384
  %1386 = vset.pattern.permute.xlu0 1
  %1387 = vperm.xlu0 %1386, %v1320
  %v1388 = vpop.permute.xlu0 %1387
  %1389 = vset.pattern.permute.xlu0 1
  %1390 = vperm.xlu0 %1389, %v1321
  %v1391 = vpop.permute.xlu0 %1390
  %1392 = vset.pattern.permute.xlu0 1
  %1393 = vperm.xlu0 %1392, %v1322
  %v1394 = vpop.permute.xlu0 %1393
  %1395 = vset.pattern.permute.xlu0 1
  %1396 = vperm.xlu0 %1395, %v1323
  %v1397 = vpop.permute.xlu0 %1396
  %vm1398 = vcmp.eq.s32.totalorder %v1376, %v1325
  %vm1399 = vcmp.eq.s32.totalorder %v1379, %v1325
  %vm1400 = vcmp.eq.s32.totalorder %v1382, %v1325
  %vm1401 = vcmp.eq.s32.totalorder %v1385, %v1325
  %vm1402 = vcmp.eq.s32.totalorder %v1388, %v1325
  %vm1403 = vcmp.eq.s32.totalorder %v1391, %v1325
  %vm1404 = vcmp.eq.s32.totalorder %v1394, %v1325
  %vm1405 = vcmp.eq.s32.totalorder %v1397, %v1325
  %v1406 = vsel %vm1398, 1, 0
  %v1407 = vsel %vm1399, 1, 0
  %v1408 = vsel %vm1400, 1, 0
  %v1409 = vsel %vm1401, 1, 0
  %v1410 = vsel %vm1402, 1, 0
  %v1411 = vsel %vm1403, 1, 0
  %v1412 = vsel %vm1404, 1, 0
  %v1413 = vsel %vm1405, 1, 0
  %v1414 = vcvt.s32.f32 %v1406
  %v1415 = vcvt.s32.f32 %v1407
  %v1416 = vcvt.s32.f32 %v1408
  %v1417 = vcvt.s32.f32 %v1409
  %v1418 = vcvt.s32.f32 %v1410
  %v1419 = vcvt.s32.f32 %v1411
  %v1420 = vcvt.s32.f32 %v1412
  %v1421 = vcvt.s32.f32 %v1413
  %v1422 = vadd.f32 %v1366, %v1414
  %v1423 = vadd.f32 %v1367, %v1415
  %v1424 = vadd.f32 %v1368, %v1416
  %v1425 = vadd.f32 %v1369, %v1417
  %v1426 = vadd.f32 %v1370, %v1418
  %v1427 = vadd.f32 %v1371, %v1419
  %v1428 = vadd.f32 %v1372, %v1420
  %v1429 = vadd.f32 %v1373, %v1421
  %1430 = vset.pattern.permute.xlu0 2
  %1431 = vperm.xlu0 %1430, %v1311
  %v1432 = vpop.permute.xlu0 %1431
  %1433 = vset.pattern.permute.xlu0 2
  %1434 = vperm.xlu0 %1433, %v1312
  %v1435 = vpop.permute.xlu0 %1434
  %1436 = vset.pattern.permute.xlu0 2
  %1437 = vperm.xlu0 %1436, %v1313
  %v1438 = vpop.permute.xlu0 %1437
  %1439 = vset.pattern.permute.xlu0 2
  %1440 = vperm.xlu0 %1439, %v1314
  %v1441 = vpop.permute.xlu0 %1440
  %1442 = vset.pattern.permute.xlu0 2
  %1443 = vperm.xlu0 %1442, %v1320
  %v1444 = vpop.permute.xlu0 %1443
  %1445 = vset.pattern.permute.xlu0 2
  %1446 = vperm.xlu0 %1445, %v1321
  %v1447 = vpop.permute.xlu0 %1446
  %1448 = vset.pattern.permute.xlu0 2
  %1449 = vperm.xlu0 %1448, %v1322
  %v1450 = vpop.permute.xlu0 %1449
  %1451 = vset.pattern.permute.xlu0 2
  %1452 = vperm.xlu0 %1451, %v1323
  %v1453 = vpop.permute.xlu0 %1452
  %vm1454 = vcmp.eq.s32.totalorder %v1432, %v1325
  %vm1455 = vcmp.eq.s32.totalorder %v1435, %v1325
  %vm1456 = vcmp.eq.s32.totalorder %v1438, %v1325
  %vm1457 = vcmp.eq.s32.totalorder %v1441, %v1325
  %vm1458 = vcmp.eq.s32.totalorder %v1444, %v1325
  %vm1459 = vcmp.eq.s32.totalorder %v1447, %v1325
  %vm1460 = vcmp.eq.s32.totalorder %v1450, %v1325
  %vm1461 = vcmp.eq.s32.totalorder %v1453, %v1325
  %v1462 = vsel %vm1454, 1, 0
  %v1463 = vsel %vm1455, 1, 0
  %v1464 = vsel %vm1456, 1, 0
  %v1465 = vsel %vm1457, 1, 0
  %v1466 = vsel %vm1458, 1, 0
  %v1467 = vsel %vm1459, 1, 0
  %v1468 = vsel %vm1460, 1, 0
  %v1469 = vsel %vm1461, 1, 0
  %v1470 = vcvt.s32.f32 %v1462
  %v1471 = vcvt.s32.f32 %v1463
  %v1472 = vcvt.s32.f32 %v1464
  %v1473 = vcvt.s32.f32 %v1465
  %v1474 = vcvt.s32.f32 %v1466
  %v1475 = vcvt.s32.f32 %v1467
  %v1476 = vcvt.s32.f32 %v1468
  %v1477 = vcvt.s32.f32 %v1469
  %v1478 = vadd.f32 %v1422, %v1470
  %v1479 = vadd.f32 %v1423, %v1471
  %v1480 = vadd.f32 %v1424, %v1472
  %v1481 = vadd.f32 %v1425, %v1473
  %v1482 = vadd.f32 %v1426, %v1474
  %v1483 = vadd.f32 %v1427, %v1475
  %v1484 = vadd.f32 %v1428, %v1476
  %v1485 = vadd.f32 %v1429, %v1477
  %v1486 = vmul.f32 %v1478, 0.33333334
  %v1487 = vmul.f32 %v1479, 0.33333334
  %v1488 = vmul.f32 %v1480, 0.33333334
  %v1489 = vmul.f32 %v1481, 0.33333334
  %v1490 = vmul.f32 %v1482, 0.33333334
  %v1491 = vmul.f32 %v1483, 0.33333334
  %v1492 = vmul.f32 %v1484, 0.33333334
  %v1493 = vmul.f32 %v1485, 0.33333334
  %v1495 = vsel %vm164, %v1307, 0
  %v1498 = vsel %vm164, %v1308, 0
  %v1501 = vsel %vm164, %v1309, 0
  %v1504 = vsel %vm164, %v1310, 0
  %v1507 = vsel %vm164, %v1486, 0
  %v1510 = vsel %vm164, %v1487, 0
  %v1513 = vsel %vm164, %v1488, 0
  %v1516 = vsel %vm164, %v1489, 0
  %v1519 = vsel %vm164, %v1490, 0
  %v1522 = vsel %vm164, %v1491, 0
  %v1525 = vsel %vm164, %v1492, 0
  %v1528 = vsel %vm164, %v1493, 0
  %1530 = vmatprep.subr.mxu0 0.0
  %1531 = vmatpush1.xpose.msra.mxu0 0.0
  %1532 = vmatprep.subr.mxu0 0.0
  %1533 = vmatpush1.xpose.msra.mxu0 0.0
  %1534 = vmatprep.subr.mxu0 0.0
  %1535 = vmatpush1.xpose.msra.mxu0 0.0
  %1536 = vmatprep.subr.mxu0 0.0
  %1537 = vmatpush1.xpose.msra.mxu0 0.0
  %1538 = vmatprep.subr.mxu0 0.0
  %1539 = vmatpush1.xpose.msra.mxu0 0.0
  %1540 = vmatprep.subr.mxu0 0.0
  %1541 = vmatpush1.xpose.msra.mxu0 0.0
  %1542 = vmatprep.subr.mxu0 0.0
  %1543 = vmatpush1.xpose.msra.mxu0 0.0
  %1544 = vmatprep.subr.mxu0 0.0
  %1545 = vmatpush1.xpose.msra.mxu0 0.0
  %1546 = vmatprep.subr.mxu0 0.0
  %1547 = vmatpush1.xpose.msra.mxu0 %v1528
  %1548 = vmatprep.subr.mxu0 0.0
  %1549 = vmatpush1.xpose.msra.mxu0 %v1525
  %1550 = vmatprep.subr.mxu0 0.0
  %1551 = vmatpush1.xpose.msra.mxu0 %v1522
  %1552 = vmatprep.subr.mxu0 0.0
  %1553 = vmatpush1.xpose.msra.mxu0 %v1519
  %1554 = vmatprep.subr.mxu0 0.0
  %1555 = vmatpush1.xpose.msra.mxu0 %v1516
  %1556 = vmatprep.subr.mxu0 0.0
  %1557 = vmatpush1.xpose.msra.mxu0 %v1513
  %1558 = vmatprep.subr.mxu0 0.0
  %1559 = vmatpush1.xpose.msra.mxu0 %v1510
  %1560 = vmatprep.subr.mxu0 0.0
  %1561 = vmatpush1.xpose.msra.mxu0 %v1507
  %1562 = vmatprep.subr.mxu0 0.0
  %1563 = vmatpush2.xpose.msra.mxu0 0.0
  %1564 = vmatprep.subr.mxu0 0.0
  %1565 = vmatpush2.xpose.msra.mxu0 0.0
  %1566 = vmatprep.subr.mxu0 0.0
  %1567 = vmatpush2.xpose.msra.mxu0 0.0
  %1568 = vmatprep.subr.mxu0 0.0
  %1569 = vmatpush2.xpose.msra.mxu0 0.0
  %1570 = vmatprep.subr.mxu0 0.0
  %1571 = vmatpush2.xpose.msra.mxu0 0.0
  %1572 = vmatprep.subr.mxu0 0.0
  %1573 = vmatpush2.xpose.msra.mxu0 0.0
  %1574 = vmatprep.subr.mxu0 0.0
  %1575 = vmatpush2.xpose.msra.mxu0 0.0
  %1576 = vmatprep.subr.mxu0 0.0
  %1577 = vmatpush2.xpose.msra.mxu0 0.0
  %1578 = vmatprep.subr.mxu0 0.0
  %1579 = vmatpush2.xpose.msra.mxu0 0.0
  %1580 = vmatprep.subr.mxu0 0.0
  %1581 = vmatpush2.xpose.msra.mxu0 0.0
  %1582 = vmatprep.subr.mxu0 0.0
  %1583 = vmatpush2.xpose.msra.mxu0 0.0
  %1584 = vmatprep.subr.mxu0 0.0
  %1585 = vmatpush2.xpose.msra.mxu0 0.0
  %1586 = vmatprep.subr.mxu0 0.0
  %1587 = vmatpush2.xpose.msra.mxu0 0.0
  %1588 = vmatprep.subr.mxu0 0.0
  %1589 = vmatpush2.xpose.msra.mxu0 0.0
  %1590 = vmatprep.subr.mxu0 0.0
  %1591 = vmatpush2.xpose.msra.mxu0 0.0
  %1592 = vmatprep.subr.mxu0 0.0
  %1593 = vmatpush2.xpose.msra.mxu0 0.0
  %1594 = vmatprep.mubr.f32.mxu0 0.0
  %1595 = vmatmul.mubr.f32.gmra.mxu0 %v1495
  %v1596 = vpop.f32.mrf.mxu0
  %v1597 = vadd.f32 0.0, %v1596
  %v1598 = vpop.f32.mrf.mxu0
  %1599 = vmatprep.mubr.f32.mxu0 0.0
  %1600 = vmatmul.mubr.f32.gmra.mxu0 %v1498
  %v1601 = vpop.f32.mrf.mxu0
  %v1602 = vadd.f32 0.0, %v1601
  %v1603 = vpop.f32.mrf.mxu0
  %1604 = vmatprep.mubr.f32.mxu0 0.0
  %1605 = vmatmul.mubr.f32.gmra.mxu0 %v1501
  %v1606 = vpop.f32.mrf.mxu0
  %v1607 = vadd.f32 0.0, %v1606
  %v1608 = vpop.f32.mrf.mxu0
  %1609 = vmatprep.mubr.f32.mxu0 0.0
  %1610 = vmatmul.mubr.f32.gmra.mxu0 %v1504
  %v1611 = vpop.f32.mrf.mxu0
  %v1612 = vadd.f32 0.0, %v1611
  %v1613 = vpop.f32.mrf.mxu0
  %1614 = vdwg.mxu0
  %v1615 = vadd.f32 %v935, %v1597
  %v1616 = vadd.f32 %v936, %v1602
  %v1617 = vadd.f32 %v937, %v1607
  %v1618 = vadd.f32 %v938, %v1612
  %1620 = vset.pattern.permute.xlu0 0
  %1621 = vperm.xlu0 %1620, %v129
  %v1622 = vpop.permute.xlu0 %1621
  %1625 = vset.pattern.permute.xlu0 0
  %1626 = vperm.xlu0 %1625, %v130
  %v1627 = vpop.permute.xlu0 %1626
  %1630 = vset.pattern.permute.xlu0 0
  %1631 = vperm.xlu0 %1630, %v131
  %v1632 = vpop.permute.xlu0 %1631
  %1635 = vset.pattern.permute.xlu0 0
  %1636 = vperm.xlu0 %1635, %v132
  %v1637 = vpop.permute.xlu0 %1636
  %v1639 = vadd.f32 %v1615, %v1622
  %v1640 = vadd.f32 %v1616, %v1627
  %v1641 = vadd.f32 %v1617, %v1632
  %v1642 = vadd.f32 %v1618, %v1637
  %v1643 = vmax.f32 %v1639, 0.0
  %v1644 = vmax.f32 %v1640, 0.0
  %v1645 = vmax.f32 %v1641, 0.0
  %v1646 = vmax.f32 %v1642, 0.0
  %1648 = vset.pattern.permute.xlu0 0
  %1649 = vperm.xlu0 %1648, %v137
  %v1650 = vpop.permute.xlu0 %1649
  %1653 = vset.pattern.permute.xlu0 0
  %1654 = vperm.xlu0 %1653, %v138
  %v1655 = vpop.permute.xlu0 %1654
  %1658 = vset.pattern.permute.xlu0 0
  %1659 = vperm.xlu0 %1658, %v139
  %v1660 = vpop.permute.xlu0 %1659
  %1663 = vset.pattern.permute.xlu0 0
  %1664 = vperm.xlu0 %1663, %v140
  %v1665 = vpop.permute.xlu0 %1664
  %v1668 = vsel %vm298, %v133, 0
  %v1671 = vsel %vm298, %v134, 0
  %v1674 = vsel %vm298, %v135, 0
  %v1677 = vsel %vm298, %v136, 0
  %1679 = vmatprep.subr.mxu0 0.0
  %1680 = vmatpush1.msra.mxu0 0.0
  %1681 = vmatprep.subr.mxu0 0.0
  %1682 = vmatpush1.msra.mxu0 0.0
  %1683 = vmatprep.subr.mxu0 0.0
  %1684 = vmatpush1.msra.mxu0 0.0
  %1685 = vmatprep.subr.mxu0 0.0
  %1686 = vmatpush1.msra.mxu0 0.0
  %1687 = vmatprep.subr.mxu0 0.0
  %1688 = vmatpush1.msra.mxu0 0.0
  %1689 = vmatprep.subr.mxu0 0.0
  %1690 = vmatpush1.msra.mxu0 0.0
  %1691 = vmatprep.subr.mxu0 0.0
  %1692 = vmatpush1.msra.mxu0 0.0
  %1693 = vmatprep.subr.mxu0 0.0
  %1694 = vmatpush1.msra.mxu0 0.0
  %1695 = vmatprep.subr.mxu0 0.0
  %1696 = vmatpush1.msra.mxu0 0.0
  %1697 = vmatprep.subr.mxu0 0.0
  %1698 = vmatpush1.msra.mxu0 0.0
  %1699 = vmatprep.subr.mxu0 0.0
  %1700 = vmatpush1.msra.mxu0 0.0
  %1701 = vmatprep.subr.mxu0 0.0
  %1702 = vmatpush1.msra.mxu0 0.0
  %1703 = vmatprep.subr.mxu0 0.0
  %1704 = vmatpush1.msra.mxu0 %v1646
  %1705 = vmatprep.subr.mxu0 0.0
  %1706 = vmatpush1.msra.mxu0 %v1645
  %1707 = vmatprep.subr.mxu0 0.0
  %1708 = vmatpush1.msra.mxu0 %v1644
  %1709 = vmatprep.subr.mxu0 0.0
  %1710 = vmatpush1.msra.mxu0 %v1643
  %1711 = vmatprep.subr.mxu0 0.0
  %1712 = vmatpush2.msra.mxu0 0.0
  %1713 = vmatprep.subr.mxu0 0.0
  %1714 = vmatpush2.msra.mxu0 0.0
  %1715 = vmatprep.subr.mxu0 0.0
  %1716 = vmatpush2.msra.mxu0 0.0
  %1717 = vmatprep.subr.mxu0 0.0
  %1718 = vmatpush2.msra.mxu0 0.0
  %1719 = vmatprep.subr.mxu0 0.0
  %1720 = vmatpush2.msra.mxu0 0.0
  %1721 = vmatprep.subr.mxu0 0.0
  %1722 = vmatpush2.msra.mxu0 0.0
  %1723 = vmatprep.subr.mxu0 0.0
  %1724 = vmatpush2.msra.mxu0 0.0
  %1725 = vmatprep.subr.mxu0 0.0
  %1726 = vmatpush2.msra.mxu0 0.0
  %1727 = vmatprep.subr.mxu0 0.0
  %1728 = vmatpush2.msra.mxu0 0.0
  %1729 = vmatprep.subr.mxu0 0.0
  %1730 = vmatpush2.msra.mxu0 0.0
  %1731 = vmatprep.subr.mxu0 0.0
  %1732 = vmatpush2.msra.mxu0 0.0
  %1733 = vmatprep.subr.mxu0 0.0
  %1734 = vmatpush2.msra.mxu0 0.0
  %1735 = vmatprep.subr.mxu0 0.0
  %1736 = vmatpush2.msra.mxu0 0.0
  %1737 = vmatprep.subr.mxu0 0.0
  %1738 = vmatpush2.msra.mxu0 0.0
  %1739 = vmatprep.subr.mxu0 0.0
  %1740 = vmatpush2.msra.mxu0 0.0
  %1741 = vmatprep.subr.mxu0 0.0
  %1742 = vmatpush2.msra.mxu0 0.0
  %1743 = vmatprep.mubr.f32.mxu0 0.0
  %1744 = vmatmul.mubr.f32.gmra.mxu0 %v1668
  %v1745 = vpop.f32.mrf.mxu0
  %v1746 = vadd.f32 %v1650, %v1745
  %v1747 = vpop.f32.mrf.mxu0
  %1748 = vmatprep.mubr.f32.mxu0 0.0
  %1749 = vmatmul.mubr.f32.gmra.mxu0 %v1671
  %v1750 = vpop.f32.mrf.mxu0
  %v1751 = vadd.f32 %v1655, %v1750
  %v1752 = vpop.f32.mrf.mxu0
  %1753 = vmatprep.mubr.f32.mxu0 0.0
  %1754 = vmatmul.mubr.f32.gmra.mxu0 %v1674
  %v1755 = vpop.f32.mrf.mxu0
  %v1756 = vadd.f32 %v1660, %v1755
  %v1757 = vpop.f32.mrf.mxu0
  %1758 = vmatprep.mubr.f32.mxu0 0.0
  %1759 = vmatmul.mubr.f32.gmra.mxu0 %v1677
  %v1760 = vpop.f32.mrf.mxu0
  %v1761 = vadd.f32 %v1665, %v1760
  %v1762 = vpop.f32.mrf.mxu0
  %1763 = vdwg.mxu0
  %v1764 = vmax.f32 %v1746, 0.0
  %v1765 = vmax.f32 %v1751, 0.0
  %v1766 = vmax.f32 %v1756, 0.0
  %v1767 = vmax.f32 %v1761, 0.0
  %1768 = vxpose.xlu0.b32.start [1/16] %v1764, 128
  %1769 = vxpose.xlu0.b32.cont [2/16] %v1765, 128
  %1770 = vxpose.xlu0.b32.cont [3/16] %v1766, 128
  %1771 = vxpose.xlu0.b32.cont [4/16] %v1767, 128
  %1772 = vxpose.xlu0.b32.cont [5/16] 0.0, 128
  %1773 = vxpose.xlu0.b32.cont [6/16] 0.0, 128
  %1774 = vxpose.xlu0.b32.cont [7/16] 0.0, 128
  %1775 = vxpose.xlu0.b32.cont [8/16] 0.0, 128
  %1776 = vxpose.xlu0.b32.cont [9/16] 0.0, 128
  %1777 = vxpose.xlu0.b32.cont [10/16] 0.0, 128
  %1778 = vxpose.xlu0.b32.cont [11/16] 0.0, 128
  %1779 = vxpose.xlu0.b32.cont [12/16] 0.0, 128
  %1780 = vxpose.xlu0.b32.cont [13/16] 0.0, 128
  %1781 = vxpose.xlu0.b32.cont [14/16] 0.0, 128
  %1782 = vxpose.xlu0.b32.cont [15/16] 0.0, 128
  %1783 = vxpose.xlu0.b32.end [16/16] 0.0, 128
  %v1784 = vpop.trf.xlu0
  %v1785 = vpop.trf.xlu0
  %v1786 = vpop.trf.xlu0
  %v1787 = vpop.trf.xlu0
  %v1788 = vpop.trf.xlu0
  %v1789 = vpop.trf.xlu0
  %v1790 = vpop.trf.xlu0
  %v1791 = vpop.trf.xlu0
  %v1792 = vpop.trf.xlu0
  %v1793 = vpop.trf.xlu0
  %v1794 = vpop.trf.xlu0
  %v1795 = vpop.trf.xlu0
  %v1796 = vpop.trf.xlu0
  %v1797 = vpop.trf.xlu0
  %v1798 = vpop.trf.xlu0
  %v1799 = vpop.trf.xlu0
  %v1800 = vsel %vm298, %v1784, -inf
  %v1801 = vsel %vm298, %v1785, -inf
  %v1802 = vsel %vm298, %v1786, -inf
  %v1803 = vsel %vm298, %v1787, -inf
  %v1804 = vmax.f32 %v1800, %v1801
  %v1805 = vmax.f32 %v1802, %v1803
  %v1806 = vmax.f32 %v1804, %v1805
  %v1807 = vrot.slane %v1806, 4
  %v1808 = vmax.f32 %v1806, %v1807
  %v1809 = vrot.slane %v1808, 2
  %v1810 = vmax.f32 %v1808, %v1809
  %v1811 = vrot.slane %v1810, 1
  %v1812 = vmax.f32 %v1810, %v1811
  %v1813 = vsel %vm298, %v1788, -inf
  %v1814 = vsel %vm298, %v1789, -inf
  %v1815 = vsel %vm298, %v1790, -inf
  %v1816 = vsel %vm298, %v1791, -inf
  %v1817 = vmax.f32 %v1813, %v1814
  %v1818 = vmax.f32 %v1815, %v1816
  %v1819 = vmax.f32 %v1817, %v1818
  %v1820 = vrot.slane %v1819, 4
  %v1821 = vmax.f32 %v1819, %v1820
  %v1822 = vrot.slane %v1821, 2
  %v1823 = vmax.f32 %v1821, %v1822
  %v1824 = vrot.slane %v1823, 1
  %v1825 = vmax.f32 %v1823, %v1824
  %v1826 = vsel %vm474, %v1812, %v1825
  %v1827 = vld [vmem:[%s1] sm:$0x77]
  %v1828 = vld [vmem:[%s2] sm:$0x77]
  %v1830 = vcombine.high %v1827, %v1827
  %v1833 = vcombine.high %v1828, %v1828
  %s1835 = scalar_lea.vmem %s1, 8
  %v1836 = vld [vmem:[%s1835] sm:$0x77]
  %s1837 = scalar_lea.vmem %s2, 8
  %v1838 = vld [vmem:[%s1837] sm:$0x77]
  %v1840 = vcombine.high %v1836, %v1836
  %v1843 = vcombine.high %v1838, %v1838
  %1846 = vset.pattern.permute.xlu0 0
  %1847 = vperm.xlu0 %1846, %v141
  %v1848 = vpop.permute.xlu0 %1847
  %1851 = vset.pattern.permute.xlu0 0
  %1852 = vperm.xlu0 %1851, %v142
  %v1853 = vpop.permute.xlu0 %1852
  %1856 = vset.pattern.permute.xlu0 0
  %1857 = vperm.xlu0 %1856, %v143
  %v1858 = vpop.permute.xlu0 %1857
  %1861 = vset.pattern.permute.xlu0 0
  %1862 = vperm.xlu0 %1861, %v144
  %v1863 = vpop.permute.xlu0 %1862
  %v1865 = vlaneseq
  %v1866 = vshrl.u32 %v1865, 7
  %v1867 = vsub.s32 0, %v1866
  %v1868 = vrot.slane %v1827, %v1867
  %v1869 = vlaneseq
  %v1870 = vshrl.u32 %v1869, 7
  %v1871 = vsub.s32 0, %v1870
  %v1872 = vrot.slane %v1830, %v1871
  %v1873 = vlaneseq
  %v1874 = vshrl.u32 %v1873, 7
  %v1875 = vsub.s32 0, %v1874
  %v1876 = vrot.slane %v1828, %v1875
  %v1877 = vlaneseq
  %v1878 = vshrl.u32 %v1877, 7
  %v1879 = vsub.s32 0, %v1878
  %v1880 = vrot.slane %v1833, %v1879
  %v1881 = vlaneseq
  %v1882 = vshrl.u32 %v1881, 7
  %v1883 = vsub.s32 0, %v1882
  %v1884 = vrot.slane %v1836, %v1883
  %v1885 = vlaneseq
  %v1886 = vshrl.u32 %v1885, 7
  %v1887 = vsub.s32 0, %v1886
  %v1888 = vrot.slane %v1840, %v1887
  %v1889 = vlaneseq
  %v1890 = vshrl.u32 %v1889, 7
  %v1891 = vsub.s32 0, %v1890
  %v1892 = vrot.slane %v1838, %v1891
  %v1893 = vlaneseq
  %v1894 = vshrl.u32 %v1893, 7
  %v1895 = vsub.s32 0, %v1894
  %v1896 = vrot.slane %v1843, %v1895
  %v1897 = vmul.f32 %v1848, %v1868
  %v1898 = vmul.f32 %v1848, %v1872
  %v1899 = vmul.f32 %v1848, %v1876
  %v1900 = vmul.f32 %v1848, %v1880
  %v1901 = vmul.f32 %v1848, %v1884
  %v1902 = vmul.f32 %v1848, %v1888
  %v1903 = vmul.f32 %v1848, %v1892
  %v1904 = vmul.f32 %v1848, %v1896
  %v1905 = vmul.f32 %v1853, %v1868
  %v1906 = vmul.f32 %v1853, %v1872
  %v1907 = vmul.f32 %v1853, %v1876
  %v1908 = vmul.f32 %v1853, %v1880
  %v1909 = vmul.f32 %v1853, %v1884
  %v1910 = vmul.f32 %v1853, %v1888
  %v1911 = vmul.f32 %v1853, %v1892
  %v1912 = vmul.f32 %v1853, %v1896
  %v1913 = vmul.f32 %v1858, %v1868
  %v1914 = vmul.f32 %v1858, %v1872
  %v1915 = vmul.f32 %v1858, %v1876
  %v1916 = vmul.f32 %v1858, %v1880
  %v1917 = vmul.f32 %v1858, %v1884
  %v1918 = vmul.f32 %v1858, %v1888
  %v1919 = vmul.f32 %v1858, %v1892
  %v1920 = vmul.f32 %v1858, %v1896
  %v1921 = vmul.f32 %v1863, %v1868
  %v1922 = vmul.f32 %v1863, %v1872
  %v1923 = vmul.f32 %v1863, %v1876
  %v1924 = vmul.f32 %v1863, %v1880
  %v1925 = vmul.f32 %v1863, %v1884
  %v1926 = vmul.f32 %v1863, %v1888
  %v1927 = vmul.f32 %v1863, %v1892
  %v1928 = vmul.f32 %v1863, %v1896
  %1929 = vset.pattern.permute.xlu0 1
  %1930 = vperm.xlu0 %1929, %v141
  %v1931 = vpop.permute.xlu0 %1930
  %1933 = vset.pattern.permute.xlu0 1
  %1934 = vperm.xlu0 %1933, %v142
  %v1935 = vpop.permute.xlu0 %1934
  %1937 = vset.pattern.permute.xlu0 1
  %1938 = vperm.xlu0 %1937, %v143
  %v1939 = vpop.permute.xlu0 %1938
  %1941 = vset.pattern.permute.xlu0 1
  %1942 = vperm.xlu0 %1941, %v144
  %v1943 = vpop.permute.xlu0 %1942
  %v1945 = vlaneseq
  %v1946 = vshrl.u32 %v1945, 7
  %v1947 = vsub.s32 1, %v1946
  %v1948 = vrot.slane %v1827, %v1947
  %v1949 = vlaneseq
  %v1950 = vshrl.u32 %v1949, 7
  %v1951 = vsub.s32 1, %v1950
  %v1952 = vrot.slane %v1830, %v1951
  %v1953 = vlaneseq
  %v1954 = vshrl.u32 %v1953, 7
  %v1955 = vsub.s32 1, %v1954
  %v1956 = vrot.slane %v1828, %v1955
  %v1957 = vlaneseq
  %v1958 = vshrl.u32 %v1957, 7
  %v1959 = vsub.s32 1, %v1958
  %v1960 = vrot.slane %v1833, %v1959
  %v1961 = vlaneseq
  %v1962 = vshrl.u32 %v1961, 7
  %v1963 = vsub.s32 1, %v1962
  %v1964 = vrot.slane %v1836, %v1963
  %v1965 = vlaneseq
  %v1966 = vshrl.u32 %v1965, 7
  %v1967 = vsub.s32 1, %v1966
  %v1968 = vrot.slane %v1840, %v1967
  %v1969 = vlaneseq
  %v1970 = vshrl.u32 %v1969, 7
  %v1971 = vsub.s32 1, %v1970
  %v1972 = vrot.slane %v1838, %v1971
  %v1973 = vlaneseq
  %v1974 = vshrl.u32 %v1973, 7
  %v1975 = vsub.s32 1, %v1974
  %v1976 = vrot.slane %v1843, %v1975
  %v1977 = vmul.f32 %v1931, %v1948
  %v1978 = vmul.f32 %v1931, %v1952
  %v1979 = vmul.f32 %v1931, %v1956
  %v1980 = vmul.f32 %v1931, %v1960
  %v1981 = vmul.f32 %v1931, %v1964
  %v1982 = vmul.f32 %v1931, %v1968
  %v1983 = vmul.f32 %v1931, %v1972
  %v1984 = vmul.f32 %v1931, %v1976
  %v1985 = vmul.f32 %v1935, %v1948
  %v1986 = vmul.f32 %v1935, %v1952
  %v1987 = vmul.f32 %v1935, %v1956
  %v1988 = vmul.f32 %v1935, %v1960
  %v1989 = vmul.f32 %v1935, %v1964
  %v1990 = vmul.f32 %v1935, %v1968
  %v1991 = vmul.f32 %v1935, %v1972
  %v1992 = vmul.f32 %v1935, %v1976
  %v1993 = vmul.f32 %v1939, %v1948
  %v1994 = vmul.f32 %v1939, %v1952
  %v1995 = vmul.f32 %v1939, %v1956
  %v1996 = vmul.f32 %v1939, %v1960
  %v1997 = vmul.f32 %v1939, %v1964
  %v1998 = vmul.f32 %v1939, %v1968
  %v1999 = vmul.f32 %v1939, %v1972
  %v2000 = vmul.f32 %v1939, %v1976
  %v2001 = vmul.f32 %v1943, %v1948
  %v2002 = vmul.f32 %v1943, %v1952
  %v2003 = vmul.f32 %v1943, %v1956
  %v2004 = vmul.f32 %v1943, %v1960
  %v2005 = vmul.f32 %v1943, %v1964
  %v2006 = vmul.f32 %v1943, %v1968
  %v2007 = vmul.f32 %v1943, %v1972
  %v2008 = vmul.f32 %v1943, %v1976
  %v2009 = vadd.f32 %v1897, %v1977
  %v2010 = vadd.f32 %v1898, %v1978
  %v2011 = vadd.f32 %v1899, %v1979
  %v2012 = vadd.f32 %v1900, %v1980
  %v2013 = vadd.f32 %v1901, %v1981
  %v2014 = vadd.f32 %v1902, %v1982
  %v2015 = vadd.f32 %v1903, %v1983
  %v2016 = vadd.f32 %v1904, %v1984
  %v2017 = vadd.f32 %v1905, %v1985
  %v2018 = vadd.f32 %v1906, %v1986
  %v2019 = vadd.f32 %v1907, %v1987
  %v2020 = vadd.f32 %v1908, %v1988
  %v2021 = vadd.f32 %v1909, %v1989
  %v2022 = vadd.f32 %v1910, %v1990
  %v2023 = vadd.f32 %v1911, %v1991
  %v2024 = vadd.f32 %v1912, %v1992
  %v2025 = vadd.f32 %v1913, %v1993
  %v2026 = vadd.f32 %v1914, %v1994
  %v2027 = vadd.f32 %v1915, %v1995
  %v2028 = vadd.f32 %v1916, %v1996
  %v2029 = vadd.f32 %v1917, %v1997
  %v2030 = vadd.f32 %v1918, %v1998
  %v2031 = vadd.f32 %v1919, %v1999
  %v2032 = vadd.f32 %v1920, %v2000
  %v2033 = vadd.f32 %v1921, %v2001
  %v2034 = vadd.f32 %v1922, %v2002
  %v2035 = vadd.f32 %v1923, %v2003
  %v2036 = vadd.f32 %v1924, %v2004
  %v2037 = vadd.f32 %v1925, %v2005
  %v2038 = vadd.f32 %v1926, %v2006
  %v2039 = vadd.f32 %v1927, %v2007
  %v2040 = vadd.f32 %v1928, %v2008
  %2041 = vset.pattern.permute.xlu0 2
  %2042 = vperm.xlu0 %2041, %v141
  %v2043 = vpop.permute.xlu0 %2042
  %2045 = vset.pattern.permute.xlu0 2
  %2046 = vperm.xlu0 %2045, %v142
  %v2047 = vpop.permute.xlu0 %2046
  %2049 = vset.pattern.permute.xlu0 2
  %2050 = vperm.xlu0 %2049, %v143
  %v2051 = vpop.permute.xlu0 %2050
  %2053 = vset.pattern.permute.xlu0 2
  %2054 = vperm.xlu0 %2053, %v144
  %v2055 = vpop.permute.xlu0 %2054
  %v2057 = vlaneseq
  %v2058 = vshrl.u32 %v2057, 7
  %v2059 = vsub.s32 2, %v2058
  %v2060 = vrot.slane %v1827, %v2059
  %v2061 = vlaneseq
  %v2062 = vshrl.u32 %v2061, 7
  %v2063 = vsub.s32 2, %v2062
  %v2064 = vrot.slane %v1830, %v2063
  %v2065 = vlaneseq
  %v2066 = vshrl.u32 %v2065, 7
  %v2067 = vsub.s32 2, %v2066
  %v2068 = vrot.slane %v1828, %v2067
  %v2069 = vlaneseq
  %v2070 = vshrl.u32 %v2069, 7
  %v2071 = vsub.s32 2, %v2070
  %v2072 = vrot.slane %v1833, %v2071
  %v2073 = vlaneseq
  %v2074 = vshrl.u32 %v2073, 7
  %v2075 = vsub.s32 2, %v2074
  %v2076 = vrot.slane %v1836, %v2075
  %v2077 = vlaneseq
  %v2078 = vshrl.u32 %v2077, 7
  %v2079 = vsub.s32 2, %v2078
  %v2080 = vrot.slane %v1840, %v2079
  %v2081 = vlaneseq
  %v2082 = vshrl.u32 %v2081, 7
  %v2083 = vsub.s32 2, %v2082
  %v2084 = vrot.slane %v1838, %v2083
  %v2085 = vlaneseq
  %v2086 = vshrl.u32 %v2085, 7
  %v2087 = vsub.s32 2, %v2086
  %v2088 = vrot.slane %v1843, %v2087
  %v2089 = vmul.f32 %v2043, %v2060
  %v2090 = vmul.f32 %v2043, %v2064
  %v2091 = vmul.f32 %v2043, %v2068
  %v2092 = vmul.f32 %v2043, %v2072
  %v2093 = vmul.f32 %v2043, %v2076
  %v2094 = vmul.f32 %v2043, %v2080
  %v2095 = vmul.f32 %v2043, %v2084
  %v2096 = vmul.f32 %v2043, %v2088
  %v2097 = vmul.f32 %v2047, %v2060
  %v2098 = vmul.f32 %v2047, %v2064
  %v2099 = vmul.f32 %v2047, %v2068
  %v2100 = vmul.f32 %v2047, %v2072
  %v2101 = vmul.f32 %v2047, %v2076
  %v2102 = vmul.f32 %v2047, %v2080
  %v2103 = vmul.f32 %v2047, %v2084
  %v2104 = vmul.f32 %v2047, %v2088
  %v2105 = vmul.f32 %v2051, %v2060
  %v2106 = vmul.f32 %v2051, %v2064
  %v2107 = vmul.f32 %v2051, %v2068
  %v2108 = vmul.f32 %v2051, %v2072
  %v2109 = vmul.f32 %v2051, %v2076
  %v2110 = vmul.f32 %v2051, %v2080
  %v2111 = vmul.f32 %v2051, %v2084
  %v2112 = vmul.f32 %v2051, %v2088
  %v2113 = vmul.f32 %v2055, %v2060
  %v2114 = vmul.f32 %v2055, %v2064
  %v2115 = vmul.f32 %v2055, %v2068
  %v2116 = vmul.f32 %v2055, %v2072
  %v2117 = vmul.f32 %v2055, %v2076
  %v2118 = vmul.f32 %v2055, %v2080
  %v2119 = vmul.f32 %v2055, %v2084
  %v2120 = vmul.f32 %v2055, %v2088
  %v2121 = vadd.f32 %v2009, %v2089
  %v2122 = vadd.f32 %v2010, %v2090
  %v2123 = vadd.f32 %v2011, %v2091
  %v2124 = vadd.f32 %v2012, %v2092
  %v2125 = vadd.f32 %v2013, %v2093
  %v2126 = vadd.f32 %v2014, %v2094
  %v2127 = vadd.f32 %v2015, %v2095
  %v2128 = vadd.f32 %v2016, %v2096
  %v2129 = vadd.f32 %v2017, %v2097
  %v2130 = vadd.f32 %v2018, %v2098
  %v2131 = vadd.f32 %v2019, %v2099
  %v2132 = vadd.f32 %v2020, %v2100
  %v2133 = vadd.f32 %v2021, %v2101
  %v2134 = vadd.f32 %v2022, %v2102
  %v2135 = vadd.f32 %v2023, %v2103
  %v2136 = vadd.f32 %v2024, %v2104
  %v2137 = vadd.f32 %v2025, %v2105
  %v2138 = vadd.f32 %v2026, %v2106
  %v2139 = vadd.f32 %v2027, %v2107
  %v2140 = vadd.f32 %v2028, %v2108
  %v2141 = vadd.f32 %v2029, %v2109
  %v2142 = vadd.f32 %v2030, %v2110
  %v2143 = vadd.f32 %v2031, %v2111
  %v2144 = vadd.f32 %v2032, %v2112
  %v2145 = vadd.f32 %v2033, %v2113
  %v2146 = vadd.f32 %v2034, %v2114
  %v2147 = vadd.f32 %v2035, %v2115
  %v2148 = vadd.f32 %v2036, %v2116
  %v2149 = vadd.f32 %v2037, %v2117
  %v2150 = vadd.f32 %v2038, %v2118
  %v2151 = vadd.f32 %v2039, %v2119
  %v2152 = vadd.f32 %v2040, %v2120
  %2154 = vset.pattern.permute.xlu0 0
  %2155 = vperm.xlu0 %2154, %v145
  %v2156 = vpop.permute.xlu0 %2155
  %2159 = vset.pattern.permute.xlu0 0
  %2160 = vperm.xlu0 %2159, %v146
  %v2161 = vpop.permute.xlu0 %2160
  %2164 = vset.pattern.permute.xlu0 0
  %2165 = vperm.xlu0 %2164, %v147
  %v2166 = vpop.permute.xlu0 %2165
  %2169 = vset.pattern.permute.xlu0 0
  %2170 = vperm.xlu0 %2169, %v148
  %v2171 = vpop.permute.xlu0 %2170
  %v2173 = vadd.f32 %v2121, %v2156
  %v2174 = vadd.f32 %v2122, %v2156
  %v2175 = vadd.f32 %v2123, %v2156
  %v2176 = vadd.f32 %v2124, %v2156
  %v2177 = vadd.f32 %v2125, %v2156
  %v2178 = vadd.f32 %v2126, %v2156
  %v2179 = vadd.f32 %v2127, %v2156
  %v2180 = vadd.f32 %v2128, %v2156
  %v2181 = vadd.f32 %v2129, %v2161
  %v2182 = vadd.f32 %v2130, %v2161
  %v2183 = vadd.f32 %v2131, %v2161
  %v2184 = vadd.f32 %v2132, %v2161
  %v2185 = vadd.f32 %v2133, %v2161
  %v2186 = vadd.f32 %v2134, %v2161
  %v2187 = vadd.f32 %v2135, %v2161
  %v2188 = vadd.f32 %v2136, %v2161
  %v2189 = vadd.f32 %v2137, %v2166
  %v2190 = vadd.f32 %v2138, %v2166
  %v2191 = vadd.f32 %v2139, %v2166
  %v2192 = vadd.f32 %v2140, %v2166
  %v2193 = vadd.f32 %v2141, %v2166
  %v2194 = vadd.f32 %v2142, %v2166
  %v2195 = vadd.f32 %v2143, %v2166
  %v2196 = vadd.f32 %v2144, %v2166
  %v2197 = vadd.f32 %v2145, %v2171
  %v2198 = vadd.f32 %v2146, %v2171
  %v2199 = vadd.f32 %v2147, %v2171
  %v2200 = vadd.f32 %v2148, %v2171
  %v2201 = vadd.f32 %v2149, %v2171
  %v2202 = vadd.f32 %v2150, %v2171
  %v2203 = vadd.f32 %v2151, %v2171
  %v2204 = vadd.f32 %v2152, %v2171
  %v2205 = vmax.f32 %v2173, 0.0
  %v2206 = vmax.f32 %v2174, 0.0
  %v2207 = vmax.f32 %v2175, 0.0
  %v2208 = vmax.f32 %v2176, 0.0
  %v2209 = vmax.f32 %v2177, 0.0
  %v2210 = vmax.f32 %v2178, 0.0
  %v2211 = vmax.f32 %v2179, 0.0
  %v2212 = vmax.f32 %v2180, 0.0
  %v2213 = vmax.f32 %v2181, 0.0
  %v2214 = vmax.f32 %v2182, 0.0
  %v2215 = vmax.f32 %v2183, 0.0
  %v2216 = vmax.f32 %v2184, 0.0
  %v2217 = vmax.f32 %v2185, 0.0
  %v2218 = vmax.f32 %v2186, 0.0
  %v2219 = vmax.f32 %v2187, 0.0
  %v2220 = vmax.f32 %v2188, 0.0
  %v2221 = vmax.f32 %v2189, 0.0
  %v2222 = vmax.f32 %v2190, 0.0
  %v2223 = vmax.f32 %v2191, 0.0
  %v2224 = vmax.f32 %v2192, 0.0
  %v2225 = vmax.f32 %v2193, 0.0
  %v2226 = vmax.f32 %v2194, 0.0
  %v2227 = vmax.f32 %v2195, 0.0
  %v2228 = vmax.f32 %v2196, 0.0
  %v2229 = vmax.f32 %v2197, 0.0
  %v2230 = vmax.f32 %v2198, 0.0
  %v2231 = vmax.f32 %v2199, 0.0
  %v2232 = vmax.f32 %v2200, 0.0
  %v2233 = vmax.f32 %v2201, 0.0
  %v2234 = vmax.f32 %v2202, 0.0
  %v2235 = vmax.f32 %v2203, 0.0
  %v2236 = vmax.f32 %v2204, 0.0
  %2238 = vset.pattern.permute.xlu0 0
  %2239 = vperm.xlu0 %2238, %v153
  %v2240 = vpop.permute.xlu0 %2239
  %2243 = vset.pattern.permute.xlu0 0
  %2244 = vperm.xlu0 %2243, %v154
  %v2245 = vpop.permute.xlu0 %2244
  %2248 = vset.pattern.permute.xlu0 0
  %2249 = vperm.xlu0 %2248, %v155
  %v2250 = vpop.permute.xlu0 %2249
  %2253 = vset.pattern.permute.xlu0 0
  %2254 = vperm.xlu0 %2253, %v156
  %v2255 = vpop.permute.xlu0 %2254
  %v2258 = vsel %vm298, %v149, 0
  %v2261 = vsel %vm298, %v150, 0
  %v2264 = vsel %vm298, %v151, 0
  %v2267 = vsel %vm298, %v152, 0
  %2269 = vmatprep.subr.mxu0 0.0
  %2270 = vmatpush1.msra.mxu0 0.0
  %2271 = vmatprep.subr.mxu0 0.0
  %2272 = vmatpush1.msra.mxu0 0.0
  %2273 = vmatprep.subr.mxu0 0.0
  %2274 = vmatpush1.msra.mxu0 0.0
  %2275 = vmatprep.subr.mxu0 0.0
  %2276 = vmatpush1.msra.mxu0 0.0
  %2277 = vmatprep.subr.mxu0 0.0
  %2278 = vmatpush1.msra.mxu0 0.0
  %2279 = vmatprep.subr.mxu0 0.0
  %2280 = vmatpush1.msra.mxu0 0.0
  %2281 = vmatprep.subr.mxu0 0.0
  %2282 = vmatpush1.msra.mxu0 0.0
  %2283 = vmatprep.subr.mxu0 0.0
  %2284 = vmatpush1.msra.mxu0 0.0
  %2285 = vmatprep.subr.mxu0 0.0
  %2286 = vmatpush1.msra.mxu0 0.0
  %2287 = vmatprep.subr.mxu0 0.0
  %2288 = vmatpush1.msra.mxu0 0.0
  %2289 = vmatprep.subr.mxu0 0.0
  %2290 = vmatpush1.msra.mxu0 0.0
  %2291 = vmatprep.subr.mxu0 0.0
  %2292 = vmatpush1.msra.mxu0 0.0
  %2293 = vmatprep.subr.mxu0 %v2230
  %2294 = vmatpush1.msra.mxu0 %v2229
  %2295 = vmatprep.subr.mxu0 %v2222
  %2296 = vmatpush1.msra.mxu0 %v2221
  %2297 = vmatprep.subr.mxu0 %v2214
  %2298 = vmatpush1.msra.mxu0 %v2213
  %2299 = vmatprep.subr.mxu0 %v2206
  %2300 = vmatpush1.msra.mxu0 %v2205
  %2301 = vmatprep.subr.mxu0 0.0
  %2302 = vmatpush2.msra.mxu0 0.0
  %2303 = vmatprep.subr.mxu0 0.0
  %2304 = vmatpush2.msra.mxu0 0.0
  %2305 = vmatprep.subr.mxu0 0.0
  %2306 = vmatpush2.msra.mxu0 0.0
  %2307 = vmatprep.subr.mxu0 0.0
  %2308 = vmatpush2.msra.mxu0 0.0
  %2309 = vmatprep.subr.mxu0 0.0
  %2310 = vmatpush2.msra.mxu0 0.0
  %2311 = vmatprep.subr.mxu0 0.0
  %2312 = vmatpush2.msra.mxu0 0.0
  %2313 = vmatprep.subr.mxu0 0.0
  %2314 = vmatpush2.msra.mxu0 0.0
  %2315 = vmatprep.subr.mxu0 0.0
  %2316 = vmatpush2.msra.mxu0 0.0
  %2317 = vmatprep.subr.mxu0 0.0
  %2318 = vmatpush2.msra.mxu0 0.0
  %2319 = vmatprep.subr.mxu0 0.0
  %2320 = vmatpush2.msra.mxu0 0.0
  %2321 = vmatprep.subr.mxu0 0.0
  %2322 = vmatpush2.msra.mxu0 0.0
  %2323 = vmatprep.subr.mxu0 0.0
  %2324 = vmatpush2.msra.mxu0 0.0
  %2325 = vmatprep.subr.mxu0 0.0
  %2326 = vmatpush2.msra.mxu0 0.0
  %2327 = vmatprep.subr.mxu0 0.0
  %2328 = vmatpush2.msra.mxu0 0.0
  %2329 = vmatprep.subr.mxu0 0.0
  %2330 = vmatpush2.msra.mxu0 0.0
  %2331 = vmatprep.subr.mxu0 0.0
  %2332 = vmatpush2.msra.mxu0 0.0
  %2333 = vmatprep.mubr.f32.mxu0 0.0
  %2334 = vmatmul.mubr.f32.gmra.mxu0 %v2258
  %v2335 = vpop.f32.mrf.mxu0
  %v2336 = vadd.f32 %v2240, %v2335
  %v2337 = vpop.f32.mrf.mxu0
  %v2338 = vadd.f32 %v2240, %v2337
  %2339 = vmatprep.mubr.f32.mxu0 0.0
  %2340 = vmatmul.mubr.f32.gmra.mxu0 %v2261
  %v2341 = vpop.f32.mrf.mxu0
  %v2342 = vadd.f32 %v2245, %v2341
  %v2343 = vpop.f32.mrf.mxu0
  %v2344 = vadd.f32 %v2245, %v2343
  %2345 = vmatprep.mubr.f32.mxu0 0.0
  %2346 = vmatmul.mubr.f32.gmra.mxu0 %v2264
  %v2347 = vpop.f32.mrf.mxu0
  %v2348 = vadd.f32 %v2250, %v2347
  %v2349 = vpop.f32.mrf.mxu0
  %v2350 = vadd.f32 %v2250, %v2349
  %2351 = vmatprep.mubr.f32.mxu0 0.0
  %2352 = vmatmul.mubr.f32.gmra.mxu0 %v2267
  %v2353 = vpop.f32.mrf.mxu0
  %v2354 = vadd.f32 %v2255, %v2353
  %v2355 = vpop.f32.mrf.mxu0
  %v2356 = vadd.f32 %v2255, %v2355
  %2357 = vdwg.mxu0
  %2358 = vmatprep.subr.mxu0 0.0
  %2359 = vmatpush1.msra.mxu0 0.0
  %2360 = vmatprep.subr.mxu0 0.0
  %2361 = vmatpush1.msra.mxu0 0.0
  %2362 = vmatprep.subr.mxu0 0.0
  %2363 = vmatpush1.msra.mxu0 0.0
  %2364 = vmatprep.subr.mxu0 0.0
  %2365 = vmatpush1.msra.mxu0 0.0
  %2366 = vmatprep.subr.mxu0 0.0
  %2367 = vmatpush1.msra.mxu0 0.0
  %2368 = vmatprep.subr.mxu0 0.0
  %2369 = vmatpush1.msra.mxu0 0.0
  %2370 = vmatprep.subr.mxu0 0.0
  %2371 = vmatpush1.msra.mxu0 0.0
  %2372 = vmatprep.subr.mxu0 0.0
  %2373 = vmatpush1.msra.mxu0 0.0
  %2374 = vmatprep.subr.mxu0 0.0
  %2375 = vmatpush1.msra.mxu0 0.0
  %2376 = vmatprep.subr.mxu0 0.0
  %2377 = vmatpush1.msra.mxu0 0.0
  %2378 = vmatprep.subr.mxu0 0.0
  %2379 = vmatpush1.msra.mxu0 0.0
  %2380 = vmatprep.subr.mxu0 0.0
  %2381 = vmatpush1.msra.mxu0 0.0
  %2382 = vmatprep.subr.mxu0 %v2232
  %2383 = vmatpush1.msra.mxu0 %v2231
  %2384 = vmatprep.subr.mxu0 %v2224
  %2385 = vmatpush1.msra.mxu0 %v2223
  %2386 = vmatprep.subr.mxu0 %v2216
  %2387 = vmatpush1.msra.mxu0 %v2215
  %2388 = vmatprep.subr.mxu0 %v2208
  %2389 = vmatpush1.msra.mxu0 %v2207
  %2390 = vmatprep.subr.mxu0 0.0
  %2391 = vmatpush2.msra.mxu0 0.0
  %2392 = vmatprep.subr.mxu0 0.0
  %2393 = vmatpush2.msra.mxu0 0.0
  %2394 = vmatprep.subr.mxu0 0.0
  %2395 = vmatpush2.msra.mxu0 0.0
  %2396 = vmatprep.subr.mxu0 0.0
  %2397 = vmatpush2.msra.mxu0 0.0
  %2398 = vmatprep.subr.mxu0 0.0
  %2399 = vmatpush2.msra.mxu0 0.0
  %2400 = vmatprep.subr.mxu0 0.0
  %2401 = vmatpush2.msra.mxu0 0.0
  %2402 = vmatprep.subr.mxu0 0.0
  %2403 = vmatpush2.msra.mxu0 0.0
  %2404 = vmatprep.subr.mxu0 0.0
  %2405 = vmatpush2.msra.mxu0 0.0
  %2406 = vmatprep.subr.mxu0 0.0
  %2407 = vmatpush2.msra.mxu0 0.0
  %2408 = vmatprep.subr.mxu0 0.0
  %2409 = vmatpush2.msra.mxu0 0.0
  %2410 = vmatprep.subr.mxu0 0.0
  %2411 = vmatpush2.msra.mxu0 0.0
  %2412 = vmatprep.subr.mxu0 0.0
  %2413 = vmatpush2.msra.mxu0 0.0
  %2414 = vmatprep.subr.mxu0 0.0
  %2415 = vmatpush2.msra.mxu0 0.0
  %2416 = vmatprep.subr.mxu0 0.0
  %2417 = vmatpush2.msra.mxu0 0.0
  %2418 = vmatprep.subr.mxu0 0.0
  %2419 = vmatpush2.msra.mxu0 0.0
  %2420 = vmatprep.subr.mxu0 0.0
  %2421 = vmatpush2.msra.mxu0 0.0
  %2422 = vmatprep.mubr.f32.mxu0 0.0
  %2423 = vmatmul.mubr.f32.gmra.mxu0 %v2258
  %v2424 = vpop.f32.mrf.mxu0
  %v2425 = vadd.f32 %v2240, %v2424
  %v2426 = vpop.f32.mrf.mxu0
  %v2427 = vadd.f32 %v2240, %v2426
  %2428 = vmatprep.mubr.f32.mxu0 0.0
  %2429 = vmatmul.mubr.f32.gmra.mxu0 %v2261
  %v2430 = vpop.f32.mrf.mxu0
  %v2431 = vadd.f32 %v2245, %v2430
  %v2432 = vpop.f32.mrf.mxu0
  %v2433 = vadd.f32 %v2245, %v2432
  %2434 = vmatprep.mubr.f32.mxu0 0.0
  %2435 = vmatmul.mubr.f32.gmra.mxu0 %v2264
  %v2436 = vpop.f32.mrf.mxu0
  %v2437 = vadd.f32 %v2250, %v2436
  %v2438 = vpop.f32.mrf.mxu0
  %v2439 = vadd.f32 %v2250, %v2438
  %2440 = vmatprep.mubr.f32.mxu0 0.0
  %2441 = vmatmul.mubr.f32.gmra.mxu0 %v2267
  %v2442 = vpop.f32.mrf.mxu0
  %v2443 = vadd.f32 %v2255, %v2442
  %v2444 = vpop.f32.mrf.mxu0
  %v2445 = vadd.f32 %v2255, %v2444
  %2446 = vdwg.mxu0
  %2447 = vmatprep.subr.mxu0 0.0
  %2448 = vmatpush1.msra.mxu0 0.0
  %2449 = vmatprep.subr.mxu0 0.0
  %2450 = vmatpush1.msra.mxu0 0.0
  %2451 = vmatprep.subr.mxu0 0.0
  %2452 = vmatpush1.msra.mxu0 0.0
  %2453 = vmatprep.subr.mxu0 0.0
  %2454 = vmatpush1.msra.mxu0 0.0
  %2455 = vmatprep.subr.mxu0 0.0
  %2456 = vmatpush1.msra.mxu0 0.0
  %2457 = vmatprep.subr.mxu0 0.0
  %2458 = vmatpush1.msra.mxu0 0.0
  %2459 = vmatprep.subr.mxu0 0.0
  %2460 = vmatpush1.msra.mxu0 0.0
  %2461 = vmatprep.subr.mxu0 0.0
  %2462 = vmatpush1.msra.mxu0 0.0
  %2463 = vmatprep.subr.mxu0 0.0
  %2464 = vmatpush1.msra.mxu0 0.0
  %2465 = vmatprep.subr.mxu0 0.0
  %2466 = vmatpush1.msra.mxu0 0.0
  %2467 = vmatprep.subr.mxu0 0.0
  %2468 = vmatpush1.msra.mxu0 0.0
  %2469 = vmatprep.subr.mxu0 0.0
  %2470 = vmatpush1.msra.mxu0 0.0
  %2471 = vmatprep.subr.mxu0 %v2234
  %2472 = vmatpush1.msra.mxu0 %v2233
  %2473 = vmatprep.subr.mxu0 %v2226
  %2474 = vmatpush1.msra.mxu0 %v2225
  %2475 = vmatprep.subr.mxu0 %v2218
  %2476 = vmatpush1.msra.mxu0 %v2217
  %2477 = vmatprep.subr.mxu0 %v2210
  %2478 = vmatpush1.msra.mxu0 %v2209
  %2479 = vmatprep.subr.mxu0 0.0
  %2480 = vmatpush2.msra.mxu0 0.0
  %2481 = vmatprep.subr.mxu0 0.0
  %2482 = vmatpush2.msra.mxu0 0.0
  %2483 = vmatprep.subr.mxu0 0.0
  %2484 = vmatpush2.msra.mxu0 0.0
  %2485 = vmatprep.subr.mxu0 0.0
  %2486 = vmatpush2.msra.mxu0 0.0
  %2487 = vmatprep.subr.mxu0 0.0
  %2488 = vmatpush2.msra.mxu0 0.0
  %2489 = vmatprep.subr.mxu0 0.0
  %2490 = vmatpush2.msra.mxu0 0.0
  %2491 = vmatprep.subr.mxu0 0.0
  %2492 = vmatpush2.msra.mxu0 0.0
  %2493 = vmatprep.subr.mxu0 0.0
  %2494 = vmatpush2.msra.mxu0 0.0
  %2495 = vmatprep.subr.mxu0 0.0
  %2496 = vmatpush2.msra.mxu0 0.0
  %2497 = vmatprep.subr.mxu0 0.0
  %2498 = vmatpush2.msra.mxu0 0.0
  %2499 = vmatprep.subr.mxu0 0.0
  %2500 = vmatpush2.msra.mxu0 0.0
  %2501 = vmatprep.subr.mxu0 0.0
  %2502 = vmatpush2.msra.mxu0 0.0
  %2503 = vmatprep.subr.mxu0 0.0
  %2504 = vmatpush2.msra.mxu0 0.0
  %2505 = vmatprep.subr.mxu0 0.0
  %2506 = vmatpush2.msra.mxu0 0.0
  %2507 = vmatprep.subr.mxu0 0.0
  %2508 = vmatpush2.msra.mxu0 0.0
  %2509 = vmatprep.subr.mxu0 0.0
  %2510 = vmatpush2.msra.mxu0 0.0
  %2511 = vmatprep.mubr.f32.mxu0 0.0
  %2512 = vmatmul.mubr.f32.gmra.mxu0 %v2258
  %v2513 = vpop.f32.mrf.mxu0
  %v2514 = vadd.f32 %v2240, %v2513
  %v2515 = vpop.f32.mrf.mxu0
  %v2516 = vadd.f32 %v2240, %v2515
  %2517 = vmatprep.mubr.f32.mxu0 0.0
  %2518 = vmatmul.mubr.f32.gmra.mxu0 %v2261
  %v2519 = vpop.f32.mrf.mxu0
  %v2520 = vadd.f32 %v2245, %v2519
  %v2521 = vpop.f32.mrf.mxu0
  %v2522 = vadd.f32 %v2245, %v2521
  %2523 = vmatprep.mubr.f32.mxu0 0.0
  %2524 = vmatmul.mubr.f32.gmra.mxu0 %v2264
  %v2525 = vpop.f32.mrf.mxu0
  %v2526 = vadd.f32 %v2250, %v2525
  %v2527 = vpop.f32.mrf.mxu0
  %v2528 = vadd.f32 %v2250, %v2527
  %2529 = vmatprep.mubr.f32.mxu0 0.0
  %2530 = vmatmul.mubr.f32.gmra.mxu0 %v2267
  %v2531 = vpop.f32.mrf.mxu0
  %v2532 = vadd.f32 %v2255, %v2531
  %v2533 = vpop.f32.mrf.mxu0
  %v2534 = vadd.f32 %v2255, %v2533
  %2535 = vdwg.mxu0
  %2536 = vmatprep.subr.mxu0 0.0
  %2537 = vmatpush1.msra.mxu0 0.0
  %2538 = vmatprep.subr.mxu0 0.0
  %2539 = vmatpush1.msra.mxu0 0.0
  %2540 = vmatprep.subr.mxu0 0.0
  %2541 = vmatpush1.msra.mxu0 0.0
  %2542 = vmatprep.subr.mxu0 0.0
  %2543 = vmatpush1.msra.mxu0 0.0
  %2544 = vmatprep.subr.mxu0 0.0
  %2545 = vmatpush1.msra.mxu0 0.0
  %2546 = vmatprep.subr.mxu0 0.0
  %2547 = vmatpush1.msra.mxu0 0.0
  %2548 = vmatprep.subr.mxu0 0.0
  %2549 = vmatpush1.msra.mxu0 0.0
  %2550 = vmatprep.subr.mxu0 0.0
  %2551 = vmatpush1.msra.mxu0 0.0
  %2552 = vmatprep.subr.mxu0 0.0
  %2553 = vmatpush1.msra.mxu0 0.0
  %2554 = vmatprep.subr.mxu0 0.0
  %2555 = vmatpush1.msra.mxu0 0.0
  %2556 = vmatprep.subr.mxu0 0.0
  %2557 = vmatpush1.msra.mxu0 0.0
  %2558 = vmatprep.subr.mxu0 0.0
  %2559 = vmatpush1.msra.mxu0 0.0
  %2560 = vmatprep.subr.mxu0 %v2236
  %2561 = vmatpush1.msra.mxu0 %v2235
  %2562 = vmatprep.subr.mxu0 %v2228
  %2563 = vmatpush1.msra.mxu0 %v2227
  %2564 = vmatprep.subr.mxu0 %v2220
  %2565 = vmatpush1.msra.mxu0 %v2219
  %2566 = vmatprep.subr.mxu0 %v2212
  %2567 = vmatpush1.msra.mxu0 %v2211
  %2568 = vmatprep.subr.mxu0 0.0
  %2569 = vmatpush2.msra.mxu0 0.0
  %2570 = vmatprep.subr.mxu0 0.0
  %2571 = vmatpush2.msra.mxu0 0.0
  %2572 = vmatprep.subr.mxu0 0.0
  %2573 = vmatpush2.msra.mxu0 0.0
  %2574 = vmatprep.subr.mxu0 0.0
  %2575 = vmatpush2.msra.mxu0 0.0
  %2576 = vmatprep.subr.mxu0 0.0
  %2577 = vmatpush2.msra.mxu0 0.0
  %2578 = vmatprep.subr.mxu0 0.0
  %2579 = vmatpush2.msra.mxu0 0.0
  %2580 = vmatprep.subr.mxu0 0.0
  %2581 = vmatpush2.msra.mxu0 0.0
  %2582 = vmatprep.subr.mxu0 0.0
  %2583 = vmatpush2.msra.mxu0 0.0
  %2584 = vmatprep.subr.mxu0 0.0
  %2585 = vmatpush2.msra.mxu0 0.0
  %2586 = vmatprep.subr.mxu0 0.0
  %2587 = vmatpush2.msra.mxu0 0.0
  %2588 = vmatprep.subr.mxu0 0.0
  %2589 = vmatpush2.msra.mxu0 0.0
  %2590 = vmatprep.subr.mxu0 0.0
  %2591 = vmatpush2.msra.mxu0 0.0
  %2592 = vmatprep.subr.mxu0 0.0
  %2593 = vmatpush2.msra.mxu0 0.0
  %2594 = vmatprep.subr.mxu0 0.0
  %2595 = vmatpush2.msra.mxu0 0.0
  %2596 = vmatprep.subr.mxu0 0.0
  %2597 = vmatpush2.msra.mxu0 0.0
  %2598 = vmatprep.subr.mxu0 0.0
  %2599 = vmatpush2.msra.mxu0 0.0
  %2600 = vmatprep.mubr.f32.mxu0 0.0
  %2601 = vmatmul.mubr.f32.gmra.mxu0 %v2258
  %v2602 = vpop.f32.mrf.mxu0
  %v2603 = vadd.f32 %v2240, %v2602
  %v2604 = vpop.f32.mrf.mxu0
  %v2605 = vadd.f32 %v2240, %v2604
  %2606 = vmatprep.mubr.f32.mxu0 0.0
  %2607 = vmatmul.mubr.f32.gmra.mxu0 %v2261
  %v2608 = vpop.f32.mrf.mxu0
  %v2609 = vadd.f32 %v2245, %v2608
  %v2610 = vpop.f32.mrf.mxu0
  %v2611 = vadd.f32 %v2245, %v2610
  %2612 = vmatprep.mubr.f32.mxu0 0.0
  %2613 = vmatmul.mubr.f32.gmra.mxu0 %v2264
  %v2614 = vpop.f32.mrf.mxu0
  %v2615 = vadd.f32 %v2250, %v2614
  %v2616 = vpop.f32.mrf.mxu0
  %v2617 = vadd.f32 %v2250, %v2616
  %2618 = vmatprep.mubr.f32.mxu0 0.0
  %2619 = vmatmul.mubr.f32.gmra.mxu0 %v2267
  %v2620 = vpop.f32.mrf.mxu0
  %v2621 = vadd.f32 %v2255, %v2620
  %v2622 = vpop.f32.mrf.mxu0
  %v2623 = vadd.f32 %v2255, %v2622
  %2624 = vdwg.mxu0
  %v2625 = vmax.f32 %v2336, 0.0
  %v2626 = vmax.f32 %v2338, 0.0
  %v2627 = vmax.f32 %v2425, 0.0
  %v2628 = vmax.f32 %v2427, 0.0
  %v2629 = vmax.f32 %v2514, 0.0
  %v2630 = vmax.f32 %v2516, 0.0
  %v2631 = vmax.f32 %v2603, 0.0
  %v2632 = vmax.f32 %v2605, 0.0
  %v2633 = vmax.f32 %v2342, 0.0
  %v2634 = vmax.f32 %v2344, 0.0
  %v2635 = vmax.f32 %v2431, 0.0
  %v2636 = vmax.f32 %v2433, 0.0
  %v2637 = vmax.f32 %v2520, 0.0
  %v2638 = vmax.f32 %v2522, 0.0
  %v2639 = vmax.f32 %v2609, 0.0
  %v2640 = vmax.f32 %v2611, 0.0
  %v2641 = vmax.f32 %v2348, 0.0
  %v2642 = vmax.f32 %v2350, 0.0
  %v2643 = vmax.f32 %v2437, 0.0
  %v2644 = vmax.f32 %v2439, 0.0
  %v2645 = vmax.f32 %v2526, 0.0
  %v2646 = vmax.f32 %v2528, 0.0
  %v2647 = vmax.f32 %v2615, 0.0
  %v2648 = vmax.f32 %v2617, 0.0
  %v2649 = vmax.f32 %v2354, 0.0
  %v2650 = vmax.f32 %v2356, 0.0
  %v2651 = vmax.f32 %v2443, 0.0
  %v2652 = vmax.f32 %v2445, 0.0
  %v2653 = vmax.f32 %v2532, 0.0
  %v2654 = vmax.f32 %v2534, 0.0
  %v2655 = vmax.f32 %v2621, 0.0
  %v2656 = vmax.f32 %v2623, 0.0
  %2657 = vxpose.xlu0.b32.start [1/16] %v2625, 128
  %2658 = vxpose.xlu0.b32.cont [2/16] %v2633, 128
  %2659 = vxpose.xlu0.b32.cont [3/16] %v2641, 128
  %2660 = vxpose.xlu0.b32.cont [4/16] %v2649, 128
  %2661 = vxpose.xlu0.b32.cont [5/16] 0.0, 128
  %2662 = vxpose.xlu0.b32.cont [6/16] 0.0, 128
  %2663 = vxpose.xlu0.b32.cont [7/16] 0.0, 128
  %2664 = vxpose.xlu0.b32.cont [8/16] 0.0, 128
  %2665 = vxpose.xlu0.b32.cont [9/16] 0.0, 128
  %2666 = vxpose.xlu0.b32.cont [10/16] 0.0, 128
  %2667 = vxpose.xlu0.b32.cont [11/16] 0.0, 128
  %2668 = vxpose.xlu0.b32.cont [12/16] 0.0, 128
  %2669 = vxpose.xlu0.b32.cont [13/16] 0.0, 128
  %2670 = vxpose.xlu0.b32.cont [14/16] 0.0, 128
  %2671 = vxpose.xlu0.b32.cont [15/16] 0.0, 128
  %2672 = vxpose.xlu0.b32.end [16/16] 0.0, 128
  %v2673 = vpop.trf.xlu0
  %v2674 = vpop.trf.xlu0
  %v2675 = vpop.trf.xlu0
  %v2676 = vpop.trf.xlu0
  %v2677 = vpop.trf.xlu0
  %v2678 = vpop.trf.xlu0
  %v2679 = vpop.trf.xlu0
  %v2680 = vpop.trf.xlu0
  %v2681 = vpop.trf.xlu0
  %v2682 = vpop.trf.xlu0
  %v2683 = vpop.trf.xlu0
  %v2684 = vpop.trf.xlu0
  %v2685 = vpop.trf.xlu0
  %v2686 = vpop.trf.xlu0
  %v2687 = vpop.trf.xlu0
  %v2688 = vpop.trf.xlu0
  %2689 = vxpose.xlu0.b32.start [1/16] %v2626, 128
  %2690 = vxpose.xlu0.b32.cont [2/16] %v2634, 128
  %2691 = vxpose.xlu0.b32.cont [3/16] %v2642, 128
  %2692 = vxpose.xlu0.b32.cont [4/16] %v2650, 128
  %2693 = vxpose.xlu0.b32.cont [5/16] 0.0, 128
  %2694 = vxpose.xlu0.b32.cont [6/16] 0.0, 128
  %2695 = vxpose.xlu0.b32.cont [7/16] 0.0, 128
  %2696 = vxpose.xlu0.b32.cont [8/16] 0.0, 128
  %2697 = vxpose.xlu0.b32.cont [9/16] 0.0, 128
  %2698 = vxpose.xlu0.b32.cont [10/16] 0.0, 128
  %2699 = vxpose.xlu0.b32.cont [11/16] 0.0, 128
  %2700 = vxpose.xlu0.b32.cont [12/16] 0.0, 128
  %2701 = vxpose.xlu0.b32.cont [13/16] 0.0, 128
  %2702 = vxpose.xlu0.b32.cont [14/16] 0.0, 128
  %2703 = vxpose.xlu0.b32.cont [15/16] 0.0, 128
  %2704 = vxpose.xlu0.b32.end [16/16] 0.0, 128
  %v2705 = vpop.trf.xlu0
  %v2706 = vpop.trf.xlu0
  %v2707 = vpop.trf.xlu0
  %v2708 = vpop.trf.xlu0
  %v2709 = vpop.trf.xlu0
  %v2710 = vpop.trf.xlu0
  %v2711 = vpop.trf.xlu0
  %v2712 = vpop.trf.xlu0
  %v2713 = vpop.trf.xlu0
  %v2714 = vpop.trf.xlu0
  %v2715 = vpop.trf.xlu0
  %v2716 = vpop.trf.xlu0
  %v2717 = vpop.trf.xlu0
  %v2718 = vpop.trf.xlu0
  %v2719 = vpop.trf.xlu0
  %v2720 = vpop.trf.xlu0
  %2721 = vxpose.xlu0.b32.start [1/16] %v2627, 128
  %2722 = vxpose.xlu0.b32.cont [2/16] %v2635, 128
  %2723 = vxpose.xlu0.b32.cont [3/16] %v2643, 128
  %2724 = vxpose.xlu0.b32.cont [4/16] %v2651, 128
  %2725 = vxpose.xlu0.b32.cont [5/16] 0.0, 128
  %2726 = vxpose.xlu0.b32.cont [6/16] 0.0, 128
  %2727 = vxpose.xlu0.b32.cont [7/16] 0.0, 128
  %2728 = vxpose.xlu0.b32.cont [8/16] 0.0, 128
  %2729 = vxpose.xlu0.b32.cont [9/16] 0.0, 128
  %2730 = vxpose.xlu0.b32.cont [10/16] 0.0, 128
  %2731 = vxpose.xlu0.b32.cont [11/16] 0.0, 128
  %2732 = vxpose.xlu0.b32.cont [12/16] 0.0, 128
  %2733 = vxpose.xlu0.b32.cont [13/16] 0.0, 128
  %2734 = vxpose.xlu0.b32.cont [14/16] 0.0, 128
  %2735 = vxpose.xlu0.b32.cont [15/16] 0.0, 128
  %2736 = vxpose.xlu0.b32.end [16/16] 0.0, 128
  %v2737 = vpop.trf.xlu0
  %v2738 = vpop.trf.xlu0
  %v2739 = vpop.trf.xlu0
  %v2740 = vpop.trf.xlu0
  %v2741 = vpop.trf.xlu0
  %v2742 = vpop.trf.xlu0
  %v2743 = vpop.trf.xlu0
  %v2744 = vpop.trf.xlu0
  %v2745 = vpop.trf.xlu0
  %v2746 = vpop.trf.xlu0
  %v2747 = vpop.trf.xlu0
  %v2748 = vpop.trf.xlu0
  %v2749 = vpop.trf.xlu0
  %v2750 = vpop.trf.xlu0
  %v2751 = vpop.trf.xlu0
  %v2752 = vpop.trf.xlu0
  %2753 = vxpose.xlu0.b32.start [1/16] %v2628, 128
  %2754 = vxpose.xlu0.b32.cont [2/16] %v2636, 128
  %2755 = vxpose.xlu0.b32.cont [3/16] %v2644, 128
  %2756 = vxpose.xlu0.b32.cont [4/16] %v2652, 128
  %2757 = vxpose.xlu0.b32.cont [5/16] 0.0, 128
  %2758 = vxpose.xlu0.b32.cont [6/16] 0.0, 128
  %2759 = vxpose.xlu0.b32.cont [7/16] 0.0, 128
  %2760 = vxpose.xlu0.b32.cont [8/16] 0.0, 128
  %2761 = vxpose.xlu0.b32.cont [9/16] 0.0, 128
  %2762 = vxpose.xlu0.b32.cont [10/16] 0.0, 128
  %2763 = vxpose.xlu0.b32.cont [11/16] 0.0, 128
  %2764 = vxpose.xlu0.b32.cont [12/16] 0.0, 128
  %2765 = vxpose.xlu0.b32.cont [13/16] 0.0, 128
  %2766 = vxpose.xlu0.b32.cont [14/16] 0.0, 128
  %2767 = vxpose.xlu0.b32.cont [15/16] 0.0, 128
  %2768 = vxpose.xlu0.b32.end [16/16] 0.0, 128
  %v2769 = vpop.trf.xlu0
  %v2770 = vpop.trf.xlu0
  %v2771 = vpop.trf.xlu0
  %v2772 = vpop.trf.xlu0
  %v2773 = vpop.trf.xlu0
  %v2774 = vpop.trf.xlu0
  %v2775 = vpop.trf.xlu0
  %v2776 = vpop.trf.xlu0
  %v2777 = vpop.trf.xlu0
  %v2778 = vpop.trf.xlu0
  %v2779 = vpop.trf.xlu0
  %v2780 = vpop.trf.xlu0
  %v2781 = vpop.trf.xlu0
  %v2782 = vpop.trf.xlu0
  %v2783 = vpop.trf.xlu0
  %v2784 = vpop.trf.xlu0
  %2785 = vxpose.xlu0.b32.start [1/16] %v2629, 128
  %2786 = vxpose.xlu0.b32.cont [2/16] %v2637, 128
  %2787 = vxpose.xlu0.b32.cont [3/16] %v2645, 128
  %2788 = vxpose.xlu0.b32.cont [4/16] %v2653, 128
  %2789 = vxpose.xlu0.b32.cont [5/16] 0.0, 128
  %2790 = vxpose.xlu0.b32.cont [6/16] 0.0, 128
  %2791 = vxpose.xlu0.b32.cont [7/16] 0.0, 128
  %2792 = vxpose.xlu0.b32.cont [8/16] 0.0, 128
  %2793 = vxpose.xlu0.b32.cont [9/16] 0.0, 128
  %2794 = vxpose.xlu0.b32.cont [10/16] 0.0, 128
  %2795 = vxpose.xlu0.b32.cont [11/16] 0.0, 128
  %2796 = vxpose.xlu0.b32.cont [12/16] 0.0, 128
  %2797 = vxpose.xlu0.b32.cont [13/16] 0.0, 128
  %2798 = vxpose.xlu0.b32.cont [14/16] 0.0, 128
  %2799 = vxpose.xlu0.b32.cont [15/16] 0.0, 128
  %2800 = vxpose.xlu0.b32.end [16/16] 0.0, 128
  %v2801 = vpop.trf.xlu0
  %v2802 = vpop.trf.xlu0
  %v2803 = vpop.trf.xlu0
  %v2804 = vpop.trf.xlu0
  %v2805 = vpop.trf.xlu0
  %v2806 = vpop.trf.xlu0
  %v2807 = vpop.trf.xlu0
  %v2808 = vpop.trf.xlu0
  %v2809 = vpop.trf.xlu0
  %v2810 = vpop.trf.xlu0
  %v2811 = vpop.trf.xlu0
  %v2812 = vpop.trf.xlu0
  %v2813 = vpop.trf.xlu0
  %v2814 = vpop.trf.xlu0
  %v2815 = vpop.trf.xlu0
  %v2816 = vpop.trf.xlu0
  %2817 = vxpose.xlu0.b32.start [1/16] %v2630, 128
  %2818 = vxpose.xlu0.b32.cont [2/16] %v2638, 128
  %2819 = vxpose.xlu0.b32.cont [3/16] %v2646, 128
  %2820 = vxpose.xlu0.b32.cont [4/16] %v2654, 128
  %2821 = vxpose.xlu0.b32.cont [5/16] 0.0, 128
  %2822 = vxpose.xlu0.b32.cont [6/16] 0.0, 128
  %2823 = vxpose.xlu0.b32.cont [7/16] 0.0, 128
  %2824 = vxpose.xlu0.b32.cont [8/16] 0.0, 128
  %2825 = vxpose.xlu0.b32.cont [9/16] 0.0, 128
  %2826 = vxpose.xlu0.b32.cont [10/16] 0.0, 128
  %2827 = vxpose.xlu0.b32.cont [11/16] 0.0, 128
  %2828 = vxpose.xlu0.b32.cont [12/16] 0.0, 128
  %2829 = vxpose.xlu0.b32.cont [13/16] 0.0, 128
  %2830 = vxpose.xlu0.b32.cont [14/16] 0.0, 128
  %2831 = vxpose.xlu0.b32.cont [15/16] 0.0, 128
  %2832 = vxpose.xlu0.b32.end [16/16] 0.0, 128
  %v2833 = vpop.trf.xlu0
  %v2834 = vpop.trf.xlu0
  %v2835 = vpop.trf.xlu0
  %v2836 = vpop.trf.xlu0
  %v2837 = vpop.trf.xlu0
  %v2838 = vpop.trf.xlu0
  %v2839 = vpop.trf.xlu0
  %v2840 = vpop.trf.xlu0
  %v2841 = vpop.trf.xlu0
  %v2842 = vpop.trf.xlu0
  %v2843 = vpop.trf.xlu0
  %v2844 = vpop.trf.xlu0
  %v2845 = vpop.trf.xlu0
  %v2846 = vpop.trf.xlu0
  %v2847 = vpop.trf.xlu0
  %v2848 = vpop.trf.xlu0
  %2849 = vxpose.xlu0.b32.start [1/16] %v2631, 128
  %2850 = vxpose.xlu0.b32.cont [2/16] %v2639, 128
  %2851 = vxpose.xlu0.b32.cont [3/16] %v2647, 128
  %2852 = vxpose.xlu0.b32.cont [4/16] %v2655, 128
  %2853 = vxpose.xlu0.b32.cont [5/16] 0.0, 128
  %2854 = vxpose.xlu0.b32.cont [6/16] 0.0, 128
  %2855 = vxpose.xlu0.b32.cont [7/16] 0.0, 128
  %2856 = vxpose.xlu0.b32.cont [8/16] 0.0, 128
  %2857 = vxpose.xlu0.b32.cont [9/16] 0.0, 128
  %2858 = vxpose.xlu0.b32.cont [10/16] 0.0, 128
  %2859 = vxpose.xlu0.b32.cont [11/16] 0.0, 128
  %2860 = vxpose.xlu0.b32.cont [12/16] 0.0, 128
  %2861 = vxpose.xlu0.b32.cont [13/16] 0.0, 128
  %2862 = vxpose.xlu0.b32.cont [14/16] 0.0, 128
  %2863 = vxpose.xlu0.b32.cont [15/16] 0.0, 128
  %2864 = vxpose.xlu0.b32.end [16/16] 0.0, 128
  %v2865 = vpop.trf.xlu0
  %v2866 = vpop.trf.xlu0
  %v2867 = vpop.trf.xlu0
  %v2868 = vpop.trf.xlu0
  %v2869 = vpop.trf.xlu0
  %v2870 = vpop.trf.xlu0
  %v2871 = vpop.trf.xlu0
  %v2872 = vpop.trf.xlu0
  %v2873 = vpop.trf.xlu0
  %v2874 = vpop.trf.xlu0
  %v2875 = vpop.trf.xlu0
  %v2876 = vpop.trf.xlu0
  %v2877 = vpop.trf.xlu0
  %v2878 = vpop.trf.xlu0
  %v2879 = vpop.trf.xlu0
  %v2880 = vpop.trf.xlu0
  %2881 = vxpose.xlu0.b32.start [1/16] %v2632, 128
  %2882 = vxpose.xlu0.b32.cont [2/16] %v2640, 128
  %2883 = vxpose.xlu0.b32.cont [3/16] %v2648, 128
  %2884 = vxpose.xlu0.b32.cont [4/16] %v2656, 128
  %2885 = vxpose.xlu0.b32.cont [5/16] 0.0, 128
  %2886 = vxpose.xlu0.b32.cont [6/16] 0.0, 128
  %2887 = vxpose.xlu0.b32.cont [7/16] 0.0, 128
  %2888 = vxpose.xlu0.b32.cont [8/16] 0.0, 128
  %2889 = vxpose.xlu0.b32.cont [9/16] 0.0, 128
  %2890 = vxpose.xlu0.b32.cont [10/16] 0.0, 128
  %2891 = vxpose.xlu0.b32.cont [11/16] 0.0, 128
  %2892 = vxpose.xlu0.b32.cont [12/16] 0.0, 128
  %2893 = vxpose.xlu0.b32.cont [13/16] 0.0, 128
  %2894 = vxpose.xlu0.b32.cont [14/16] 0.0, 128
  %2895 = vxpose.xlu0.b32.cont [15/16] 0.0, 128
  %2896 = vxpose.xlu0.b32.end [16/16] 0.0, 128
  %v2897 = vpop.trf.xlu0
  %v2898 = vpop.trf.xlu0
  %v2899 = vpop.trf.xlu0
  %v2900 = vpop.trf.xlu0
  %v2901 = vpop.trf.xlu0
  %v2902 = vpop.trf.xlu0
  %v2903 = vpop.trf.xlu0
  %v2904 = vpop.trf.xlu0
  %v2905 = vpop.trf.xlu0
  %v2906 = vpop.trf.xlu0
  %v2907 = vpop.trf.xlu0
  %v2908 = vpop.trf.xlu0
  %v2909 = vpop.trf.xlu0
  %v2910 = vpop.trf.xlu0
  %v2911 = vpop.trf.xlu0
  %v2912 = vpop.trf.xlu0
  %v2913 = vsel %vm298, %v2673, 0.0
  %v2914 = vsel %vm298, %v2674, 0.0
  %v2915 = vadd.f32 %v2913, %v2914
  %v2916 = vsel %vm298, %v2675, 0.0
  %v2917 = vadd.f32 %v2915, %v2916
  %v2918 = vsel %vm298, %v2676, 0.0
  %v2919 = vadd.f32 %v2917, %v2918
  %v2920 = vsel %vm298, %v2677, 0.0
  %v2921 = vadd.f32 %v2919, %v2920
  %v2922 = vsel %vm298, %v2678, 0.0
  %v2923 = vadd.f32 %v2921, %v2922
  %v2924 = vsel %vm298, %v2679, 0.0
  %v2925 = vadd.f32 %v2923, %v2924
  %v2926 = vsel %vm298, %v2680, 0.0
  %v2927 = vadd.f32 %v2925, %v2926
  %v2928 = vsel %vm298, %v2681, 0.0
  %v2929 = vadd.f32 %v2927, %v2928
  %v2930 = vsel %vm298, %v2682, 0.0
  %v2931 = vadd.f32 %v2929, %v2930
  %v2932 = vsel %vm298, %v2683, 0.0
  %v2933 = vadd.f32 %v2931, %v2932
  %v2934 = vsel %vm298, %v2684, 0.0
  %v2935 = vadd.f32 %v2933, %v2934
  %v2936 = vsel %vm298, %v2685, 0.0
  %v2937 = vadd.f32 %v2935, %v2936
  %v2938 = vsel %vm298, %v2686, 0.0
  %v2939 = vadd.f32 %v2937, %v2938
  %v2940 = vsel %vm298, %v2687, 0.0
  %v2941 = vadd.f32 %v2939, %v2940
  %v2942 = vsel %vm298, %v2688, 0.0
  %v2943 = vadd.f32 %v2941, %v2942
  %v2944 = vsel %vm298, %v2705, 0.0
  %v2945 = vadd.f32 %v2943, %v2944
  %v2946 = vsel %vm298, %v2706, 0.0
  %v2947 = vadd.f32 %v2945, %v2946
  %v2948 = vsel %vm298, %v2707, 0.0
  %v2949 = vadd.f32 %v2947, %v2948
  %v2950 = vsel %vm298, %v2708, 0.0
  %v2951 = vadd.f32 %v2949, %v2950
  %v2952 = vsel %vm298, %v2709, 0.0
  %v2953 = vadd.f32 %v2951, %v2952
  %v2954 = vsel %vm298, %v2710, 0.0
  %v2955 = vadd.f32 %v2953, %v2954
  %v2956 = vsel %vm298, %v2711, 0.0
  %v2957 = vadd.f32 %v2955, %v2956
  %v2958 = vsel %vm298, %v2712, 0.0
  %v2959 = vadd.f32 %v2957, %v2958
  %v2960 = vsel %vm298, %v2713, 0.0
  %v2961 = vadd.f32 %v2959, %v2960
  %v2962 = vsel %vm298, %v2714, 0.0
  %v2963 = vadd.f32 %v2961, %v2962
  %v2964 = vsel %vm298, %v2715, 0.0
  %v2965 = vadd.f32 %v2963, %v2964
  %v2966 = vsel %vm298, %v2716, 0.0
  %v2967 = vadd.f32 %v2965, %v2966
  %v2968 = vsel %vm298, %v2717, 0.0
  %v2969 = vadd.f32 %v2967, %v2968
  %v2970 = vsel %vm298, %v2718, 0.0
  %v2971 = vadd.f32 %v2969, %v2970
  %v2972 = vsel %vm298, %v2719, 0.0
  %v2973 = vadd.f32 %v2971, %v2972
  %v2974 = vsel %vm298, %v2720, 0.0
  %v2975 = vadd.f32 %v2973, %v2974
  %v2976 = vsel %vm298, %v2737, 0.0
  %v2977 = vadd.f32 %v2975, %v2976
  %v2978 = vsel %vm298, %v2738, 0.0
  %v2979 = vadd.f32 %v2977, %v2978
  %v2980 = vsel %vm298, %v2739, 0.0
  %v2981 = vadd.f32 %v2979, %v2980
  %v2982 = vsel %vm298, %v2740, 0.0
  %v2983 = vadd.f32 %v2981, %v2982
  %v2984 = vsel %vm298, %v2741, 0.0
  %v2985 = vadd.f32 %v2983, %v2984
  %v2986 = vsel %vm298, %v2742, 0.0
  %v2987 = vadd.f32 %v2985, %v2986
  %v2988 = vsel %vm298, %v2743, 0.0
  %v2989 = vadd.f32 %v2987, %v2988
  %v2990 = vsel %vm298, %v2744, 0.0
  %v2991 = vadd.f32 %v2989, %v2990
  %v2992 = vsel %vm298, %v2745, 0.0
  %v2993 = vadd.f32 %v2991, %v2992
  %v2994 = vsel %vm298, %v2746, 0.0
  %v2995 = vadd.f32 %v2993, %v2994
  %v2996 = vsel %vm298, %v2747, 0.0
  %v2997 = vadd.f32 %v2995, %v2996
  %v2998 = vsel %vm298, %v2748, 0.0
  %v2999 = vadd.f32 %v2997, %v2998
  %v3000 = vsel %vm298, %v2749, 0.0
  %v3001 = vadd.f32 %v2999, %v3000
  %v3002 = vsel %vm298, %v2750, 0.0
  %v3003 = vadd.f32 %v3001, %v3002
  %v3004 = vsel %vm298, %v2751, 0.0
  %v3005 = vadd.f32 %v3003, %v3004
  %v3006 = vsel %vm298, %v2752, 0.0
  %v3007 = vadd.f32 %v3005, %v3006
  %v3008 = vsel %vm298, %v2769, 0.0
  %v3009 = vadd.f32 %v3007, %v3008
  %v3010 = vsel %vm298, %v2770, 0.0
  %v3011 = vadd.f32 %v3009, %v3010
  %v3012 = vsel %vm298, %v2771, 0.0
  %v3013 = vadd.f32 %v3011, %v3012
  %v3014 = vsel %vm298, %v2772, 0.0
  %v3015 = vadd.f32 %v3013, %v3014
  %v3016 = vsel %vm298, %v2773, 0.0
  %v3017 = vadd.f32 %v3015, %v3016
  %v3018 = vsel %vm298, %v2774, 0.0
  %v3019 = vadd.f32 %v3017, %v3018
  %v3020 = vsel %vm298, %v2775, 0.0
  %v3021 = vadd.f32 %v3019, %v3020
  %v3022 = vsel %vm298, %v2776, 0.0
  %v3023 = vadd.f32 %v3021, %v3022
  %v3024 = vsel %vm298, %v2777, 0.0
  %v3025 = vadd.f32 %v3023, %v3024
  %v3026 = vsel %vm298, %v2778, 0.0
  %v3027 = vadd.f32 %v3025, %v3026
  %v3028 = vsel %vm298, %v2779, 0.0
  %v3029 = vadd.f32 %v3027, %v3028
  %v3030 = vsel %vm298, %v2780, 0.0
  %v3031 = vadd.f32 %v3029, %v3030
  %v3032 = vsel %vm298, %v2781, 0.0
  %v3033 = vadd.f32 %v3031, %v3032
  %v3034 = vsel %vm298, %v2782, 0.0
  %v3035 = vadd.f32 %v3033, %v3034
  %v3036 = vsel %vm298, %v2783, 0.0
  %v3037 = vadd.f32 %v3035, %v3036
  %v3038 = vsel %vm298, %v2784, 0.0
  %v3039 = vadd.f32 %v3037, %v3038
  %v3040 = vrot.slane %v3039, 4
  %v3041 = vadd.f32 %v3039, %v3040
  %v3042 = vrot.slane %v3041, 2
  %v3043 = vadd.f32 %v3041, %v3042
  %v3044 = vrot.slane %v3043, 1
  %v3045 = vadd.f32 %v3043, %v3044
  %v3046 = vrcp.pop 512.0
  %v3047 = vmul.f32 %v3045, %v3046
  %v3048 = vsel %vm298, %v2801, 0.0
  %v3049 = vsel %vm298, %v2802, 0.0
  %v3050 = vadd.f32 %v3048, %v3049
  %v3051 = vsel %vm298, %v2803, 0.0
  %v3052 = vadd.f32 %v3050, %v3051
  %v3053 = vsel %vm298, %v2804, 0.0
  %v3054 = vadd.f32 %v3052, %v3053
  %v3055 = vsel %vm298, %v2805, 0.0
  %v3056 = vadd.f32 %v3054, %v3055
  %v3057 = vsel %vm298, %v2806, 0.0
  %v3058 = vadd.f32 %v3056, %v3057
  %v3059 = vsel %vm298, %v2807, 0.0
  %v3060 = vadd.f32 %v3058, %v3059
  %v3061 = vsel %vm298, %v2808, 0.0
  %v3062 = vadd.f32 %v3060, %v3061
  %v3063 = vsel %vm298, %v2809, 0.0
  %v3064 = vadd.f32 %v3062, %v3063
  %v3065 = vsel %vm298, %v2810, 0.0
  %v3066 = vadd.f32 %v3064, %v3065
  %v3067 = vsel %vm298, %v2811, 0.0
  %v3068 = vadd.f32 %v3066, %v3067
  %v3069 = vsel %vm298, %v2812, 0.0
  %v3070 = vadd.f32 %v3068, %v3069
  %v3071 = vsel %vm298, %v2813, 0.0
  %v3072 = vadd.f32 %v3070, %v3071
  %v3073 = vsel %vm298, %v2814, 0.0
  %v3074 = vadd.f32 %v3072, %v3073
  %v3075 = vsel %vm298, %v2815, 0.0
  %v3076 = vadd.f32 %v3074, %v3075
  %v3077 = vsel %vm298, %v2816, 0.0
  %v3078 = vadd.f32 %v3076, %v3077
  %v3079 = vsel %vm298, %v2833, 0.0
  %v3080 = vadd.f32 %v3078, %v3079
  %v3081 = vsel %vm298, %v2834, 0.0
  %v3082 = vadd.f32 %v3080, %v3081
  %v3083 = vsel %vm298, %v2835, 0.0
  %v3084 = vadd.f32 %v3082, %v3083
  %v3085 = vsel %vm298, %v2836, 0.0
  %v3086 = vadd.f32 %v3084, %v3085
  %v3087 = vsel %vm298, %v2837, 0.0
  %v3088 = vadd.f32 %v3086, %v3087
  %v3089 = vsel %vm298, %v2838, 0.0
  %v3090 = vadd.f32 %v3088, %v3089
  %v3091 = vsel %vm298, %v2839, 0.0
  %v3092 = vadd.f32 %v3090, %v3091
  %v3093 = vsel %vm298, %v2840, 0.0
  %v3094 = vadd.f32 %v3092, %v3093
  %v3095 = vsel %vm298, %v2841, 0.0
  %v3096 = vadd.f32 %v3094, %v3095
  %v3097 = vsel %vm298, %v2842, 0.0
  %v3098 = vadd.f32 %v3096, %v3097
  %v3099 = vsel %vm298, %v2843, 0.0
  %v3100 = vadd.f32 %v3098, %v3099
  %v3101 = vsel %vm298, %v2844, 0.0
  %v3102 = vadd.f32 %v3100, %v3101
  %v3103 = vsel %vm298, %v2845, 0.0
  %v3104 = vadd.f32 %v3102, %v3103
  %v3105 = vsel %vm298, %v2846, 0.0
  %v3106 = vadd.f32 %v3104, %v3105
  %v3107 = vsel %vm298, %v2847, 0.0
  %v3108 = vadd.f32 %v3106, %v3107
  %v3109 = vsel %vm298, %v2848, 0.0
  %v3110 = vadd.f32 %v3108, %v3109
  %v3111 = vsel %vm298, %v2865, 0.0
  %v3112 = vadd.f32 %v3110, %v3111
  %v3113 = vsel %vm298, %v2866, 0.0
  %v3114 = vadd.f32 %v3112, %v3113
  %v3115 = vsel %vm298, %v2867, 0.0
  %v3116 = vadd.f32 %v3114, %v3115
  %v3117 = vsel %vm298, %v2868, 0.0
  %v3118 = vadd.f32 %v3116, %v3117
  %v3119 = vsel %vm298, %v2869, 0.0
  %v3120 = vadd.f32 %v3118, %v3119
  %v3121 = vsel %vm298, %v2870, 0.0
  %v3122 = vadd.f32 %v3120, %v3121
  %v3123 = vsel %vm298, %v2871, 0.0
  %v3124 = vadd.f32 %v3122, %v3123
  %v3125 = vsel %vm298, %v2872, 0.0
  %v3126 = vadd.f32 %v3124, %v3125
  %v3127 = vsel %vm298, %v2873, 0.0
  %v3128 = vadd.f32 %v3126, %v3127
  %v3129 = vsel %vm298, %v2874, 0.0
  %v3130 = vadd.f32 %v3128, %v3129
  %v3131 = vsel %vm298, %v2875, 0.0
  %v3132 = vadd.f32 %v3130, %v3131
  %v3133 = vsel %vm298, %v2876, 0.0
  %v3134 = vadd.f32 %v3132, %v3133
  %v3135 = vsel %vm298, %v2877, 0.0
  %v3136 = vadd.f32 %v3134, %v3135
  %v3137 = vsel %vm298, %v2878, 0.0
  %v3138 = vadd.f32 %v3136, %v3137
  %v3139 = vsel %vm298, %v2879, 0.0
  %v3140 = vadd.f32 %v3138, %v3139
  %v3141 = vsel %vm298, %v2880, 0.0
  %v3142 = vadd.f32 %v3140, %v3141
  %v3143 = vsel %vm298, %v2897, 0.0
  %v3144 = vadd.f32 %v3142, %v3143
  %v3145 = vsel %vm298, %v2898, 0.0
  %v3146 = vadd.f32 %v3144, %v3145
  %v3147 = vsel %vm298, %v2899, 0.0
  %v3148 = vadd.f32 %v3146, %v3147
  %v3149 = vsel %vm298, %v2900, 0.0
  %v3150 = vadd.f32 %v3148, %v3149
  %v3151 = vsel %vm298, %v2901, 0.0
  %v3152 = vadd.f32 %v3150, %v3151
  %v3153 = vsel %vm298, %v2902, 0.0
  %v3154 = vadd.f32 %v3152, %v3153
  %v3155 = vsel %vm298, %v2903, 0.0
  %v3156 = vadd.f32 %v3154, %v3155
  %v3157 = vsel %vm298, %v2904, 0.0
  %v3158 = vadd.f32 %v3156, %v3157
  %v3159 = vsel %vm298, %v2905, 0.0
  %v3160 = vadd.f32 %v3158, %v3159
  %v3161 = vsel %vm298, %v2906, 0.0
  %v3162 = vadd.f32 %v3160, %v3161
  %v3163 = vsel %vm298, %v2907, 0.0
  %v3164 = vadd.f32 %v3162, %v3163
  %v3165 = vsel %vm298, %v2908, 0.0
  %v3166 = vadd.f32 %v3164, %v3165
  %v3167 = vsel %vm298, %v2909, 0.0
  %v3168 = vadd.f32 %v3166, %v3167
  %v3169 = vsel %vm298, %v2910, 0.0
  %v3170 = vadd.f32 %v3168, %v3169
  %v3171 = vsel %vm298, %v2911, 0.0
  %v3172 = vadd.f32 %v3170, %v3171
  %v3173 = vsel %vm298, %v2912, 0.0
  %v3174 = vadd.f32 %v3172, %v3173
  %v3175 = vrot.slane %v3174, 4
  %v3176 = vadd.f32 %v3174, %v3175
  %v3177 = vrot.slane %v3176, 2
  %v3178 = vadd.f32 %v3176, %v3177
  %v3179 = vrot.slane %v3178, 1
  %v3180 = vadd.f32 %v3178, %v3179
  %v3181 = vmul.f32 %v3180, %v3046
  %v3182 = vsel %vm474, %v3047, %v3181
  %3184 = vrot.lane.b32.xlu0 %v1826, 32
  %v3185 = vpop.permute.xlu0 %3184
  %3188 = vrot.lane.b32.xlu0 %v3182, 64
  %v3189 = vpop.permute.xlu0 %3188
  %v3191 = vsel %vm298, %v475, %v3185
  %v3192 = vsel %vm164, %v3191, %v3189
  %v3193 = vld [vmem:[%s24] sm:$0xff]
  %v3194 = vld [vmem:[%s24 + $0x8] sm:$0xff]
  %v3195 = vld [vmem:[%s24 + $0x10] sm:$0xff]
  %v3196 = vld [vmem:[%s24 + $0x18] sm:$0xff]
  %v3197 = vld [vmem:[%s24 + $0x20] sm:$0xff]
  %v3198 = vld [vmem:[%s24 + $0x28] sm:$0xff]
  %v3199 = vld [vmem:[%s24 + $0x30] sm:$0xff]
  %v3200 = vld [vmem:[%s24 + $0x38] sm:$0xff]
  %v3201 = vld [vmem:[%s24 + $0x40] sm:$0xff]
  %v3202 = vld [vmem:[%s24 + $0x48] sm:$0xff]
  %v3203 = vld [vmem:[%s24 + $0x50] sm:$0xff]
  %v3204 = vld [vmem:[%s24 + $0x58] sm:$0xff]
  %v3205 = vld [vmem:[%s24 + $0x60] sm:$0xff]
  %v3206 = vld [vmem:[%s24 + $0x68] sm:$0xff]
  %v3207 = vld [vmem:[%s24 + $0x70] sm:$0xff]
  %v3208 = vld [vmem:[%s24 + $0x78] sm:$0xff]
  %v3209 = vld [vmem:[%s24 + $0x80] sm:$0xff]
  %v3210 = vld [vmem:[%s24 + $0x88] sm:$0xff]
  %v3211 = vld [vmem:[%s24 + $0x90] sm:$0xff]
  %v3212 = vld [vmem:[%s24 + $0x98] sm:$0xff]
  %v3213 = vld [vmem:[%s24 + $0xa0] sm:$0xff]
  %v3214 = vld [vmem:[%s24 + $0xa8] sm:$0xff]
  %v3215 = vld [vmem:[%s24 + $0xb0] sm:$0xff]
  %v3216 = vld [vmem:[%s24 + $0xb8] sm:$0xff]
  %v3217 = vld [vmem:[%s25] sm:$0x3]
  %v3219 = vlaneseq
  %v3220 = vshrl.u32 %v3219, 7
  %v3221 = vsub.s32 0, %v3220
  %v3222 = vrot.slane %v3217, %v3221
  %v3223 = vlaneseq
  %v3224 = vshrl.u32 %v3223, 7
  %v3225 = vsub.s32 1, %v3224
  %v3226 = vrot.slane %v3217, %v3225
  %vm3229 = vcmask 785408
  %v3231 = vsel %vm3229, %v3192, 0
  %3233 = vmatprep.subr.mxu0 0.0
  %3234 = vmatpush1.msra.mxu0 0.0
  %3235 = vmatprep.subr.mxu0 0.0
  %3236 = vmatpush1.msra.mxu0 0.0
  %3237 = vmatprep.subr.mxu0 0.0
  %3238 = vmatpush1.msra.mxu0 0.0
  %3239 = vmatprep.subr.mxu0 0.0
  %3240 = vmatpush1.msra.mxu0 0.0
  %3241 = vmatprep.subr.mxu0 %v3216
  %3242 = vmatpush1.msra.mxu0 %v3215
  %3243 = vmatprep.subr.mxu0 %v3214
  %3244 = vmatpush1.msra.mxu0 %v3213
  %3245 = vmatprep.subr.mxu0 %v3212
  %3246 = vmatpush1.msra.mxu0 %v3211
  %3247 = vmatprep.subr.mxu0 %v3210
  %3248 = vmatpush1.msra.mxu0 %v3209
  %3249 = vmatprep.subr.mxu0 %v3208
  %3250 = vmatpush1.msra.mxu0 %v3207
  %3251 = vmatprep.subr.mxu0 %v3206
  %3252 = vmatpush1.msra.mxu0 %v3205
  %3253 = vmatprep.subr.mxu0 %v3204
  %3254 = vmatpush1.msra.mxu0 %v3203
  %3255 = vmatprep.subr.mxu0 %v3202
  %3256 = vmatpush1.msra.mxu0 %v3201
  %3257 = vmatprep.subr.mxu0 %v3200
  %3258 = vmatpush1.msra.mxu0 %v3199
  %3259 = vmatprep.subr.mxu0 %v3198
  %3260 = vmatpush1.msra.mxu0 %v3197
  %3261 = vmatprep.subr.mxu0 %v3196
  %3262 = vmatpush1.msra.mxu0 %v3195
  %3263 = vmatprep.subr.mxu0 %v3194
  %3264 = vmatpush1.msra.mxu0 %v3193
  %3265 = vmatprep.subr.mxu0 0.0
  %3266 = vmatpush2.msra.mxu0 0.0
  %3267 = vmatprep.subr.mxu0 0.0
  %3268 = vmatpush2.msra.mxu0 0.0
  %3269 = vmatprep.subr.mxu0 0.0
  %3270 = vmatpush2.msra.mxu0 0.0
  %3271 = vmatprep.subr.mxu0 0.0
  %3272 = vmatpush2.msra.mxu0 0.0
  %3273 = vmatprep.subr.mxu0 0.0
  %3274 = vmatpush2.msra.mxu0 0.0
  %3275 = vmatprep.subr.mxu0 0.0
  %3276 = vmatpush2.msra.mxu0 0.0
  %3277 = vmatprep.subr.mxu0 0.0
  %3278 = vmatpush2.msra.mxu0 0.0
  %3279 = vmatprep.subr.mxu0 0.0
  %3280 = vmatpush2.msra.mxu0 0.0
  %3281 = vmatprep.subr.mxu0 0.0
  %3282 = vmatpush2.msra.mxu0 0.0
  %3283 = vmatprep.subr.mxu0 0.0
  %3284 = vmatpush2.msra.mxu0 0.0
  %3285 = vmatprep.subr.mxu0 0.0
  %3286 = vmatpush2.msra.mxu0 0.0
  %3287 = vmatprep.subr.mxu0 0.0
  %3288 = vmatpush2.msra.mxu0 0.0
  %3289 = vmatprep.subr.mxu0 0.0
  %3290 = vmatpush2.msra.mxu0 0.0
  %3291 = vmatprep.subr.mxu0 0.0
  %3292 = vmatpush2.msra.mxu0 0.0
  %3293 = vmatprep.subr.mxu0 0.0
  %3294 = vmatpush2.msra.mxu0 0.0
  %3295 = vmatprep.subr.mxu0 0.0
  %3296 = vmatpush2.msra.mxu0 0.0
  %3297 = vmatprep.mubr.f32.mxu0 0.0
  %3298 = vmatmul.mubr.f32.gmra.mxu0 %v3231
  %v3299 = vpop.f32.mrf.mxu0
  %v3300 = vadd.f32 %v3222, %v3299
  %v3301 = vpop.f32.mrf.mxu0
  %v3302 = vadd.f32 %v3226, %v3301
  %3303 = vdwg.mxu0
  %v3304 = vmax.f32 %v3300, 0.0
  %v3305 = vld [vmem:[%s26] sm:$0xff]
  %v3306 = vld [vmem:[%s26 + $0x8] sm:$0xff]
  %v3307 = vld [vmem:[%s26 + $0x10] sm:$0xff]
  %v3308 = vld [vmem:[%s26 + $0x18] sm:$0xff]
  %v3309 = vld [vmem:[%s26 + $0x20] sm:$0xff]
  %v3310 = vld [vmem:[%s26 + $0x28] sm:$0xff]
  %v3311 = vld [vmem:[%s26 + $0x30] sm:$0xff]
  %v3312 = vld [vmem:[%s26 + $0x38] sm:$0xff]
  %v3313 = vld [vmem:[%s26 + $0x40] sm:$0xff]
  %v3314 = vld [vmem:[%s26 + $0x48] sm:$0xff]
  %v3315 = vld [vmem:[%s26 + $0x50] sm:$0xff]
  %v3316 = vld [vmem:[%s26 + $0x58] sm:$0xff]
  %v3317 = vld [vmem:[%s26 + $0x60] sm:$0xff]
  %v3318 = vld [vmem:[%s26 + $0x68] sm:$0xff]
  %v3319 = vld [vmem:[%s26 + $0x70] sm:$0xff]
  %v3320 = vld [vmem:[%s26 + $0x78] sm:$0xff]
  %v3321 = vld [vmem:[%s27] sm:$0x1]
  %v3323 = vlaneseq
  %v3324 = vshrl.u32 %v3323, 7
  %v3325 = vsub.s32 0, %v3324
  %v3326 = vrot.slane %v3321, %v3325
  %3328 = vmatprep.subr.mxu0 0.0
  %3329 = vmatpush1.msra.mxu0 %v3320
  %3330 = vmatprep.subr.mxu0 0.0
  %3331 = vmatpush1.msra.mxu0 %v3319
  %3332 = vmatprep.subr.mxu0 0.0
  %3333 = vmatpush1.msra.mxu0 %v3318
  %3334 = vmatprep.subr.mxu0 0.0
  %3335 = vmatpush1.msra.mxu0 %v3317
  %3336 = vmatprep.subr.mxu0 0.0
  %3337 = vmatpush1.msra.mxu0 %v3316
  %3338 = vmatprep.subr.mxu0 0.0
  %3339 = vmatpush1.msra.mxu0 %v3315
  %3340 = vmatprep.subr.mxu0 0.0
  %3341 = vmatpush1.msra.mxu0 %v3314
  %3342 = vmatprep.subr.mxu0 0.0
  %3343 = vmatpush1.msra.mxu0 %v3313
  %3344 = vmatprep.subr.mxu0 0.0
  %3345 = vmatpush1.msra.mxu0 %v3312
  %3346 = vmatprep.subr.mxu0 0.0
  %3347 = vmatpush1.msra.mxu0 %v3311
  %3348 = vmatprep.subr.mxu0 0.0
  %3349 = vmatpush1.msra.mxu0 %v3310
  %3350 = vmatprep.subr.mxu0 0.0
  %3351 = vmatpush1.msra.mxu0 %v3309
  %3352 = vmatprep.subr.mxu0 0.0
  %3353 = vmatpush1.msra.mxu0 %v3308
  %3354 = vmatprep.subr.mxu0 0.0
  %3355 = vmatpush1.msra.mxu0 %v3307
  %3356 = vmatprep.subr.mxu0 0.0
  %3357 = vmatpush1.msra.mxu0 %v3306
  %3358 = vmatprep.subr.mxu0 0.0
  %3359 = vmatpush1.msra.mxu0 %v3305
  %3360 = vmatprep.subr.mxu0 0.0
  %3361 = vmatpush2.msra.mxu0 0.0
  %3362 = vmatprep.subr.mxu0 0.0
  %3363 = vmatpush2.msra.mxu0 0.0
  %3364 = vmatprep.subr.mxu0 0.0
  %3365 = vmatpush2.msra.mxu0 0.0
  %3366 = vmatprep.subr.mxu0 0.0
  %3367 = vmatpush2.msra.mxu0 0.0
  %3368 = vmatprep.subr.mxu0 0.0
  %3369 = vmatpush2.msra.mxu0 0.0
  %3370 = vmatprep.subr.mxu0 0.0
  %3371 = vmatpush2.msra.mxu0 0.0
  %3372 = vmatprep.subr.mxu0 0.0
  %3373 = vmatpush2.msra.mxu0 0.0
  %3374 = vmatprep.subr.mxu0 0.0
  %3375 = vmatpush2.msra.mxu0 0.0
  %3376 = vmatprep.subr.mxu0 0.0
  %3377 = vmatpush2.msra.mxu0 0.0
  %3378 = vmatprep.subr.mxu0 0.0
  %3379 = vmatpush2.msra.mxu0 0.0
  %3380 = vmatprep.subr.mxu0 0.0
  %3381 = vmatpush2.msra.mxu0 0.0
  %3382 = vmatprep.subr.mxu0 0.0
  %3383 = vmatpush2.msra.mxu0 0.0
  %3384 = vmatprep.subr.mxu0 0.0
  %3385 = vmatpush2.msra.mxu0 0.0
  %3386 = vmatprep.subr.mxu0 0.0
  %3387 = vmatpush2.msra.mxu0 0.0
  %3388 = vmatprep.subr.mxu0 0.0
  %3389 = vmatpush2.msra.mxu0 0.0
  %3390 = vmatprep.subr.mxu0 0.0
  %3391 = vmatpush2.msra.mxu0 0.0
  %3392 = vmatprep.mubr.f32.mxu0 0.0
  %3393 = vmatmul.mubr.f32.gmra.mxu0 %v3304
  %v3394 = vpop.f32.mrf.mxu0
  %v3395 = vadd.f32 %v3326, %v3394
  %v3396 = vpop.f32.mrf.mxu0
  %3397 = vdwg.mxu0
  %3399 = vrot.lane.b32.xlu0 %v3304, 96
  %v3400 = vpop.permute.xlu0 %3399
  %3403 = vrot.lane.b32.xlu0 %v3302, 64
  %v3404 = vpop.permute.xlu0 %3403
  %3407 = vrot.lane.b32.xlu0 %v3395, 88
  %v3408 = vpop.permute.xlu0 %3407
  %v3410 = vsel %vm3229, %v3192, %v3400
  %v3411 = vsel %vm164, %v3400, %v3404
  %vm3412 = vcmask 719872
  %v3413 = vsel %vm3412, %v3411, %v3408
  %vm3414 = vcmask 130048
  %v3415 = vsel %vm3414, %v3408, 0.0
  %v3419 = vcombine.low %v3410, %v3413
  %v3421 = vunpack.c.l.s4 1983009808
  %v3422 = vunpack.c.0.s8 %v3421
  %v3423 = vlaneseq
  %v3424 = vshrl.u32 %v3423, 7
  %v3425 = vsub.s32 %v3422, %v3424
  %v3426 = vrot.slane %v3419, %v3425
  %v3428 = vunpack.c.l.s4 1983009808
  %v3429 = vunpack.c.0.s8 %v3428
  %v3430 = vlaneseq
  %v3431 = vshrl.u32 %v3430, 7
  %v3432 = vsub.s32 %v3429, %v3431
  %v3433 = vrot.slane %v3415, %v3432
  %v3434 = vcombine.low %v3426, %v3433
  %3436 = vst [vmem:[%s28] sm:$0x3f] %v3434
  // Predicated region
  $region114: #{semi3d_forward.1} parent=0 // pred_check
    _
  $region115: #{semi3d_forward.1} parent=0 // pred_check_branch
    %3438 = sbr.rel (0) target = $region117
  $region116: #{semi3d_forward.1} parent=0 // pred_region
    _
  $region117: #{semi3d_forward.1} parent=0 // pred_fallthru
    _
  // Predicated region
  $region118: #{semi3d_forward.1} parent=0 // pred_check
    _
  $region119: #{semi3d_forward.1} parent=0 // pred_check_branch
    %3440 = sbr.rel (0) target = $region121
  $region120: #{semi3d_forward.1} parent=0 // pred_region
    _
  $region121: #{semi3d_forward.1} parent=0 // pred_fallthru
    _

</llo_original>
